<compile_context>
chip_gen: v7x
topology: tpu7x:2x2x1
jax: 0.10.0
libtpu: 0.0.40
codegen_flags: <defaults>
</compile_context>

<pallas_src>
import functools

import jax
import jax.numpy as jnp
from jax import lax
from jax.experimental import pallas as pl
from jax.experimental.pallas import tpu as pltpu  # noqa: F401  (not needed at toy size)


# ---------------------------------------------------------------------------
# Model hyper-parameters (small synthetic ViT consistent with vit_base_patch16
# structure: patch-embed conv, cls token, pos embed, pre-norm blocks, final LN)
# ---------------------------------------------------------------------------
PATCH = 16
IN_CHANS = 3
EMBED_DIM = 64
NUM_HEADS = 2
HEAD_DIM = EMBED_DIM // NUM_HEADS
DEPTH = 2
MLP_HIDDEN = 4 * EMBED_DIM          # 256 (already a multiple of 128)
LN_EPS = 1e-6
RES = 32                            # input resolution (H = W)
BATCH = 2

# Padded (lane / sublane aligned) sizes used inside the kernel.
DP = 128                            # embed dim padded to one lane group
HDP = 128                           # per-head dim padded to one lane group
T_PAD = 8                           # tokens per image padded to one sublane group

# RADIO InputConditioner (ImageNet normalization) -- folded into the patch-embed
# weights/additive term at pack time, never applied to the raw image.
_IMNET_MEAN = jnp.array([0.485, 0.456, 0.406], jnp.float32)
_IMNET_STD = jnp.array([0.229, 0.224, 0.225], jnp.float32)


# ---------------------------------------------------------------------------
# In-kernel helpers (all f32 elementwise math)
# ---------------------------------------------------------------------------
def _layernorm(x, gamma, beta):
    """LayerNorm over the REAL EMBED_DIM lanes of a DP-lane-padded slab.

    Padded lanes of `x` are zero by construction, so the sums over the padded
    axis equal the sums over the real lanes, with a (DP-D)*mu^2 correction for
    the centered second moment.  gamma/beta are zero on padded lanes, so the
    output keeps zero padded lanes.
    """
    mu = jnp.sum(x, axis=-1, keepdims=True) * (1.0 / EMBED_DIM)
    d = x - mu
    var = (jnp.sum(d * d, axis=-1, keepdims=True)
           - float(DP - EMBED_DIM) * mu * mu) * (1.0 / EMBED_DIM)
    return d * lax.rsqrt(var + LN_EPS) * gamma + beta


def _erf(x):
    # Abramowitz & Stegun 7.1.26 polynomial, |err| < 1.5e-7: matches PyTorch's
    # exact-erf GELU to f32 accuracy using only ops with guaranteed lowerings.
    p = 0.3275911
    a1, a2, a3, a4, a5 = (0.254829592, -0.284496736, 1.421413741,
                          -1.453152027, 1.061405429)
    ax = jnp.abs(x)
    t = 1.0 / (1.0 + p * ax)
    poly = ((((a5 * t + a4) * t + a3) * t + a2) * t + a1) * t
    y = 1.0 - poly * jnp.exp(-ax * ax)
    return jnp.where(x >= 0.0, y, -y)


def _gelu_exact(x):
    return 0.5 * x * (1.0 + _erf(x * 0.7071067811865476))


# ---------------------------------------------------------------------------
# Fused forward kernel: patch-embed -> DEPTH transformer blocks -> final LN
# ---------------------------------------------------------------------------
def _radio_fwd_kernel(B, T_tokens,
                      x0_ref, pw_ref, add_ref,
                      g1_ref, b1_ref, wqkv_ref, bqkv_ref, wp_ref, bp_ref,
                      g2_ref, b2_ref, w1_ref, bf1_ref, w2_ref, bf2_ref,
                      fg_ref, fb_ref, o_ref):
    H = NUM_HEADS
    depth = g1_ref.shape[0]
    BT = B * T_PAD

    # Patch embedding + folded ImageNet norm / conv bias / cls token / pos-embed.
    # x0 rows per image: [cls (zero), patches, pad (zero)]; add_ref carries the
    # additive term per token row and is broadcast over images.
    x = jnp.dot(x0_ref[...], pw_ref[...],
                preferred_element_type=jnp.float32)               # (BT, DP) f32
    x = (x.reshape(B, T_PAD, DP) + add_ref[...]).reshape(BT, DP)

    # Additive key-padding bias: padded key columns -> -1e30 before softmax.
    kbias = jnp.where(
        lax.broadcasted_iota(jnp.int32, (1, 1, T_PAD), 2) < T_tokens,
        jnp.float32(0.0), jnp.float32(-1e30))                     # (1, 1, T_PAD)

    for l in range(depth):
        # ---- Multi-head self-attention (pre-norm) ----
        xh = _layernorm(x, g1_ref[l], b1_ref[l])
        # qkv column layout (reordered at pack time, heads lane-aligned):
        #   [Q_h0 | Q_h1 | K_h0 | K_h1 | V_h0 | V_h1], each HDP=128 lanes wide.
        # 1/sqrt(head_dim) is already folded into the Q columns.
        qkv = (jnp.dot(xh.astype(jnp.bfloat16), wqkv_ref[l],
                       preferred_element_type=jnp.float32)
               + bqkv_ref[l])                                     # (BT, 3*H*HDP)

        proj = None
        for h in range(H):
            q = qkv[:, h * HDP:(h + 1) * HDP] \
                .reshape(B, T_PAD, HDP).astype(jnp.bfloat16)
            k = qkv[:, (H + h) * HDP:(H + h + 1) * HDP] \
                .reshape(B, T_PAD, HDP).astype(jnp.bfloat16)
            v = qkv[:, (2 * H + h) * HDP:(2 * H + h + 1) * HDP] \
                .reshape(B, T_PAD, HDP).astype(jnp.bfloat16)

            s = lax.dot_general(q, k, (((2,), (2,)), ((0,), (0,))),
                                preferred_element_type=jnp.float32) + kbias
            s = s - jnp.max(s, axis=-1, keepdims=True)
            p = jnp.exp(s)
            p = p * pl.reciprocal(jnp.sum(p, axis=-1, keepdims=True),
                                  approx=True)
            av = lax.dot_general(p.astype(jnp.bfloat16), v,
                                 (((2,), (1,)), ((0,), (0,))),
                                 preferred_element_type=jnp.float32)  # (B,T_PAD,HDP)

            # Output projection folded per head:
            #   concat_h(av_h) @ Wp == sum_h av_h @ Wp[h]
            contrib = jnp.dot(av.reshape(BT, HDP).astype(jnp.bfloat16),
                              wp_ref[l * H + h],
                              preferred_element_type=jnp.float32)     # (BT, DP)
            proj = contrib if proj is None else proj + contrib
        x = x + proj + bp_ref[l]

        # ---- MLP (pre-norm), exact erf-GELU like PyTorch/timm ----
        yh = _layernorm(x, g2_ref[l], b2_ref[l])
        h1 = (jnp.dot(yh.astype(jnp.bfloat16), w1_ref[l],
                      preferred_element_type=jnp.float32) + bf1_ref[l])
        h1 = _gelu_exact(h1)
        x = x + (jnp.dot(h1.astype(jnp.bfloat16), w2_ref[l],
                         preferred_element_type=jnp.float32) + bf2_ref[l])

    # ---- Final LayerNorm on the whole slab; one lane-dense store. ----
    # (cls rows / real lanes are sliced out by the wrapper.)
    o_ref[...] = _layernorm(x, fg_ref[...], fb_ref[...])


# ---------------------------------------------------------------------------
# Parameters / positional embedding
# ---------------------------------------------------------------------------
def make_pos_embed(T, D):
    # TODO(synk): stand-in sinusoidal pos-embed; the real RADIO model uses a
    # learned pos-embed that RADIOWrapper interpolates to the input resolution.
    pos = jnp.arange(T, dtype=jnp.float32)[:, None]
    dim = jnp.arange(D // 2, dtype=jnp.float32)[None, :]
    angle = pos / jnp.power(10000.0, 2.0 * dim / D)
    return jnp.concatenate([jnp.sin(angle), jnp.cos(angle)], axis=-1)   # (T, D)


def init_params(key):
    """Deterministic synthetic parameters (shapes follow the ViT backbone)."""
    D, Hm, Pd = EMBED_DIM, MLP_HIDDEN, IN_CHANS * PATCH * PATCH
    ks = jax.random.split(key, 2 + 4 * DEPTH)
    std = 0.02
    params = {
        "patch_w": std * jax.random.normal(ks[0], (Pd, D), jnp.float32),
        "patch_b": jnp.zeros((1, D), jnp.float32),
        "cls": std * jax.random.normal(ks[1], (1, D), jnp.float32),
        "final_g": jnp.ones((1, D), jnp.float32),
        "final_b": jnp.zeros((1, D), jnp.float32),
        "blocks": [],
    }
    for l in range(DEPTH):
        bk = ks[2 + 4 * l: 2 + 4 * (l + 1)]
        params["blocks"].append({
            "ln1_g": jnp.ones((1, D), jnp.float32),
            "ln1_b": jnp.zeros((1, D), jnp.float32),
            "wqkv": std * jax.random.normal(bk[0], (D, 3 * D), jnp.float32),
            "bqkv": jnp.zeros((1, 3 * D), jnp.float32),
            "wp": std * jax.random.normal(bk[1], (D, D), jnp.float32),
            "bp": jnp.zeros((1, D), jnp.float32),
            "ln2_g": jnp.ones((1, D), jnp.float32),
            "ln2_b": jnp.zeros((1, D), jnp.float32),
            "w1": std * jax.random.normal(bk[2], (D, Hm), jnp.float32),
            "bf1": jnp.zeros((1, Hm), jnp.float32),
            "w2": std * jax.random.normal(bk[3], (Hm, D), jnp.float32),
            "bf2": jnp.zeros((1, D), jnp.float32),
        })
    return params


def pack_params(params):
    """One-time packing: fold constants, reorder heads, pad to (8,128), cast.

    Weights that feed the MXU are cast to bf16 (f32 accumulation inside the
    kernel); biases / LayerNorm params stay f32.
    """
    D, Hm, hd, H = EMBED_DIM, MLP_HIDDEN, HEAD_DIM, NUM_HEADS
    Pd = IN_CHANS * PATCH * PATCH
    N = (RES // PATCH) ** 2
    T = N + 1
    scale = 1.0 / float(hd) ** 0.5

    def pad2(a, rows, cols):
        return jnp.pad(a, ((0, rows - a.shape[0]), (0, cols - a.shape[1])))

    # Fold RADIO's InputConditioner into the patch-embed matmul:
    #   ((x - m)/s) @ W + b  ==  x @ (W/s) + (b - (m/s) @ W)
    mean_vec = jnp.repeat(_IMNET_MEAN, PATCH * PATCH)          # (Pd,), chan-major
    std_vec = jnp.repeat(_IMNET_STD, PATCH * PATCH)
    pw = params["patch_w"] / std_vec[:, None]                  # (Pd, D)
    pb = params["patch_b"] - (mean_vec / std_vec)[None, :] @ params["patch_w"]

    # Additive term per token row: cls row carries cls token + pos[0]; patch
    # rows carry folded bias + pos; padded rows are zero.
    pos = make_pos_embed(T, D)
    add_one = jnp.concatenate([params["cls"] + pos[0:1], pb + pos[1:]], axis=0)

    def reorder_qkv_w(W):
        # (D, 3D) -> (DP, 3*H*HDP): per-(kind, head) blocks lane-aligned to 128,
        # Q pre-scaled by 1/sqrt(head_dim).
        cols = []
        for ki in range(3):
            for h in range(H):
                blk = W[:, ki * D + h * hd: ki * D + (h + 1) * hd]
                if ki == 0:
                    blk = blk * scale
                cols.append(pad2(blk, DP, HDP))
        return jnp.concatenate(cols, axis=1)

    def reorder_qkv_b(bvec):
        cols = []
        for ki in range(3):
            for h in range(H):
                blk = bvec[:, ki * D + h * hd: ki * D + (h + 1) * hd]
                if ki == 0:
                    blk = blk * scale
                cols.append(pad2(blk, 1, HDP))
        return jnp.concatenate(cols, axis=1)

    kinds = {k: [] for k in ("g1", "b1", "wqkv", "bqkv", "wp", "bp",
                             "g2", "b2", "w1", "bf1", "w2", "bf2")}
    for blk in params["blocks"]:
        kinds["g1"].append(pad2(blk["ln1_g"], 1, DP))   # pad lanes of gamma -> 0
        kinds["b1"].append(pad2(blk["ln1_b"], 1, DP))
        kinds["wqkv"].append(reorder_qkv_w(blk["wqkv"]))
        kinds["bqkv"].append(reorder_qkv_b(blk["bqkv"]))
        for h in range(H):                               # per-head Wp, index l*H+h
            kinds["wp"].append(pad2(blk["wp"][h * hd:(h + 1) * hd, :], HDP, DP))
        kinds["bp"].append(pad2(blk["bp"], 1, DP))
        kinds["g2"].append(pad2(blk["ln2_g"], 1, DP))
        kinds["b2"].append(pad2(blk["ln2_b"], 1, DP))
        kinds["w1"].append(pad2(blk["w1"], DP, Hm))
        kinds["bf1"].append(blk["bf1"])                  # (1, Hm), Hm % 128 == 0
        kinds["w2"].append(pad2(blk["w2"], Hm, DP))
        kinds["bf2"].append(pad2(blk["bf2"], 1, DP))

    def stack(name, dtype):
        return jnp.stack(kinds[name], axis=0).astype(dtype)

    return {
        "pw": pad2(pw, Pd, DP).astype(jnp.bfloat16),     # (Pd, DP)
        "add": pad2(add_one, T_PAD, DP),                 # (T_PAD, DP) f32
        "fg": pad2(params["final_g"], 1, DP),
        "fb": pad2(params["final_b"], 1, DP),
        "blocks": (
            stack("g1", jnp.float32), stack("b1", jnp.float32),
            stack("wqkv", jnp.bfloat16), stack("bqkv", jnp.float32),
            stack("wp", jnp.bfloat16), stack("bp", jnp.float32),
            stack("g2", jnp.float32), stack("b2", jnp.float32),
            stack("w1", jnp.bfloat16), stack("bf1", jnp.float32),
            stack("w2", jnp.bfloat16), stack("bf2", jnp.float32),
        ),
    }


# ---------------------------------------------------------------------------
# Forward wrapper: single fused pallas_call
# ---------------------------------------------------------------------------
@jax.jit
def c_radio_v2_forward(x, packed):
    """Returns `summary` == cls-token features after the final LayerNorm.

    x: NCHW float32 image batch whose H, W equal the configured resolution.
    """
    B, C, Hh, Ww = x.shape
    # TODO(synk): RADIOWrapper resizes/interpolates the input to `resolution`;
    # here the input is assumed to already match it.
    Hp, Wp_ = Hh // PATCH, Ww // PATCH
    N = Hp * Wp_
    T = N + 1
    Pd = C * PATCH * PATCH
    assert T <= T_PAD

    # im2col: conv2d(kernel=stride=patch) == matmul over flattened patches
    # (per-patch flatten order (C, ph, pw) matches conv-weight flattening).
    patches = (x.reshape(B, C, Hp, PATCH, Wp_, PATCH)
                 .transpose(0, 2, 4, 1, 3, 5)
                 .reshape(B, N, Pd))

    # Token rows per image: [cls (zero), N patches, T_PAD - T pad rows (zero)].
    # bf16 operands for the patch-embed matmul (f32 accumulation in-kernel).
    x0 = jnp.concatenate(
        [jnp.zeros((B, 1, Pd), jnp.float32), patches,
         jnp.zeros((B, T_PAD - T, Pd), jnp.float32)],
        axis=1).reshape(B * T_PAD, Pd).astype(jnp.bfloat16)

    out = pl.pallas_call(
        functools.partial(_radio_fwd_kernel, B, T),
        out_shape=jax.ShapeDtypeStruct((B * T_PAD, DP), jnp.float32),
    )(x0, packed["pw"], packed["add"], *packed["blocks"],
      packed["fg"], packed["fb"])

    # TODO(synk): RADIO may apply a summary adaptor/projection and use register
    # tokens; here summary = final-norm cls token (dim D), sliced from the
    # lane/token padded output slab.
    return out.reshape(B, T_PAD, DP)[:, 0, :EMBED_DIM]


if __name__ == "__main__":
    key = jax.random.PRNGKey(0)
    k_param, k_x = jax.random.split(key)

    params = init_params(k_param)
    packed = pack_params(params)
    # resolution = (32, 32): 2x2 patch grid with patch 16.
    x = jax.random.uniform(k_x, (BATCH, IN_CHANS, RES, RES), jnp.float32)

    summary = c_radio_v2_forward(x, packed)
    jax.block_until_ready(summary)
    assert summary.shape == (BATCH, EMBED_DIM)
    assert summary.dtype == jnp.float32
    assert bool(jnp.all(jnp.isfinite(summary)))
    print("KERNEL_OK")
</pallas_src>

<mosaic_0001>
module attributes {stable_mosaic.version = 11 : i64} {
  func.func @_radio_fwd_kernel(%arg0: memref<16x768xbf16, #tpu.memory_space<vmem>>, %arg1: memref<768x128xbf16, #tpu.memory_space<vmem>>, %arg2: memref<8x128xf32, #tpu.memory_space<vmem>>, %arg3: memref<2x1x128xf32, #tpu.memory_space<vmem>>, %arg4: memref<2x1x128xf32, #tpu.memory_space<vmem>>, %arg5: memref<2x128x768xbf16, #tpu.memory_space<vmem>>, %arg6: memref<2x1x768xf32, #tpu.memory_space<vmem>>, %arg7: memref<4x128x128xbf16, #tpu.memory_space<vmem>>, %arg8: memref<2x1x128xf32, #tpu.memory_space<vmem>>, %arg9: memref<2x1x128xf32, #tpu.memory_space<vmem>>, %arg10: memref<2x1x128xf32, #tpu.memory_space<vmem>>, %arg11: memref<2x128x256xbf16, #tpu.memory_space<vmem>>, %arg12: memref<2x1x256xf32, #tpu.memory_space<vmem>>, %arg13: memref<2x256x128xbf16, #tpu.memory_space<vmem>>, %arg14: memref<2x1x128xf32, #tpu.memory_space<vmem>>, %arg15: memref<1x128xf32, #tpu.memory_space<vmem>>, %arg16: memref<1x128xf32, #tpu.memory_space<vmem>>, %arg17: memref<16x128xf32, #tpu.memory_space<vmem>>) attributes {dimension_semantics = [], scalar_prefetch = 0 : i64, scratch_operands = 0 : i64, tpu.core_type = #tpu.core_type<tc>} {
    %c0 = arith.constant 0 : index
    %c0_0 = arith.constant 0 : index
    %0 = vector.load %arg0[%c0, %c0_0] : memref<16x768xbf16, #tpu.memory_space<vmem>>, vector<16x768xbf16>
    %c0_1 = arith.constant 0 : index
    %c0_2 = arith.constant 0 : index
    %1 = vector.load %arg1[%c0_1, %c0_2] : memref<768x128xbf16, #tpu.memory_space<vmem>>, vector<768x128xbf16>
    %cst = arith.constant dense<0.000000e+00> : vector<16x128xf32>
    %2 = tpu.matmul %0, %1, %cst {dimension_numbers = #tpu.dot_dimension_numbers<[1], [0], [0], [1], [0, 0, 1, 1], [], []>} : vector<16x768xbf16>, vector<768x128xbf16>, vector<16x128xf32> -> vector<16x128xf32>
    %3 = vector.shape_cast %2 : vector<16x128xf32> to vector<2x8x128xf32>
    %c0_3 = arith.constant 0 : index
    %c0_4 = arith.constant 0 : index
    %4 = vector.load %arg2[%c0_3, %c0_4] : memref<8x128xf32, #tpu.memory_space<vmem>>, vector<8x128xf32>
    %5 = vector.shape_cast %4 : vector<8x128xf32> to vector<1x8x128xf32>
    %6 = vector.broadcast %5 : vector<1x8x128xf32> to vector<2x8x128xf32>
    %7 = arith.addf %3, %6 : vector<2x8x128xf32>
    %8 = vector.shape_cast %7 : vector<2x8x128xf32> to vector<16x128xf32>
    %9 = tpu.iota {dimensions = array<i32: 2>} : vector<1x1x8xi32>
    %c5_i32 = arith.constant 5 : i32
    %10 = vector.broadcast %c5_i32 : i32 to vector<1x1x8xi32>
    %11 = arith.cmpi slt, %9, %10 : vector<1x1x8xi32>
    %cst_5 = arith.constant 0.000000e+00 : f32
    %cst_6 = arith.constant -1.000000e+30 : f32
    %12 = vector.broadcast %cst_5 : f32 to vector<1x1x8xf32>
    %13 = vector.broadcast %cst_6 : f32 to vector<1x1x8xf32>
    %14 = arith.select %11, %12, %13 : vector<1x1x8xi1>, vector<1x1x8xf32>
    %c0_7 = arith.constant 0 : index
    %c0_8 = arith.constant 0 : index
    %c0_9 = arith.constant 0 : index
    %15 = vector.load %arg3[%c0_7, %c0_8, %c0_9] : memref<2x1x128xf32, #tpu.memory_space<vmem>>, vector<1x1x128xf32>
    %16 = vector.shape_cast %15 : vector<1x1x128xf32> to vector<1x128xf32>
    %c0_10 = arith.constant 0 : index
    %c0_11 = arith.constant 0 : index
    %c0_12 = arith.constant 0 : index
    %17 = vector.load %arg4[%c0_10, %c0_11, %c0_12] : memref<2x1x128xf32, #tpu.memory_space<vmem>>, vector<1x1x128xf32>
    %18 = vector.shape_cast %17 : vector<1x1x128xf32> to vector<1x128xf32>
    %cst_13 = arith.constant dense<0.000000e+00> : vector<16xf32>
    %19 = vector.multi_reduction <add>, %8, %cst_13 [1] : vector<16x128xf32> to vector<16xf32>
    %20 = vector.shape_cast %19 : vector<16xf32> to vector<16x1xf32>
    %cst_14 = arith.constant 1.562500e-02 : f32
    %21 = vector.broadcast %cst_14 : f32 to vector<16x1xf32>
    %22 = arith.mulf %20, %21 : vector<16x1xf32>
    %23 = vector.broadcast %22 : vector<16x1xf32> to vector<16x128xf32>
    %24 = arith.subf %8, %23 : vector<16x128xf32>
    %25 = arith.mulf %24, %24 : vector<16x128xf32>
    %cst_15 = arith.constant dense<0.000000e+00> : vector<16xf32>
    %26 = vector.multi_reduction <add>, %25, %cst_15 [1] : vector<16x128xf32> to vector<16xf32>
    %27 = vector.shape_cast %26 : vector<16xf32> to vector<16x1xf32>
    %cst_16 = arith.constant 6.400000e+01 : f32
    %28 = vector.broadcast %cst_16 : f32 to vector<16x1xf32>
    %29 = arith.mulf %28, %22 : vector<16x1xf32>
    %30 = arith.mulf %29, %22 : vector<16x1xf32>
    %31 = arith.subf %27, %30 : vector<16x1xf32>
    %cst_17 = arith.constant 1.562500e-02 : f32
    %32 = vector.broadcast %cst_17 : f32 to vector<16x1xf32>
    %33 = arith.mulf %31, %32 : vector<16x1xf32>
    %cst_18 = arith.constant 9.99999997E-7 : f32
    %34 = vector.broadcast %cst_18 : f32 to vector<16x1xf32>
    %35 = arith.addf %33, %34 : vector<16x1xf32>
    %36 = math.rsqrt %35 : vector<16x1xf32>
    %37 = vector.broadcast %36 : vector<16x1xf32> to vector<16x128xf32>
    %38 = arith.mulf %24, %37 : vector<16x128xf32>
    %39 = vector.broadcast %16 : vector<1x128xf32> to vector<16x128xf32>
    %40 = arith.mulf %38, %39 : vector<16x128xf32>
    %41 = vector.broadcast %18 : vector<1x128xf32> to vector<16x128xf32>
    %42 = arith.addf %40, %41 : vector<16x128xf32>
    %43 = arith.truncf %42 : vector<16x128xf32> to vector<16x128xbf16>
    %c0_19 = arith.constant 0 : index
    %c0_20 = arith.constant 0 : index
    %c0_21 = arith.constant 0 : index
    %44 = vector.load %arg5[%c0_19, %c0_20, %c0_21] : memref<2x128x768xbf16, #tpu.memory_space<vmem>>, vector<1x128x768xbf16>
    %45 = vector.shape_cast %44 : vector<1x128x768xbf16> to vector<128x768xbf16>
    %cst_22 = arith.constant dense<0.000000e+00> : vector<16x768xf32>
    %46 = tpu.matmul %43, %45, %cst_22 {dimension_numbers = #tpu.dot_dimension_numbers<[1], [0], [0], [1], [0, 0, 1, 1], [], []>} : vector<16x128xbf16>, vector<128x768xbf16>, vector<16x768xf32> -> vector<16x768xf32>
    %c0_23 = arith.constant 0 : index
    %c0_24 = arith.constant 0 : index
    %c0_25 = arith.constant 0 : index
    %47 = vector.load %arg6[%c0_23, %c0_24, %c0_25] : memref<2x1x768xf32, #tpu.memory_space<vmem>>, vector<1x1x768xf32>
    %48 = vector.shape_cast %47 : vector<1x1x768xf32> to vector<1x768xf32>
    %49 = vector.broadcast %48 : vector<1x768xf32> to vector<16x768xf32>
    %50 = arith.addf %46, %49 : vector<16x768xf32>
    %51 = vector.extract_strided_slice %50 {offsets = [0, 0], sizes = [16, 128], strides = [1, 1]} : vector<16x768xf32> to vector<16x128xf32>
    %52 = vector.shape_cast %51 : vector<16x128xf32> to vector<2x8x128xf32>
    %53 = arith.truncf %52 : vector<2x8x128xf32> to vector<2x8x128xbf16>
    %54 = vector.extract_strided_slice %50 {offsets = [0, 256], sizes = [16, 128], strides = [1, 1]} : vector<16x768xf32> to vector<16x128xf32>
    %55 = vector.shape_cast %54 : vector<16x128xf32> to vector<2x8x128xf32>
    %56 = arith.truncf %55 : vector<2x8x128xf32> to vector<2x8x128xbf16>
    %57 = vector.extract_strided_slice %50 {offsets = [0, 512], sizes = [16, 128], strides = [1, 1]} : vector<16x768xf32> to vector<16x128xf32>
    %58 = vector.shape_cast %57 : vector<16x128xf32> to vector<2x8x128xf32>
    %59 = arith.truncf %58 : vector<2x8x128xf32> to vector<2x8x128xbf16>
    %cst_26 = arith.constant dense<0.000000e+00> : vector<2x8x8xf32>
    %60 = tpu.matmul %53, %56, %cst_26 {dimension_numbers = #tpu.dot_dimension_numbers<[2], [2], [1], [1], [0, 0, 0, 1, 1, 1], [0], [0]>} : vector<2x8x128xbf16>, vector<2x8x128xbf16>, vector<2x8x8xf32> -> vector<2x8x8xf32>
    %61 = vector.broadcast %14 : vector<1x1x8xf32> to vector<2x8x8xf32>
    %62 = arith.addf %60, %61 : vector<2x8x8xf32>
    %cst_27 = arith.constant dense<0xFF800000> : vector<2x8xf32>
    %63 = vector.multi_reduction <maximumf>, %62, %cst_27 [2] : vector<2x8x8xf32> to vector<2x8xf32>
    %64 = vector.shape_cast %63 : vector<2x8xf32> to vector<2x8x1xf32>
    %65 = vector.broadcast %64 : vector<2x8x1xf32> to vector<2x8x8xf32>
    %66 = arith.subf %62, %65 : vector<2x8x8xf32>
    %67 = math.exp %66 : vector<2x8x8xf32>
    %cst_28 = arith.constant dense<0.000000e+00> : vector<2x8xf32>
    %68 = vector.multi_reduction <add>, %67, %cst_28 [2] : vector<2x8x8xf32> to vector<2x8xf32>
    %69 = vector.shape_cast %68 : vector<2x8xf32> to vector<2x8x1xf32>
    %70 = tpu.reciprocal %69 {approx = true} : vector<2x8x1xf32> -> vector<2x8x1xf32>
    %71 = vector.broadcast %70 : vector<2x8x1xf32> to vector<2x8x8xf32>
    %72 = arith.mulf %67, %71 : vector<2x8x8xf32>
    %73 = arith.truncf %72 : vector<2x8x8xf32> to vector<2x8x8xbf16>
    %cst_29 = arith.constant dense<0.000000e+00> : vector<2x8x128xf32>
    %74 = tpu.matmul %73, %59, %cst_29 {dimension_numbers = #tpu.dot_dimension_numbers<[2], [1], [1], [2], [0, 0, 0, 1, 1, 2], [0], [0]>} : vector<2x8x8xbf16>, vector<2x8x128xbf16>, vector<2x8x128xf32> -> vector<2x8x128xf32>
    %75 = vector.shape_cast %74 : vector<2x8x128xf32> to vector<16x128xf32>
    %76 = arith.truncf %75 : vector<16x128xf32> to vector<16x128xbf16>
    %c0_30 = arith.constant 0 : index
    %c0_31 = arith.constant 0 : index
    %c0_32 = arith.constant 0 : index
    %77 = vector.load %arg7[%c0_30, %c0_31, %c0_32] : memref<4x128x128xbf16, #tpu.memory_space<vmem>>, vector<1x128x128xbf16>
    %78 = vector.shape_cast %77 : vector<1x128x128xbf16> to vector<128x128xbf16>
    %cst_33 = arith.constant dense<0.000000e+00> : vector<16x128xf32>
    %79 = tpu.matmul %76, %78, %cst_33 {dimension_numbers = #tpu.dot_dimension_numbers<[1], [0], [0], [1], [0, 0, 1, 1], [], []>} : vector<16x128xbf16>, vector<128x128xbf16>, vector<16x128xf32> -> vector<16x128xf32>
    %80 = vector.extract_strided_slice %50 {offsets = [0, 128], sizes = [16, 128], strides = [1, 1]} : vector<16x768xf32> to vector<16x128xf32>
    %81 = vector.shape_cast %80 : vector<16x128xf32> to vector<2x8x128xf32>
    %82 = arith.truncf %81 : vector<2x8x128xf32> to vector<2x8x128xbf16>
    %83 = vector.extract_strided_slice %50 {offsets = [0, 384], sizes = [16, 128], strides = [1, 1]} : vector<16x768xf32> to vector<16x128xf32>
    %84 = vector.shape_cast %83 : vector<16x128xf32> to vector<2x8x128xf32>
    %85 = arith.truncf %84 : vector<2x8x128xf32> to vector<2x8x128xbf16>
    %86 = vector.extract_strided_slice %50 {offsets = [0, 640], sizes = [16, 128], strides = [1, 1]} : vector<16x768xf32> to vector<16x128xf32>
    %87 = vector.shape_cast %86 : vector<16x128xf32> to vector<2x8x128xf32>
    %88 = arith.truncf %87 : vector<2x8x128xf32> to vector<2x8x128xbf16>
    %cst_34 = arith.constant dense<0.000000e+00> : vector<2x8x8xf32>
    %89 = tpu.matmul %82, %85, %cst_34 {dimension_numbers = #tpu.dot_dimension_numbers<[2], [2], [1], [1], [0, 0, 0, 1, 1, 1], [0], [0]>} : vector<2x8x128xbf16>, vector<2x8x128xbf16>, vector<2x8x8xf32> -> vector<2x8x8xf32>
    %90 = vector.broadcast %14 : vector<1x1x8xf32> to vector<2x8x8xf32>
    %91 = arith.addf %89, %90 : vector<2x8x8xf32>
    %cst_35 = arith.constant dense<0xFF800000> : vector<2x8xf32>
    %92 = vector.multi_reduction <maximumf>, %91, %cst_35 [2] : vector<2x8x8xf32> to vector<2x8xf32>
    %93 = vector.shape_cast %92 : vector<2x8xf32> to vector<2x8x1xf32>
    %94 = vector.broadcast %93 : vector<2x8x1xf32> to vector<2x8x8xf32>
    %95 = arith.subf %91, %94 : vector<2x8x8xf32>
    %96 = math.exp %95 : vector<2x8x8xf32>
    %cst_36 = arith.constant dense<0.000000e+00> : vector<2x8xf32>
    %97 = vector.multi_reduction <add>, %96, %cst_36 [2] : vector<2x8x8xf32> to vector<2x8xf32>
    %98 = vector.shape_cast %97 : vector<2x8xf32> to vector<2x8x1xf32>
    %99 = tpu.reciprocal %98 {approx = true} : vector<2x8x1xf32> -> vector<2x8x1xf32>
    %100 = vector.broadcast %99 : vector<2x8x1xf32> to vector<2x8x8xf32>
    %101 = arith.mulf %96, %100 : vector<2x8x8xf32>
    %102 = arith.truncf %101 : vector<2x8x8xf32> to vector<2x8x8xbf16>
    %cst_37 = arith.constant dense<0.000000e+00> : vector<2x8x128xf32>
    %103 = tpu.matmul %102, %88, %cst_37 {dimension_numbers = #tpu.dot_dimension_numbers<[2], [1], [1], [2], [0, 0, 0, 1, 1, 2], [0], [0]>} : vector<2x8x8xbf16>, vector<2x8x128xbf16>, vector<2x8x128xf32> -> vector<2x8x128xf32>
    %104 = vector.shape_cast %103 : vector<2x8x128xf32> to vector<16x128xf32>
    %105 = arith.truncf %104 : vector<16x128xf32> to vector<16x128xbf16>
    %c1 = arith.constant 1 : index
    %c0_38 = arith.constant 0 : index
    %c0_39 = arith.constant 0 : index
    %106 = vector.load %arg7[%c1, %c0_38, %c0_39] : memref<4x128x128xbf16, #tpu.memory_space<vmem>>, vector<1x128x128xbf16>
    %107 = vector.shape_cast %106 : vector<1x128x128xbf16> to vector<128x128xbf16>
    %cst_40 = arith.constant dense<0.000000e+00> : vector<16x128xf32>
    %108 = tpu.matmul %105, %107, %cst_40 {dimension_numbers = #tpu.dot_dimension_numbers<[1], [0], [0], [1], [0, 0, 1, 1], [], []>} : vector<16x128xbf16>, vector<128x128xbf16>, vector<16x128xf32> -> vector<16x128xf32>
    %109 = arith.addf %79, %108 : vector<16x128xf32>
    %110 = arith.addf %8, %109 : vector<16x128xf32>
    %c0_41 = arith.constant 0 : index
    %c0_42 = arith.constant 0 : index
    %c0_43 = arith.constant 0 : index
    %111 = vector.load %arg8[%c0_41, %c0_42, %c0_43] : memref<2x1x128xf32, #tpu.memory_space<vmem>>, vector<1x1x128xf32>
    %112 = vector.shape_cast %111 : vector<1x1x128xf32> to vector<1x128xf32>
    %113 = vector.broadcast %112 : vector<1x128xf32> to vector<16x128xf32>
    %114 = arith.addf %110, %113 : vector<16x128xf32>
    %c0_44 = arith.constant 0 : index
    %c0_45 = arith.constant 0 : index
    %c0_46 = arith.constant 0 : index
    %115 = vector.load %arg9[%c0_44, %c0_45, %c0_46] : memref<2x1x128xf32, #tpu.memory_space<vmem>>, vector<1x1x128xf32>
    %116 = vector.shape_cast %115 : vector<1x1x128xf32> to vector<1x128xf32>
    %c0_47 = arith.constant 0 : index
    %c0_48 = arith.constant 0 : index
    %c0_49 = arith.constant 0 : index
    %117 = vector.load %arg10[%c0_47, %c0_48, %c0_49] : memref<2x1x128xf32, #tpu.memory_space<vmem>>, vector<1x1x128xf32>
    %118 = vector.shape_cast %117 : vector<1x1x128xf32> to vector<1x128xf32>
    %cst_50 = arith.constant dense<0.000000e+00> : vector<16xf32>
    %119 = vector.multi_reduction <add>, %114, %cst_50 [1] : vector<16x128xf32> to vector<16xf32>
    %120 = vector.shape_cast %119 : vector<16xf32> to vector<16x1xf32>
    %cst_51 = arith.constant 1.562500e-02 : f32
    %121 = vector.broadcast %cst_51 : f32 to vector<16x1xf32>
    %122 = arith.mulf %120, %121 : vector<16x1xf32>
    %123 = vector.broadcast %122 : vector<16x1xf32> to vector<16x128xf32>
    %124 = arith.subf %114, %123 : vector<16x128xf32>
    %125 = arith.mulf %124, %124 : vector<16x128xf32>
    %cst_52 = arith.constant dense<0.000000e+00> : vector<16xf32>
    %126 = vector.multi_reduction <add>, %125, %cst_52 [1] : vector<16x128xf32> to vector<16xf32>
    %127 = vector.shape_cast %126 : vector<16xf32> to vector<16x1xf32>
    %cst_53 = arith.constant 6.400000e+01 : f32
    %128 = vector.broadcast %cst_53 : f32 to vector<16x1xf32>
    %129 = arith.mulf %128, %122 : vector<16x1xf32>
    %130 = arith.mulf %129, %122 : vector<16x1xf32>
    %131 = arith.subf %127, %130 : vector<16x1xf32>
    %cst_54 = arith.constant 1.562500e-02 : f32
    %132 = vector.broadcast %cst_54 : f32 to vector<16x1xf32>
    %133 = arith.mulf %131, %132 : vector<16x1xf32>
    %cst_55 = arith.constant 9.99999997E-7 : f32
    %134 = vector.broadcast %cst_55 : f32 to vector<16x1xf32>
    %135 = arith.addf %133, %134 : vector<16x1xf32>
    %136 = math.rsqrt %135 : vector<16x1xf32>
    %137 = vector.broadcast %136 : vector<16x1xf32> to vector<16x128xf32>
    %138 = arith.mulf %124, %137 : vector<16x128xf32>
    %139 = vector.broadcast %116 : vector<1x128xf32> to vector<16x128xf32>
    %140 = arith.mulf %138, %139 : vector<16x128xf32>
    %141 = vector.broadcast %118 : vector<1x128xf32> to vector<16x128xf32>
    %142 = arith.addf %140, %141 : vector<16x128xf32>
    %143 = arith.truncf %142 : vector<16x128xf32> to vector<16x128xbf16>
    %c0_56 = arith.constant 0 : index
    %c0_57 = arith.constant 0 : index
    %c0_58 = arith.constant 0 : index
    %144 = vector.load %arg11[%c0_56, %c0_57, %c0_58] : memref<2x128x256xbf16, #tpu.memory_space<vmem>>, vector<1x128x256xbf16>
    %145 = vector.shape_cast %144 : vector<1x128x256xbf16> to vector<128x256xbf16>
    %cst_59 = arith.constant dense<0.000000e+00> : vector<16x256xf32>
    %146 = tpu.matmul %143, %145, %cst_59 {dimension_numbers = #tpu.dot_dimension_numbers<[1], [0], [0], [1], [0, 0, 1, 1], [], []>} : vector<16x128xbf16>, vector<128x256xbf16>, vector<16x256xf32> -> vector<16x256xf32>
    %c0_60 = arith.constant 0 : index
    %c0_61 = arith.constant 0 : index
    %c0_62 = arith.constant 0 : index
    %147 = vector.load %arg12[%c0_60, %c0_61, %c0_62] : memref<2x1x256xf32, #tpu.memory_space<vmem>>, vector<1x1x256xf32>
    %148 = vector.shape_cast %147 : vector<1x1x256xf32> to vector<1x256xf32>
    %149 = vector.broadcast %148 : vector<1x256xf32> to vector<16x256xf32>
    %150 = arith.addf %146, %149 : vector<16x256xf32>
    %cst_63 = arith.constant 5.000000e-01 : f32
    %151 = vector.broadcast %cst_63 : f32 to vector<16x256xf32>
    %152 = arith.mulf %151, %150 : vector<16x256xf32>
    %cst_64 = arith.constant 0.707106769 : f32
    %153 = vector.broadcast %cst_64 : f32 to vector<16x256xf32>
    %154 = arith.mulf %150, %153 : vector<16x256xf32>
    %155 = math.absf %154 : vector<16x256xf32>
    %cst_65 = arith.constant 0.327591091 : f32
    %156 = vector.broadcast %cst_65 : f32 to vector<16x256xf32>
    %157 = arith.mulf %156, %155 : vector<16x256xf32>
    %cst_66 = arith.constant 1.000000e+00 : f32
    %158 = vector.broadcast %cst_66 : f32 to vector<16x256xf32>
    %159 = arith.addf %158, %157 : vector<16x256xf32>
    %cst_67 = arith.constant 1.000000e+00 : f32
    %160 = vector.broadcast %cst_67 : f32 to vector<16x256xf32>
    %161 = arith.divf %160, %159 : vector<16x256xf32>
    %cst_68 = arith.constant 1.06140542 : f32
    %162 = vector.broadcast %cst_68 : f32 to vector<16x256xf32>
    %163 = arith.mulf %162, %161 : vector<16x256xf32>
    %cst_69 = arith.constant -1.45315206 : f32
    %164 = vector.broadcast %cst_69 : f32 to vector<16x256xf32>
    %165 = arith.addf %163, %164 : vector<16x256xf32>
    %166 = arith.mulf %165, %161 : vector<16x256xf32>
    %cst_70 = arith.constant 1.42141378 : f32
    %167 = vector.broadcast %cst_70 : f32 to vector<16x256xf32>
    %168 = arith.addf %166, %167 : vector<16x256xf32>
    %169 = arith.mulf %168, %161 : vector<16x256xf32>
    %cst_71 = arith.constant -0.284496725 : f32
    %170 = vector.broadcast %cst_71 : f32 to vector<16x256xf32>
    %171 = arith.addf %169, %170 : vector<16x256xf32>
    %172 = arith.mulf %171, %161 : vector<16x256xf32>
    %cst_72 = arith.constant 0.254829586 : f32
    %173 = vector.broadcast %cst_72 : f32 to vector<16x256xf32>
    %174 = arith.addf %172, %173 : vector<16x256xf32>
    %175 = arith.mulf %174, %161 : vector<16x256xf32>
    %cst_73 = arith.constant 0.000000e+00 : f32
    %176 = vector.broadcast %cst_73 : f32 to vector<16x256xf32>
    %177 = arith.subf %176, %155 : vector<16x256xf32>
    %178 = arith.mulf %177, %155 : vector<16x256xf32>
    %179 = math.exp %178 : vector<16x256xf32>
    %180 = arith.mulf %175, %179 : vector<16x256xf32>
    %cst_74 = arith.constant 1.000000e+00 : f32
    %181 = vector.broadcast %cst_74 : f32 to vector<16x256xf32>
    %182 = arith.subf %181, %180 : vector<16x256xf32>
    %cst_75 = arith.constant 0.000000e+00 : f32
    %183 = vector.broadcast %cst_75 : f32 to vector<16x256xf32>
    %184 = arith.cmpf oge, %154, %183 : vector<16x256xf32>
    %cst_76 = arith.constant 0.000000e+00 : f32
    %185 = vector.broadcast %cst_76 : f32 to vector<16x256xf32>
    %186 = arith.subf %185, %182 : vector<16x256xf32>
    %187 = arith.select %184, %182, %186 : vector<16x256xi1>, vector<16x256xf32>
    %cst_77 = arith.constant 1.000000e+00 : f32
    %188 = vector.broadcast %cst_77 : f32 to vector<16x256xf32>
    %189 = arith.addf %188, %187 : vector<16x256xf32>
    %190 = arith.mulf %152, %189 : vector<16x256xf32>
    %191 = arith.truncf %190 : vector<16x256xf32> to vector<16x256xbf16>
    %c0_78 = arith.constant 0 : index
    %c0_79 = arith.constant 0 : index
    %c0_80 = arith.constant 0 : index
    %192 = vector.load %arg13[%c0_78, %c0_79, %c0_80] : memref<2x256x128xbf16, #tpu.memory_space<vmem>>, vector<1x256x128xbf16>
    %193 = vector.shape_cast %192 : vector<1x256x128xbf16> to vector<256x128xbf16>
    %cst_81 = arith.constant dense<0.000000e+00> : vector<16x128xf32>
    %194 = tpu.matmul %191, %193, %cst_81 {dimension_numbers = #tpu.dot_dimension_numbers<[1], [0], [0], [1], [0, 0, 1, 1], [], []>} : vector<16x256xbf16>, vector<256x128xbf16>, vector<16x128xf32> -> vector<16x128xf32>
    %c0_82 = arith.constant 0 : index
    %c0_83 = arith.constant 0 : index
    %c0_84 = arith.constant 0 : index
    %195 = vector.load %arg14[%c0_82, %c0_83, %c0_84] : memref<2x1x128xf32, #tpu.memory_space<vmem>>, vector<1x1x128xf32>
    %196 = vector.shape_cast %195 : vector<1x1x128xf32> to vector<1x128xf32>
    %197 = vector.broadcast %196 : vector<1x128xf32> to vector<16x128xf32>
    %198 = arith.addf %194, %197 : vector<16x128xf32>
    %199 = arith.addf %114, %198 : vector<16x128xf32>
    %c1_85 = arith.constant 1 : index
    %c0_86 = arith.constant 0 : index
    %c0_87 = arith.constant 0 : index
    %200 = vector.load %arg3[%c1_85, %c0_86, %c0_87] : memref<2x1x128xf32, #tpu.memory_space<vmem>>, vector<1x1x128xf32>
    %201 = vector.shape_cast %200 : vector<1x1x128xf32> to vector<1x128xf32>
    %c1_88 = arith.constant 1 : index
    %c0_89 = arith.constant 0 : index
    %c0_90 = arith.constant 0 : index
    %202 = vector.load %arg4[%c1_88, %c0_89, %c0_90] : memref<2x1x128xf32, #tpu.memory_space<vmem>>, vector<1x1x128xf32>
    %203 = vector.shape_cast %202 : vector<1x1x128xf32> to vector<1x128xf32>
    %cst_91 = arith.constant dense<0.000000e+00> : vector<16xf32>
    %204 = vector.multi_reduction <add>, %199, %cst_91 [1] : vector<16x128xf32> to vector<16xf32>
    %205 = vector.shape_cast %204 : vector<16xf32> to vector<16x1xf32>
    %cst_92 = arith.constant 1.562500e-02 : f32
    %206 = vector.broadcast %cst_92 : f32 to vector<16x1xf32>
    %207 = arith.mulf %205, %206 : vector<16x1xf32>
    %208 = vector.broadcast %207 : vector<16x1xf32> to vector<16x128xf32>
    %209 = arith.subf %199, %208 : vector<16x128xf32>
    %210 = arith.mulf %209, %209 : vector<16x128xf32>
    %cst_93 = arith.constant dense<0.000000e+00> : vector<16xf32>
    %211 = vector.multi_reduction <add>, %210, %cst_93 [1] : vector<16x128xf32> to vector<16xf32>
    %212 = vector.shape_cast %211 : vector<16xf32> to vector<16x1xf32>
    %cst_94 = arith.constant 6.400000e+01 : f32
    %213 = vector.broadcast %cst_94 : f32 to vector<16x1xf32>
    %214 = arith.mulf %213, %207 : vector<16x1xf32>
    %215 = arith.mulf %214, %207 : vector<16x1xf32>
    %216 = arith.subf %212, %215 : vector<16x1xf32>
    %cst_95 = arith.constant 1.562500e-02 : f32
    %217 = vector.broadcast %cst_95 : f32 to vector<16x1xf32>
    %218 = arith.mulf %216, %217 : vector<16x1xf32>
    %cst_96 = arith.constant 9.99999997E-7 : f32
    %219 = vector.broadcast %cst_96 : f32 to vector<16x1xf32>
    %220 = arith.addf %218, %219 : vector<16x1xf32>
    %221 = math.rsqrt %220 : vector<16x1xf32>
    %222 = vector.broadcast %221 : vector<16x1xf32> to vector<16x128xf32>
    %223 = arith.mulf %209, %222 : vector<16x128xf32>
    %224 = vector.broadcast %201 : vector<1x128xf32> to vector<16x128xf32>
    %225 = arith.mulf %223, %224 : vector<16x128xf32>
    %226 = vector.broadcast %203 : vector<1x128xf32> to vector<16x128xf32>
    %227 = arith.addf %225, %226 : vector<16x128xf32>
    %228 = arith.truncf %227 : vector<16x128xf32> to vector<16x128xbf16>
    %c1_97 = arith.constant 1 : index
    %c0_98 = arith.constant 0 : index
    %c0_99 = arith.constant 0 : index
    %229 = vector.load %arg5[%c1_97, %c0_98, %c0_99] : memref<2x128x768xbf16, #tpu.memory_space<vmem>>, vector<1x128x768xbf16>
    %230 = vector.shape_cast %229 : vector<1x128x768xbf16> to vector<128x768xbf16>
    %cst_100 = arith.constant dense<0.000000e+00> : vector<16x768xf32>
    %231 = tpu.matmul %228, %230, %cst_100 {dimension_numbers = #tpu.dot_dimension_numbers<[1], [0], [0], [1], [0, 0, 1, 1], [], []>} : vector<16x128xbf16>, vector<128x768xbf16>, vector<16x768xf32> -> vector<16x768xf32>
    %c1_101 = arith.constant 1 : index
    %c0_102 = arith.constant 0 : index
    %c0_103 = arith.constant 0 : index
    %232 = vector.load %arg6[%c1_101, %c0_102, %c0_103] : memref<2x1x768xf32, #tpu.memory_space<vmem>>, vector<1x1x768xf32>
    %233 = vector.shape_cast %232 : vector<1x1x768xf32> to vector<1x768xf32>
    %234 = vector.broadcast %233 : vector<1x768xf32> to vector<16x768xf32>
    %235 = arith.addf %231, %234 : vector<16x768xf32>
    %236 = vector.extract_strided_slice %235 {offsets = [0, 0], sizes = [16, 128], strides = [1, 1]} : vector<16x768xf32> to vector<16x128xf32>
    %237 = vector.shape_cast %236 : vector<16x128xf32> to vector<2x8x128xf32>
    %238 = arith.truncf %237 : vector<2x8x128xf32> to vector<2x8x128xbf16>
    %239 = vector.extract_strided_slice %235 {offsets = [0, 256], sizes = [16, 128], strides = [1, 1]} : vector<16x768xf32> to vector<16x128xf32>
    %240 = vector.shape_cast %239 : vector<16x128xf32> to vector<2x8x128xf32>
    %241 = arith.truncf %240 : vector<2x8x128xf32> to vector<2x8x128xbf16>
    %242 = vector.extract_strided_slice %235 {offsets = [0, 512], sizes = [16, 128], strides = [1, 1]} : vector<16x768xf32> to vector<16x128xf32>
    %243 = vector.shape_cast %242 : vector<16x128xf32> to vector<2x8x128xf32>
    %244 = arith.truncf %243 : vector<2x8x128xf32> to vector<2x8x128xbf16>
    %cst_104 = arith.constant dense<0.000000e+00> : vector<2x8x8xf32>
    %245 = tpu.matmul %238, %241, %cst_104 {dimension_numbers = #tpu.dot_dimension_numbers<[2], [2], [1], [1], [0, 0, 0, 1, 1, 1], [0], [0]>} : vector<2x8x128xbf16>, vector<2x8x128xbf16>, vector<2x8x8xf32> -> vector<2x8x8xf32>
    %246 = vector.broadcast %14 : vector<1x1x8xf32> to vector<2x8x8xf32>
    %247 = arith.addf %245, %246 : vector<2x8x8xf32>
    %cst_105 = arith.constant dense<0xFF800000> : vector<2x8xf32>
    %248 = vector.multi_reduction <maximumf>, %247, %cst_105 [2] : vector<2x8x8xf32> to vector<2x8xf32>
    %249 = vector.shape_cast %248 : vector<2x8xf32> to vector<2x8x1xf32>
    %250 = vector.broadcast %249 : vector<2x8x1xf32> to vector<2x8x8xf32>
    %251 = arith.subf %247, %250 : vector<2x8x8xf32>
    %252 = math.exp %251 : vector<2x8x8xf32>
    %cst_106 = arith.constant dense<0.000000e+00> : vector<2x8xf32>
    %253 = vector.multi_reduction <add>, %252, %cst_106 [2] : vector<2x8x8xf32> to vector<2x8xf32>
    %254 = vector.shape_cast %253 : vector<2x8xf32> to vector<2x8x1xf32>
    %255 = tpu.reciprocal %254 {approx = true} : vector<2x8x1xf32> -> vector<2x8x1xf32>
    %256 = vector.broadcast %255 : vector<2x8x1xf32> to vector<2x8x8xf32>
    %257 = arith.mulf %252, %256 : vector<2x8x8xf32>
    %258 = arith.truncf %257 : vector<2x8x8xf32> to vector<2x8x8xbf16>
    %cst_107 = arith.constant dense<0.000000e+00> : vector<2x8x128xf32>
    %259 = tpu.matmul %258, %244, %cst_107 {dimension_numbers = #tpu.dot_dimension_numbers<[2], [1], [1], [2], [0, 0, 0, 1, 1, 2], [0], [0]>} : vector<2x8x8xbf16>, vector<2x8x128xbf16>, vector<2x8x128xf32> -> vector<2x8x128xf32>
    %260 = vector.shape_cast %259 : vector<2x8x128xf32> to vector<16x128xf32>
    %261 = arith.truncf %260 : vector<16x128xf32> to vector<16x128xbf16>
    %c2 = arith.constant 2 : index
    %c0_108 = arith.constant 0 : index
    %c0_109 = arith.constant 0 : index
    %262 = vector.load %arg7[%c2, %c0_108, %c0_109] : memref<4x128x128xbf16, #tpu.memory_space<vmem>>, vector<1x128x128xbf16>
    %263 = vector.shape_cast %262 : vector<1x128x128xbf16> to vector<128x128xbf16>
    %cst_110 = arith.constant dense<0.000000e+00> : vector<16x128xf32>
    %264 = tpu.matmul %261, %263, %cst_110 {dimension_numbers = #tpu.dot_dimension_numbers<[1], [0], [0], [1], [0, 0, 1, 1], [], []>} : vector<16x128xbf16>, vector<128x128xbf16>, vector<16x128xf32> -> vector<16x128xf32>
    %265 = vector.extract_strided_slice %235 {offsets = [0, 128], sizes = [16, 128], strides = [1, 1]} : vector<16x768xf32> to vector<16x128xf32>
    %266 = vector.shape_cast %265 : vector<16x128xf32> to vector<2x8x128xf32>
    %267 = arith.truncf %266 : vector<2x8x128xf32> to vector<2x8x128xbf16>
    %268 = vector.extract_strided_slice %235 {offsets = [0, 384], sizes = [16, 128], strides = [1, 1]} : vector<16x768xf32> to vector<16x128xf32>
    %269 = vector.shape_cast %268 : vector<16x128xf32> to vector<2x8x128xf32>
    %270 = arith.truncf %269 : vector<2x8x128xf32> to vector<2x8x128xbf16>
    %271 = vector.extract_strided_slice %235 {offsets = [0, 640], sizes = [16, 128], strides = [1, 1]} : vector<16x768xf32> to vector<16x128xf32>
    %272 = vector.shape_cast %271 : vector<16x128xf32> to vector<2x8x128xf32>
    %273 = arith.truncf %272 : vector<2x8x128xf32> to vector<2x8x128xbf16>
    %cst_111 = arith.constant dense<0.000000e+00> : vector<2x8x8xf32>
    %274 = tpu.matmul %267, %270, %cst_111 {dimension_numbers = #tpu.dot_dimension_numbers<[2], [2], [1], [1], [0, 0, 0, 1, 1, 1], [0], [0]>} : vector<2x8x128xbf16>, vector<2x8x128xbf16>, vector<2x8x8xf32> -> vector<2x8x8xf32>
    %275 = vector.broadcast %14 : vector<1x1x8xf32> to vector<2x8x8xf32>
    %276 = arith.addf %274, %275 : vector<2x8x8xf32>
    %cst_112 = arith.constant dense<0xFF800000> : vector<2x8xf32>
    %277 = vector.multi_reduction <maximumf>, %276, %cst_112 [2] : vector<2x8x8xf32> to vector<2x8xf32>
    %278 = vector.shape_cast %277 : vector<2x8xf32> to vector<2x8x1xf32>
    %279 = vector.broadcast %278 : vector<2x8x1xf32> to vector<2x8x8xf32>
    %280 = arith.subf %276, %279 : vector<2x8x8xf32>
    %281 = math.exp %280 : vector<2x8x8xf32>
    %cst_113 = arith.constant dense<0.000000e+00> : vector<2x8xf32>
    %282 = vector.multi_reduction <add>, %281, %cst_113 [2] : vector<2x8x8xf32> to vector<2x8xf32>
    %283 = vector.shape_cast %282 : vector<2x8xf32> to vector<2x8x1xf32>
    %284 = tpu.reciprocal %283 {approx = true} : vector<2x8x1xf32> -> vector<2x8x1xf32>
    %285 = vector.broadcast %284 : vector<2x8x1xf32> to vector<2x8x8xf32>
    %286 = arith.mulf %281, %285 : vector<2x8x8xf32>
    %287 = arith.truncf %286 : vector<2x8x8xf32> to vector<2x8x8xbf16>
    %cst_114 = arith.constant dense<0.000000e+00> : vector<2x8x128xf32>
    %288 = tpu.matmul %287, %273, %cst_114 {dimension_numbers = #tpu.dot_dimension_numbers<[2], [1], [1], [2], [0, 0, 0, 1, 1, 2], [0], [0]>} : vector<2x8x8xbf16>, vector<2x8x128xbf16>, vector<2x8x128xf32> -> vector<2x8x128xf32>
    %289 = vector.shape_cast %288 : vector<2x8x128xf32> to vector<16x128xf32>
    %290 = arith.truncf %289 : vector<16x128xf32> to vector<16x128xbf16>
    %c3 = arith.constant 3 : index
    %c0_115 = arith.constant 0 : index
    %c0_116 = arith.constant 0 : index
    %291 = vector.load %arg7[%c3, %c0_115, %c0_116] : memref<4x128x128xbf16, #tpu.memory_space<vmem>>, vector<1x128x128xbf16>
    %292 = vector.shape_cast %291 : vector<1x128x128xbf16> to vector<128x128xbf16>
    %cst_117 = arith.constant dense<0.000000e+00> : vector<16x128xf32>
    %293 = tpu.matmul %290, %292, %cst_117 {dimension_numbers = #tpu.dot_dimension_numbers<[1], [0], [0], [1], [0, 0, 1, 1], [], []>} : vector<16x128xbf16>, vector<128x128xbf16>, vector<16x128xf32> -> vector<16x128xf32>
    %294 = arith.addf %264, %293 : vector<16x128xf32>
    %295 = arith.addf %199, %294 : vector<16x128xf32>
    %c1_118 = arith.constant 1 : index
    %c0_119 = arith.constant 0 : index
    %c0_120 = arith.constant 0 : index
    %296 = vector.load %arg8[%c1_118, %c0_119, %c0_120] : memref<2x1x128xf32, #tpu.memory_space<vmem>>, vector<1x1x128xf32>
    %297 = vector.shape_cast %296 : vector<1x1x128xf32> to vector<1x128xf32>
    %298 = vector.broadcast %297 : vector<1x128xf32> to vector<16x128xf32>
    %299 = arith.addf %295, %298 : vector<16x128xf32>
    %c1_121 = arith.constant 1 : index
    %c0_122 = arith.constant 0 : index
    %c0_123 = arith.constant 0 : index
    %300 = vector.load %arg9[%c1_121, %c0_122, %c0_123] : memref<2x1x128xf32, #tpu.memory_space<vmem>>, vector<1x1x128xf32>
    %301 = vector.shape_cast %300 : vector<1x1x128xf32> to vector<1x128xf32>
    %c1_124 = arith.constant 1 : index
    %c0_125 = arith.constant 0 : index
    %c0_126 = arith.constant 0 : index
    %302 = vector.load %arg10[%c1_124, %c0_125, %c0_126] : memref<2x1x128xf32, #tpu.memory_space<vmem>>, vector<1x1x128xf32>
    %303 = vector.shape_cast %302 : vector<1x1x128xf32> to vector<1x128xf32>
    %cst_127 = arith.constant dense<0.000000e+00> : vector<16xf32>
    %304 = vector.multi_reduction <add>, %299, %cst_127 [1] : vector<16x128xf32> to vector<16xf32>
    %305 = vector.shape_cast %304 : vector<16xf32> to vector<16x1xf32>
    %cst_128 = arith.constant 1.562500e-02 : f32
    %306 = vector.broadcast %cst_128 : f32 to vector<16x1xf32>
    %307 = arith.mulf %305, %306 : vector<16x1xf32>
    %308 = vector.broadcast %307 : vector<16x1xf32> to vector<16x128xf32>
    %309 = arith.subf %299, %308 : vector<16x128xf32>
    %310 = arith.mulf %309, %309 : vector<16x128xf32>
    %cst_129 = arith.constant dense<0.000000e+00> : vector<16xf32>
    %311 = vector.multi_reduction <add>, %310, %cst_129 [1] : vector<16x128xf32> to vector<16xf32>
    %312 = vector.shape_cast %311 : vector<16xf32> to vector<16x1xf32>
    %cst_130 = arith.constant 6.400000e+01 : f32
    %313 = vector.broadcast %cst_130 : f32 to vector<16x1xf32>
    %314 = arith.mulf %313, %307 : vector<16x1xf32>
    %315 = arith.mulf %314, %307 : vector<16x1xf32>
    %316 = arith.subf %312, %315 : vector<16x1xf32>
    %cst_131 = arith.constant 1.562500e-02 : f32
    %317 = vector.broadcast %cst_131 : f32 to vector<16x1xf32>
    %318 = arith.mulf %316, %317 : vector<16x1xf32>
    %cst_132 = arith.constant 9.99999997E-7 : f32
    %319 = vector.broadcast %cst_132 : f32 to vector<16x1xf32>
    %320 = arith.addf %318, %319 : vector<16x1xf32>
    %321 = math.rsqrt %320 : vector<16x1xf32>
    %322 = vector.broadcast %321 : vector<16x1xf32> to vector<16x128xf32>
    %323 = arith.mulf %309, %322 : vector<16x128xf32>
    %324 = vector.broadcast %301 : vector<1x128xf32> to vector<16x128xf32>
    %325 = arith.mulf %323, %324 : vector<16x128xf32>
    %326 = vector.broadcast %303 : vector<1x128xf32> to vector<16x128xf32>
    %327 = arith.addf %325, %326 : vector<16x128xf32>
    %328 = arith.truncf %327 : vector<16x128xf32> to vector<16x128xbf16>
    %c1_133 = arith.constant 1 : index
    %c0_134 = arith.constant 0 : index
    %c0_135 = arith.constant 0 : index
    %329 = vector.load %arg11[%c1_133, %c0_134, %c0_135] : memref<2x128x256xbf16, #tpu.memory_space<vmem>>, vector<1x128x256xbf16>
    %330 = vector.shape_cast %329 : vector<1x128x256xbf16> to vector<128x256xbf16>
    %cst_136 = arith.constant dense<0.000000e+00> : vector<16x256xf32>
    %331 = tpu.matmul %328, %330, %cst_136 {dimension_numbers = #tpu.dot_dimension_numbers<[1], [0], [0], [1], [0, 0, 1, 1], [], []>} : vector<16x128xbf16>, vector<128x256xbf16>, vector<16x256xf32> -> vector<16x256xf32>
    %c1_137 = arith.constant 1 : index
    %c0_138 = arith.constant 0 : index
    %c0_139 = arith.constant 0 : index
    %332 = vector.load %arg12[%c1_137, %c0_138, %c0_139] : memref<2x1x256xf32, #tpu.memory_space<vmem>>, vector<1x1x256xf32>
    %333 = vector.shape_cast %332 : vector<1x1x256xf32> to vector<1x256xf32>
    %334 = vector.broadcast %333 : vector<1x256xf32> to vector<16x256xf32>
    %335 = arith.addf %331, %334 : vector<16x256xf32>
    %cst_140 = arith.constant 5.000000e-01 : f32
    %336 = vector.broadcast %cst_140 : f32 to vector<16x256xf32>
    %337 = arith.mulf %336, %335 : vector<16x256xf32>
    %cst_141 = arith.constant 0.707106769 : f32
    %338 = vector.broadcast %cst_141 : f32 to vector<16x256xf32>
    %339 = arith.mulf %335, %338 : vector<16x256xf32>
    %340 = math.absf %339 : vector<16x256xf32>
    %cst_142 = arith.constant 0.327591091 : f32
    %341 = vector.broadcast %cst_142 : f32 to vector<16x256xf32>
    %342 = arith.mulf %341, %340 : vector<16x256xf32>
    %cst_143 = arith.constant 1.000000e+00 : f32
    %343 = vector.broadcast %cst_143 : f32 to vector<16x256xf32>
    %344 = arith.addf %343, %342 : vector<16x256xf32>
    %cst_144 = arith.constant 1.000000e+00 : f32
    %345 = vector.broadcast %cst_144 : f32 to vector<16x256xf32>
    %346 = arith.divf %345, %344 : vector<16x256xf32>
    %cst_145 = arith.constant 1.06140542 : f32
    %347 = vector.broadcast %cst_145 : f32 to vector<16x256xf32>
    %348 = arith.mulf %347, %346 : vector<16x256xf32>
    %cst_146 = arith.constant -1.45315206 : f32
    %349 = vector.broadcast %cst_146 : f32 to vector<16x256xf32>
    %350 = arith.addf %348, %349 : vector<16x256xf32>
    %351 = arith.mulf %350, %346 : vector<16x256xf32>
    %cst_147 = arith.constant 1.42141378 : f32
    %352 = vector.broadcast %cst_147 : f32 to vector<16x256xf32>
    %353 = arith.addf %351, %352 : vector<16x256xf32>
    %354 = arith.mulf %353, %346 : vector<16x256xf32>
    %cst_148 = arith.constant -0.284496725 : f32
    %355 = vector.broadcast %cst_148 : f32 to vector<16x256xf32>
    %356 = arith.addf %354, %355 : vector<16x256xf32>
    %357 = arith.mulf %356, %346 : vector<16x256xf32>
    %cst_149 = arith.constant 0.254829586 : f32
    %358 = vector.broadcast %cst_149 : f32 to vector<16x256xf32>
    %359 = arith.addf %357, %358 : vector<16x256xf32>
    %360 = arith.mulf %359, %346 : vector<16x256xf32>
    %cst_150 = arith.constant 0.000000e+00 : f32
    %361 = vector.broadcast %cst_150 : f32 to vector<16x256xf32>
    %362 = arith.subf %361, %340 : vector<16x256xf32>
    %363 = arith.mulf %362, %340 : vector<16x256xf32>
    %364 = math.exp %363 : vector<16x256xf32>
    %365 = arith.mulf %360, %364 : vector<16x256xf32>
    %cst_151 = arith.constant 1.000000e+00 : f32
    %366 = vector.broadcast %cst_151 : f32 to vector<16x256xf32>
    %367 = arith.subf %366, %365 : vector<16x256xf32>
    %cst_152 = arith.constant 0.000000e+00 : f32
    %368 = vector.broadcast %cst_152 : f32 to vector<16x256xf32>
    %369 = arith.cmpf oge, %339, %368 : vector<16x256xf32>
    %cst_153 = arith.constant 0.000000e+00 : f32
    %370 = vector.broadcast %cst_153 : f32 to vector<16x256xf32>
    %371 = arith.subf %370, %367 : vector<16x256xf32>
    %372 = arith.select %369, %367, %371 : vector<16x256xi1>, vector<16x256xf32>
    %cst_154 = arith.constant 1.000000e+00 : f32
    %373 = vector.broadcast %cst_154 : f32 to vector<16x256xf32>
    %374 = arith.addf %373, %372 : vector<16x256xf32>
    %375 = arith.mulf %337, %374 : vector<16x256xf32>
    %376 = arith.truncf %375 : vector<16x256xf32> to vector<16x256xbf16>
    %c1_155 = arith.constant 1 : index
    %c0_156 = arith.constant 0 : index
    %c0_157 = arith.constant 0 : index
    %377 = vector.load %arg13[%c1_155, %c0_156, %c0_157] : memref<2x256x128xbf16, #tpu.memory_space<vmem>>, vector<1x256x128xbf16>
    %378 = vector.shape_cast %377 : vector<1x256x128xbf16> to vector<256x128xbf16>
    %cst_158 = arith.constant dense<0.000000e+00> : vector<16x128xf32>
    %379 = tpu.matmul %376, %378, %cst_158 {dimension_numbers = #tpu.dot_dimension_numbers<[1], [0], [0], [1], [0, 0, 1, 1], [], []>} : vector<16x256xbf16>, vector<256x128xbf16>, vector<16x128xf32> -> vector<16x128xf32>
    %c1_159 = arith.constant 1 : index
    %c0_160 = arith.constant 0 : index
    %c0_161 = arith.constant 0 : index
    %380 = vector.load %arg14[%c1_159, %c0_160, %c0_161] : memref<2x1x128xf32, #tpu.memory_space<vmem>>, vector<1x1x128xf32>
    %381 = vector.shape_cast %380 : vector<1x1x128xf32> to vector<1x128xf32>
    %382 = vector.broadcast %381 : vector<1x128xf32> to vector<16x128xf32>
    %383 = arith.addf %379, %382 : vector<16x128xf32>
    %384 = arith.addf %299, %383 : vector<16x128xf32>
    %c0_162 = arith.constant 0 : index
    %c0_163 = arith.constant 0 : index
    %385 = vector.load %arg15[%c0_162, %c0_163] : memref<1x128xf32, #tpu.memory_space<vmem>>, vector<1x128xf32>
    %c0_164 = arith.constant 0 : index
    %c0_165 = arith.constant 0 : index
    %386 = vector.load %arg16[%c0_164, %c0_165] : memref<1x128xf32, #tpu.memory_space<vmem>>, vector<1x128xf32>
    %cst_166 = arith.constant dense<0.000000e+00> : vector<16xf32>
    %387 = vector.multi_reduction <add>, %384, %cst_166 [1] : vector<16x128xf32> to vector<16xf32>
    %388 = vector.shape_cast %387 : vector<16xf32> to vector<16x1xf32>
    %cst_167 = arith.constant 1.562500e-02 : f32
    %389 = vector.broadcast %cst_167 : f32 to vector<16x1xf32>
    %390 = arith.mulf %388, %389 : vector<16x1xf32>
    %391 = vector.broadcast %390 : vector<16x1xf32> to vector<16x128xf32>
    %392 = arith.subf %384, %391 : vector<16x128xf32>
    %393 = arith.mulf %392, %392 : vector<16x128xf32>
    %cst_168 = arith.constant dense<0.000000e+00> : vector<16xf32>
    %394 = vector.multi_reduction <add>, %393, %cst_168 [1] : vector<16x128xf32> to vector<16xf32>
    %395 = vector.shape_cast %394 : vector<16xf32> to vector<16x1xf32>
    %cst_169 = arith.constant 6.400000e+01 : f32
    %396 = vector.broadcast %cst_169 : f32 to vector<16x1xf32>
    %397 = arith.mulf %396, %390 : vector<16x1xf32>
    %398 = arith.mulf %397, %390 : vector<16x1xf32>
    %399 = arith.subf %395, %398 : vector<16x1xf32>
    %cst_170 = arith.constant 1.562500e-02 : f32
    %400 = vector.broadcast %cst_170 : f32 to vector<16x1xf32>
    %401 = arith.mulf %399, %400 : vector<16x1xf32>
    %cst_171 = arith.constant 9.99999997E-7 : f32
    %402 = vector.broadcast %cst_171 : f32 to vector<16x1xf32>
    %403 = arith.addf %401, %402 : vector<16x1xf32>
    %404 = math.rsqrt %403 : vector<16x1xf32>
    %405 = vector.broadcast %404 : vector<16x1xf32> to vector<16x128xf32>
    %406 = arith.mulf %392, %405 : vector<16x128xf32>
    %407 = vector.broadcast %385 : vector<1x128xf32> to vector<16x128xf32>
    %408 = arith.mulf %406, %407 : vector<16x128xf32>
    %409 = vector.broadcast %386 : vector<1x128xf32> to vector<16x128xf32>
    %410 = arith.addf %408, %409 : vector<16x128xf32>
    %c0_172 = arith.constant 0 : index
    %c0_173 = arith.constant 0 : index
    %411 = vector.load %arg17[%c0_172, %c0_173] : memref<16x128xf32, #tpu.memory_space<vmem>>, vector<16x128xf32>
    tpu.vector_store %arg17[%c0_172, %c0_173], %410 {strides = array<i32>} : memref<16x128xf32, #tpu.memory_space<vmem>>, vector<16x128xf32>,
    return
  }
}

</mosaic_0001>

<llo_original>
// kernel: c_radio_v2_forward.1
$region0: #{c_radio_v2_forward.1}
  #allocation0 [shape = 'u32[]', space=smem, size = 0x4, offset = 0x4, fixed_abs, tag = 'smem constant byte address 0x4 - core index']
  #allocation1 [shape = 'u32[144,128]{1,0:T(1,128)}', space=vmem, size = 0x12000, scoped, tag = 'internal scratch']
  %s0 = inlined_call_operand.vmem [shape: bf16[16,768], index: 0, kind: input, shape index: {}]
  %s1 = inlined_call_operand.vmem [shape: bf16[768,128], index: 1, kind: input, shape index: {}]
  %s2 = inlined_call_operand.vmem [shape: f32[8,128], index: 2, kind: input, shape index: {}]
  %s3 = inlined_call_operand.vmem [shape: f32[2,1,128], index: 3, kind: input, shape index: {}]
  %s4 = inlined_call_operand.vmem [shape: f32[2,1,128], index: 4, kind: input, shape index: {}]
  %s5 = inlined_call_operand.vmem [shape: bf16[2,128,768], index: 5, kind: input, shape index: {}]
  %s6 = inlined_call_operand.vmem [shape: f32[2,1,768], index: 6, kind: input, shape index: {}]
  %s7 = inlined_call_operand.hbm [shape: bf16[4,128,128], index: 7, kind: input, shape index: {}]
  %s8 = inlined_call_operand.vmem [shape: f32[2,1,128], index: 8, kind: input, shape index: {}]
  %s9 = inlined_call_operand.vmem [shape: f32[2,1,128], index: 9, kind: input, shape index: {}]
  %s10 = inlined_call_operand.vmem [shape: f32[2,1,128], index: 10, kind: input, shape index: {}]
  %s11 = inlined_call_operand.hbm [shape: bf16[2,128,256], index: 11, kind: input, shape index: {}]
  %s12 = inlined_call_operand.vmem [shape: f32[2,1,256], index: 12, kind: input, shape index: {}]
  %s13 = inlined_call_operand.hbm [shape: bf16[2,256,128], index: 13, kind: input, shape index: {}]
  %s14 = inlined_call_operand.vmem [shape: f32[2,1,128], index: 14, kind: input, shape index: {}]
  %s15 = inlined_call_operand.vmem [shape: f32[1,128], index: 15, kind: input, shape index: {}]
  %s16 = inlined_call_operand.vmem [shape: f32[1,128], index: 16, kind: input, shape index: {}]
  %s17 = inlined_call_operand.vmem [shape: f32[16,128], index: 17, kind: output, shape index: {}]
  %s18 = sld [smem:[#allocation0]]
  $region90: #{c_radio_v2_forward.1} parent=0
    _
  %s20 = ssub.s32 1, %s18
  %s21 = scalar_select 0, %s20, %s18
  $region1: #{c_radio_v2_forward.1} parent=0
    #allocation2 [shape = 'u8[131072]{0}', space=vmem, size = 0x20000, scoped, tag = 'input window, operand 7, single buffered']
    #allocation3 [shape = 's32[1]{0}', space=sflag, size = 0x4, scoped, tag = 'scoped memory for c_radio_v2_forward.1']
    #allocation4 [shape = 'u8[131072]{0}', space=vmem, size = 0x20000, scoped, tag = 'input window, operand 11, single buffered']
    #allocation5 [shape = 's32[1]{0}', space=sflag, size = 0x4, scoped, tag = 'scoped memory for c_radio_v2_forward.1']
    #allocation6 [shape = 'u8[131072]{0}', space=vmem, size = 0x20000, scoped, tag = 'input window, operand 13, single buffered']
    %22 = vsyncpa [#allocation3], 0
    %23 = vsyncpa [#allocation5], 0
    // Predicated region
    $region2: #{c_radio_v2_forward.1} parent=1 // pred_check
      _
    $region3: #{c_radio_v2_forward.1} parent=1 // pred_check_branch
      %25 = sbr.rel (0) target = $region5
    $region4: #{c_radio_v2_forward.1} parent=1 // pred_region
      _
    $region5: #{c_radio_v2_forward.1} parent=1 // pred_fallthru
      _
    // Predicated region
    $region6: #{c_radio_v2_forward.1} parent=1 // pred_check
      _
    $region7: #{c_radio_v2_forward.1} parent=1 // pred_check_branch
      %27 = sbr.rel (0) target = $region9
    $region8: #{c_radio_v2_forward.1} parent=1 // pred_region
      _
    $region9: #{c_radio_v2_forward.1} parent=1 // pred_fallthru
      _
    // Predicated region
    $region10: #{c_radio_v2_forward.1} parent=1 // pred_check
      _
    $region11: #{c_radio_v2_forward.1} parent=1 // pred_check_branch
      %29 = sbr.rel (0) target = $region13
    $region12: #{c_radio_v2_forward.1} parent=1 // pred_region
      _
    $region13: #{c_radio_v2_forward.1} parent=1 // pred_fallthru
      _
    // Predicated region
    $region14: #{c_radio_v2_forward.1} parent=1 // pred_check
      _
    $region15: #{c_radio_v2_forward.1} parent=1 // pred_check_branch
      %31 = sbr.rel (0) target = $region17
    $region16: #{c_radio_v2_forward.1} parent=1 // pred_region
      _
    $region17: #{c_radio_v2_forward.1} parent=1 // pred_fallthru
      _
    // Predicated region
    $region18: #{c_radio_v2_forward.1} parent=1 // pred_check
      _
    $region19: #{c_radio_v2_forward.1} parent=1 // pred_check_branch
      %33 = sbr.rel (0) target = $region21
    $region20: #{c_radio_v2_forward.1} parent=1 // pred_region
      _
    $region21: #{c_radio_v2_forward.1} parent=1 // pred_fallthru
      _
    // Predicated region
    $region22: #{c_radio_v2_forward.1} parent=1 // pred_check
      _
    $region23: #{c_radio_v2_forward.1} parent=1 // pred_check_branch
      %35 = sbr.rel (0) target = $region25
    $region24: #{c_radio_v2_forward.1} parent=1 // pred_region
      _
    $region25: #{c_radio_v2_forward.1} parent=1 // pred_fallthru
      _
    // Predicated region
    $region26: #{c_radio_v2_forward.1} parent=1 // pred_check
      _
    $region27: #{c_radio_v2_forward.1} parent=1 // pred_check_branch
      %37 = sbr.rel (0) target = $region29
    $region28: #{c_radio_v2_forward.1} parent=1 // pred_region
      _
    $region29: #{c_radio_v2_forward.1} parent=1 // pred_fallthru
      _
    // Predicated region
    $region30: #{c_radio_v2_forward.1} parent=1 // pred_check
      _
    $region31: #{c_radio_v2_forward.1} parent=1 // pred_check_branch
      %39 = sbr.rel (0) target = $region33
    $region32: #{c_radio_v2_forward.1} parent=1 // pred_region
      %s41 = ssub.s32 4096, 4096
      %42 = vsyncadd [#allocation3], %s41
      %s43 = sshll.u32 [#allocation2], 4
      %s44 = int_to_ptr.vmem [resolvable:$true] %s43
      %49 = dma.hbm_to_vmem [thread:$0]  %s7, 4096, %s44, [#allocation3], 64, 64, 4
    $region33: #{c_radio_v2_forward.1} parent=1 // pred_fallthru
      _
    // Predicated region
    $region34: #{c_radio_v2_forward.1} parent=1 // pred_check
      _
    $region35: #{c_radio_v2_forward.1} parent=1 // pred_check_branch
      %51 = sbr.rel (0) target = $region37
    $region36: #{c_radio_v2_forward.1} parent=1 // pred_region
      _
    $region37: #{c_radio_v2_forward.1} parent=1 // pred_fallthru
      _
    // Predicated region
    $region38: #{c_radio_v2_forward.1} parent=1 // pred_check
      _
    $region39: #{c_radio_v2_forward.1} parent=1 // pred_check_branch
      %53 = sbr.rel (0) target = $region41
    $region40: #{c_radio_v2_forward.1} parent=1 // pred_region
      _
    $region41: #{c_radio_v2_forward.1} parent=1 // pred_fallthru
      _
    // Predicated region
    $region42: #{c_radio_v2_forward.1} parent=1 // pred_check
      _
    $region43: #{c_radio_v2_forward.1} parent=1 // pred_check_branch
      %55 = sbr.rel (0) target = $region45
    $region44: #{c_radio_v2_forward.1} parent=1 // pred_region
      _
    $region45: #{c_radio_v2_forward.1} parent=1 // pred_fallthru
      _
    // Predicated region
    $region46: #{c_radio_v2_forward.1} parent=1 // pred_check
      _
    $region47: #{c_radio_v2_forward.1} parent=1 // pred_check_branch
      %57 = sbr.rel (0) target = $region49
    $region48: #{c_radio_v2_forward.1} parent=1 // pred_region
      %s59 = ssub.s32 4096, 4096
      %60 = vsyncadd [#allocation5], %s59
      %s61 = sshll.u32 [#allocation4], 4
      %s62 = int_to_ptr.vmem [resolvable:$true] %s61
      %67 = dma.hbm_to_vmem [thread:$0]  %s11, 4096, %s62, [#allocation5], 128, 128, 8
    $region49: #{c_radio_v2_forward.1} parent=1 // pred_fallthru
      _
    // Predicated region
    $region50: #{c_radio_v2_forward.1} parent=1 // pred_check
      _
    $region51: #{c_radio_v2_forward.1} parent=1 // pred_check_branch
      %69 = sbr.rel (0) target = $region53
    $region52: #{c_radio_v2_forward.1} parent=1 // pred_region
      _
    $region53: #{c_radio_v2_forward.1} parent=1 // pred_fallthru
      _
    // Predicated region
    $region54: #{c_radio_v2_forward.1} parent=1 // pred_check
      _
    $region55: #{c_radio_v2_forward.1} parent=1 // pred_check_branch
      %71 = sbr.rel (0) target = $region57
    $region56: #{c_radio_v2_forward.1} parent=1 // pred_region
      %s73 = ssub.s32 4096, 4096
      %74 = vsyncadd [#allocation5], %s73
      %s75 = sshll.u32 [#allocation6], 4
      %s76 = int_to_ptr.vmem [resolvable:$true] %s75
      %81 = dma.hbm_to_vmem [thread:$0]  %s13, 4096, %s76, [#allocation5], 64, 64, 4
    $region57: #{c_radio_v2_forward.1} parent=1 // pred_fallthru
      _
    // Predicated region
    $region58: #{c_radio_v2_forward.1} parent=1 // pred_check
      _
    $region59: #{c_radio_v2_forward.1} parent=1 // pred_check_branch
      %83 = sbr.rel (0) target = $region61
    $region60: #{c_radio_v2_forward.1} parent=1 // pred_region
      _
    $region61: #{c_radio_v2_forward.1} parent=1 // pred_fallthru
      _
    // Predicated region
    $region62: #{c_radio_v2_forward.1} parent=1 // pred_check
      _
    $region63: #{c_radio_v2_forward.1} parent=1 // pred_check_branch
      %85 = sbr.rel (0) target = $region65
    $region64: #{c_radio_v2_forward.1} parent=1 // pred_region
      _
    $region65: #{c_radio_v2_forward.1} parent=1 // pred_fallthru
      _
    // Predicated region
    $region66: #{c_radio_v2_forward.1} parent=1 // pred_check
      _
    $region67: #{c_radio_v2_forward.1} parent=1 // pred_check_branch
      %87 = sbr.rel (0) target = $region69
    $region68: #{c_radio_v2_forward.1} parent=1 // pred_region
      _
    $region69: #{c_radio_v2_forward.1} parent=1 // pred_fallthru
      _
    // Predicated region
    $region70: #{c_radio_v2_forward.1} parent=1 // pred_check
      _
    $region71: #{c_radio_v2_forward.1} parent=1 // pred_check_branch
      %89 = sbr.rel (0) target = $region73
    $region72: #{c_radio_v2_forward.1} parent=1 // pred_region
      %90 = dma.done [#allocation3], 4096
    $region73: #{c_radio_v2_forward.1} parent=1 // pred_fallthru
      _
    // Predicated region
    $region74: #{c_radio_v2_forward.1} parent=1 // pred_check
      _
    $region75: #{c_radio_v2_forward.1} parent=1 // pred_check_branch
      %92 = sbr.rel (0) target = $region77
    $region76: #{c_radio_v2_forward.1} parent=1 // pred_region
      %93 = dma.done [#allocation5], 4096
    $region77: #{c_radio_v2_forward.1} parent=1 // pred_fallthru
      _
    // Predicated region
    $region78: #{c_radio_v2_forward.1} parent=1 // pred_check
      _
    $region79: #{c_radio_v2_forward.1} parent=1 // pred_check_branch
      %95 = sbr.rel (0) target = $region81
    $region80: #{c_radio_v2_forward.1} parent=1 // pred_region
      %96 = dma.done [#allocation5], 4096
    $region81: #{c_radio_v2_forward.1} parent=1 // pred_fallthru
      _
    %v98 = vld [vmem:[%s0] sm:$0xff]
    %v99 = vld [vmem:[%s0 + $0x8] sm:$0xff]
    %v100 = vld [vmem:[%s0 + $0x10] sm:$0xff]
    %v101 = vld [vmem:[%s0 + $0x18] sm:$0xff]
    %v102 = vld [vmem:[%s0 + $0x20] sm:$0xff]
    %v103 = vld [vmem:[%s0 + $0x28] sm:$0xff]
    %v104 = vld [vmem:[%s1] sm:$0xf]
    %v105 = vld [vmem:[%s1 + $0x4] sm:$0xf]
    %v106 = vld [vmem:[%s1 + $0x8] sm:$0xf]
    %v107 = vld [vmem:[%s1 + $0xc] sm:$0xf]
    %v108 = vld [vmem:[%s1 + $0x10] sm:$0xf]
    %v109 = vld [vmem:[%s1 + $0x14] sm:$0xf]
    %v110 = vld [vmem:[%s1 + $0x18] sm:$0xf]
    %v111 = vld [vmem:[%s1 + $0x1c] sm:$0xf]
    %v112 = vld [vmem:[%s1 + $0x20] sm:$0xf]
    %v113 = vld [vmem:[%s1 + $0x24] sm:$0xf]
    %v114 = vld [vmem:[%s1 + $0x28] sm:$0xf]
    %v115 = vld [vmem:[%s1 + $0x2c] sm:$0xf]
    %v116 = vld [vmem:[%s1 + $0x30] sm:$0xf]
    %v117 = vld [vmem:[%s1 + $0x34] sm:$0xf]
    %v118 = vld [vmem:[%s1 + $0x38] sm:$0xf]
    %v119 = vld [vmem:[%s1 + $0x3c] sm:$0xf]
    %v120 = vld [vmem:[%s1 + $0x40] sm:$0xf]
    %v121 = vld [vmem:[%s1 + $0x44] sm:$0xf]
    %v122 = vld [vmem:[%s1 + $0x48] sm:$0xf]
    %v123 = vld [vmem:[%s1 + $0x4c] sm:$0xf]
    %v124 = vld [vmem:[%s1 + $0x50] sm:$0xf]
    %v125 = vld [vmem:[%s1 + $0x54] sm:$0xf]
    %v126 = vld [vmem:[%s1 + $0x58] sm:$0xf]
    %v127 = vld [vmem:[%s1 + $0x5c] sm:$0xf]
    %v128 = vld [vmem:[%s1 + $0x60] sm:$0xf]
    %v129 = vld [vmem:[%s1 + $0x64] sm:$0xf]
    %v130 = vld [vmem:[%s1 + $0x68] sm:$0xf]
    %v131 = vld [vmem:[%s1 + $0x6c] sm:$0xf]
    %v132 = vld [vmem:[%s1 + $0x70] sm:$0xf]
    %v133 = vld [vmem:[%s1 + $0x74] sm:$0xf]
    %v134 = vld [vmem:[%s1 + $0x78] sm:$0xf]
    %v135 = vld [vmem:[%s1 + $0x7c] sm:$0xf]
    %v136 = vld [vmem:[%s1 + $0x80] sm:$0xf]
    %v137 = vld [vmem:[%s1 + $0x84] sm:$0xf]
    %v138 = vld [vmem:[%s1 + $0x88] sm:$0xf]
    %v139 = vld [vmem:[%s1 + $0x8c] sm:$0xf]
    %v140 = vld [vmem:[%s1 + $0x90] sm:$0xf]
    %v141 = vld [vmem:[%s1 + $0x94] sm:$0xf]
    %v142 = vld [vmem:[%s1 + $0x98] sm:$0xf]
    %v143 = vld [vmem:[%s1 + $0x9c] sm:$0xf]
    %v144 = vld [vmem:[%s1 + $0xa0] sm:$0xf]
    %v145 = vld [vmem:[%s1 + $0xa4] sm:$0xf]
    %v146 = vld [vmem:[%s1 + $0xa8] sm:$0xf]
    %v147 = vld [vmem:[%s1 + $0xac] sm:$0xf]
    %v148 = vld [vmem:[%s1 + $0xb0] sm:$0xf]
    %v149 = vld [vmem:[%s1 + $0xb4] sm:$0xf]
    %v150 = vld [vmem:[%s1 + $0xb8] sm:$0xf]
    %v151 = vld [vmem:[%s1 + $0xbc] sm:$0xf]
    %v152 = vld [vmem:[%s1 + $0xc0] sm:$0xf]
    %v153 = vld [vmem:[%s1 + $0xc4] sm:$0xf]
    %v154 = vld [vmem:[%s1 + $0xc8] sm:$0xf]
    %v155 = vld [vmem:[%s1 + $0xcc] sm:$0xf]
    %v156 = vld [vmem:[%s1 + $0xd0] sm:$0xf]
    %v157 = vld [vmem:[%s1 + $0xd4] sm:$0xf]
    %v158 = vld [vmem:[%s1 + $0xd8] sm:$0xf]
    %v159 = vld [vmem:[%s1 + $0xdc] sm:$0xf]
    %v160 = vld [vmem:[%s1 + $0xe0] sm:$0xf]
    %v161 = vld [vmem:[%s1 + $0xe4] sm:$0xf]
    %v162 = vld [vmem:[%s1 + $0xe8] sm:$0xf]
    %v163 = vld [vmem:[%s1 + $0xec] sm:$0xf]
    %v164 = vld [vmem:[%s1 + $0xf0] sm:$0xf]
    %v165 = vld [vmem:[%s1 + $0xf4] sm:$0xf]
    %v166 = vld [vmem:[%s1 + $0xf8] sm:$0xf]
    %v167 = vld [vmem:[%s1 + $0xfc] sm:$0xf]
    %v168 = vld [vmem:[%s1 + $0x100] sm:$0xf]
    %v169 = vld [vmem:[%s1 + $0x104] sm:$0xf]
    %v170 = vld [vmem:[%s1 + $0x108] sm:$0xf]
    %v171 = vld [vmem:[%s1 + $0x10c] sm:$0xf]
    %v172 = vld [vmem:[%s1 + $0x110] sm:$0xf]
    %v173 = vld [vmem:[%s1 + $0x114] sm:$0xf]
    %v174 = vld [vmem:[%s1 + $0x118] sm:$0xf]
    %v175 = vld [vmem:[%s1 + $0x11c] sm:$0xf]
    %v176 = vld [vmem:[%s1 + $0x120] sm:$0xf]
    %v177 = vld [vmem:[%s1 + $0x124] sm:$0xf]
    %v178 = vld [vmem:[%s1 + $0x128] sm:$0xf]
    %v179 = vld [vmem:[%s1 + $0x12c] sm:$0xf]
    %v180 = vld [vmem:[%s1 + $0x130] sm:$0xf]
    %v181 = vld [vmem:[%s1 + $0x134] sm:$0xf]
    %v182 = vld [vmem:[%s1 + $0x138] sm:$0xf]
    %v183 = vld [vmem:[%s1 + $0x13c] sm:$0xf]
    %v184 = vld [vmem:[%s1 + $0x140] sm:$0xf]
    %v185 = vld [vmem:[%s1 + $0x144] sm:$0xf]
    %v186 = vld [vmem:[%s1 + $0x148] sm:$0xf]
    %v187 = vld [vmem:[%s1 + $0x14c] sm:$0xf]
    %v188 = vld [vmem:[%s1 + $0x150] sm:$0xf]
    %v189 = vld [vmem:[%s1 + $0x154] sm:$0xf]
    %v190 = vld [vmem:[%s1 + $0x158] sm:$0xf]
    %v191 = vld [vmem:[%s1 + $0x15c] sm:$0xf]
    %v192 = vld [vmem:[%s1 + $0x160] sm:$0xf]
    %v193 = vld [vmem:[%s1 + $0x164] sm:$0xf]
    %v194 = vld [vmem:[%s1 + $0x168] sm:$0xf]
    %v195 = vld [vmem:[%s1 + $0x16c] sm:$0xf]
    %v196 = vld [vmem:[%s1 + $0x170] sm:$0xf]
    %v197 = vld [vmem:[%s1 + $0x174] sm:$0xf]
    %v198 = vld [vmem:[%s1 + $0x178] sm:$0xf]
    %v199 = vld [vmem:[%s1 + $0x17c] sm:$0xf]
    %v206 = vunpack.c.l.b16 %v98
    %v207 = vunpack.c.h.b16 %v98
    %v208 = vunpack.c.l.b16 %v99
    %v209 = vunpack.c.h.b16 %v99
    %v210 = vunpack.c.l.b16 %v100
    %v211 = vunpack.c.h.b16 %v100
    %v212 = vunpack.c.l.b16 %v101
    %v213 = vunpack.c.h.b16 %v101
    %v214 = vunpack.c.l.b16 %v102
    %v215 = vunpack.c.h.b16 %v102
    %v216 = vunpack.c.l.b16 %v103
    %v217 = vunpack.c.h.b16 %v103
    %v218 = vpack.c.b16 %v212, %v206
    %v219 = vpack.c.b16 %v213, %v207
    %v220 = vpack.c.b16 %v214, %v208
    %v221 = vpack.c.b16 %v215, %v209
    %v222 = vpack.c.b16 %v216, %v210
    %v223 = vpack.c.b16 %v217, %v211
    %v326 = vunpack.c.l.b16 %v104
    %v327 = vunpack.c.l.b16 %v105
    %v328 = vunpack.c.l.b16 %v106
    %v329 = vunpack.c.l.b16 %v107
    %v330 = vunpack.c.l.b16 %v108
    %v331 = vunpack.c.l.b16 %v109
    %v332 = vunpack.c.l.b16 %v110
    %v333 = vunpack.c.l.b16 %v111
    %v334 = vunpack.c.l.b16 %v112
    %v335 = vunpack.c.l.b16 %v113
    %v336 = vunpack.c.l.b16 %v114
    %v337 = vunpack.c.l.b16 %v115
    %v338 = vunpack.c.l.b16 %v116
    %v339 = vunpack.c.l.b16 %v117
    %v340 = vunpack.c.l.b16 %v118
    %v341 = vunpack.c.l.b16 %v119
    %v342 = vunpack.c.l.b16 %v120
    %v343 = vunpack.c.l.b16 %v121
    %v344 = vunpack.c.l.b16 %v122
    %v345 = vunpack.c.l.b16 %v123
    %v346 = vunpack.c.l.b16 %v124
    %v347 = vunpack.c.l.b16 %v125
    %v348 = vunpack.c.l.b16 %v126
    %v349 = vunpack.c.l.b16 %v127
    %v350 = vunpack.c.l.b16 %v128
    %v351 = vunpack.c.l.b16 %v129
    %v352 = vunpack.c.l.b16 %v130
    %v353 = vunpack.c.l.b16 %v131
    %v354 = vunpack.c.l.b16 %v132
    %v355 = vunpack.c.l.b16 %v133
    %v356 = vunpack.c.l.b16 %v134
    %v357 = vunpack.c.l.b16 %v135
    %v358 = vunpack.c.l.b16 %v136
    %v359 = vunpack.c.l.b16 %v137
    %v360 = vunpack.c.l.b16 %v138
    %v361 = vunpack.c.l.b16 %v139
    %v362 = vunpack.c.l.b16 %v140
    %v363 = vunpack.c.l.b16 %v141
    %v364 = vunpack.c.l.b16 %v142
    %v365 = vunpack.c.l.b16 %v143
    %v366 = vunpack.c.l.b16 %v144
    %v367 = vunpack.c.l.b16 %v145
    %v368 = vunpack.c.l.b16 %v146
    %v369 = vunpack.c.l.b16 %v147
    %v370 = vunpack.c.l.b16 %v148
    %v371 = vunpack.c.l.b16 %v149
    %v372 = vunpack.c.l.b16 %v150
    %v373 = vunpack.c.l.b16 %v151
    %v374 = vunpack.c.l.b16 %v152
    %v375 = vunpack.c.l.b16 %v153
    %v376 = vunpack.c.l.b16 %v154
    %v377 = vunpack.c.l.b16 %v155
    %v378 = vunpack.c.l.b16 %v156
    %v379 = vunpack.c.l.b16 %v157
    %v380 = vunpack.c.l.b16 %v158
    %v381 = vunpack.c.l.b16 %v159
    %v382 = vunpack.c.l.b16 %v160
    %v383 = vunpack.c.l.b16 %v161
    %v384 = vunpack.c.l.b16 %v162
    %v385 = vunpack.c.l.b16 %v163
    %v386 = vunpack.c.l.b16 %v164
    %v387 = vunpack.c.l.b16 %v165
    %v388 = vunpack.c.l.b16 %v166
    %v389 = vunpack.c.l.b16 %v167
    %v390 = vunpack.c.l.b16 %v168
    %v391 = vunpack.c.l.b16 %v169
    %v392 = vunpack.c.l.b16 %v170
    %v393 = vunpack.c.l.b16 %v171
    %v394 = vunpack.c.l.b16 %v172
    %v395 = vunpack.c.l.b16 %v173
    %v396 = vunpack.c.l.b16 %v174
    %v397 = vunpack.c.l.b16 %v175
    %v398 = vunpack.c.l.b16 %v176
    %v399 = vunpack.c.l.b16 %v177
    %v400 = vunpack.c.l.b16 %v178
    %v401 = vunpack.c.l.b16 %v179
    %v402 = vunpack.c.l.b16 %v180
    %v403 = vunpack.c.l.b16 %v181
    %v404 = vunpack.c.l.b16 %v182
    %v405 = vunpack.c.l.b16 %v183
    %v406 = vunpack.c.l.b16 %v184
    %v407 = vunpack.c.l.b16 %v185
    %v408 = vunpack.c.l.b16 %v186
    %v409 = vunpack.c.l.b16 %v187
    %v410 = vunpack.c.l.b16 %v188
    %v411 = vunpack.c.l.b16 %v189
    %v412 = vunpack.c.l.b16 %v190
    %v413 = vunpack.c.l.b16 %v191
    %v414 = vunpack.c.l.b16 %v192
    %v415 = vunpack.c.l.b16 %v193
    %v416 = vunpack.c.l.b16 %v194
    %v417 = vunpack.c.l.b16 %v195
    %v418 = vunpack.c.l.b16 %v196
    %v419 = vunpack.c.l.b16 %v197
    %v420 = vunpack.c.l.b16 %v198
    %v421 = vunpack.c.l.b16 %v199
    %v422 = vpack.c.b16 %v327, %v326
    %v423 = vpack.c.b16 %v329, %v328
    %v424 = vpack.c.b16 %v331, %v330
    %v425 = vpack.c.b16 %v333, %v332
    %v426 = vpack.c.b16 %v335, %v334
    %v427 = vpack.c.b16 %v337, %v336
    %v428 = vpack.c.b16 %v339, %v338
    %v429 = vpack.c.b16 %v341, %v340
    %v430 = vpack.c.b16 %v343, %v342
    %v431 = vpack.c.b16 %v345, %v344
    %v432 = vpack.c.b16 %v347, %v346
    %v433 = vpack.c.b16 %v349, %v348
    %v434 = vpack.c.b16 %v351, %v350
    %v435 = vpack.c.b16 %v353, %v352
    %v436 = vpack.c.b16 %v355, %v354
    %v437 = vpack.c.b16 %v357, %v356
    %v438 = vpack.c.b16 %v359, %v358
    %v439 = vpack.c.b16 %v361, %v360
    %v440 = vpack.c.b16 %v363, %v362
    %v441 = vpack.c.b16 %v365, %v364
    %v442 = vpack.c.b16 %v367, %v366
    %v443 = vpack.c.b16 %v369, %v368
    %v444 = vpack.c.b16 %v371, %v370
    %v445 = vpack.c.b16 %v373, %v372
    %v446 = vpack.c.b16 %v375, %v374
    %v447 = vpack.c.b16 %v377, %v376
    %v448 = vpack.c.b16 %v379, %v378
    %v449 = vpack.c.b16 %v381, %v380
    %v450 = vpack.c.b16 %v383, %v382
    %v451 = vpack.c.b16 %v385, %v384
    %v452 = vpack.c.b16 %v387, %v386
    %v453 = vpack.c.b16 %v389, %v388
    %v454 = vpack.c.b16 %v391, %v390
    %v455 = vpack.c.b16 %v393, %v392
    %v456 = vpack.c.b16 %v395, %v394
    %v457 = vpack.c.b16 %v397, %v396
    %v458 = vpack.c.b16 %v399, %v398
    %v459 = vpack.c.b16 %v401, %v400
    %v460 = vpack.c.b16 %v403, %v402
    %v461 = vpack.c.b16 %v405, %v404
    %v462 = vpack.c.b16 %v407, %v406
    %v463 = vpack.c.b16 %v409, %v408
    %v464 = vpack.c.b16 %v411, %v410
    %v465 = vpack.c.b16 %v413, %v412
    %v466 = vpack.c.b16 %v415, %v414
    %v467 = vpack.c.b16 %v417, %v416
    %v468 = vpack.c.b16 %v419, %v418
    %v469 = vpack.c.b16 %v421, %v420
    %518 = vmatprep.subr.bf16.mxu0 0
    %519 = vmatpush1.bf16.msra.mxu0 %v422
    %520 = vmatprep.subr.bf16.mxu0 0
    %521 = vmatpush1.bf16.msra.mxu0 %v423
    %522 = vmatprep.subr.bf16.mxu0 0
    %523 = vmatpush1.bf16.msra.mxu0 %v424
    %524 = vmatprep.subr.bf16.mxu0 0
    %525 = vmatpush1.bf16.msra.mxu0 %v425
    %526 = vmatprep.subr.bf16.mxu0 0
    %527 = vmatpush1.bf16.msra.mxu0 %v426
    %528 = vmatprep.subr.bf16.mxu0 0
    %529 = vmatpush1.bf16.msra.mxu0 %v427
    %530 = vmatprep.subr.bf16.mxu0 0
    %531 = vmatpush1.bf16.msra.mxu0 %v428
    %532 = vmatprep.subr.bf16.mxu0 0
    %533 = vmatpush1.bf16.msra.mxu0 %v429
    %534 = vmatprep.subr.bf16.mxu0 0
    %535 = vmatpush1.bf16.msra.mxu0 %v430
    %536 = vmatprep.subr.bf16.mxu0 0
    %537 = vmatpush1.bf16.msra.mxu0 %v431
    %538 = vmatprep.subr.bf16.mxu0 0
    %539 = vmatpush1.bf16.msra.mxu0 %v432
    %540 = vmatprep.subr.bf16.mxu0 0
    %541 = vmatpush1.bf16.msra.mxu0 %v433
    %542 = vmatprep.subr.bf16.mxu0 0
    %543 = vmatpush1.bf16.msra.mxu0 %v434
    %544 = vmatprep.subr.bf16.mxu0 0
    %545 = vmatpush1.bf16.msra.mxu0 %v435
    %546 = vmatprep.subr.bf16.mxu0 0
    %547 = vmatpush1.bf16.msra.mxu0 %v436
    %548 = vmatprep.subr.bf16.mxu0 0
    %549 = vmatpush1.bf16.msra.mxu0 %v437
    %550 = vmatprep.mubr.bf16.mxu0 %v219
    %551 = vmatmul.mubr.bf16.gmra.mrb[0].mxu0 %v218
    %v552 = vpop.f32.mrb[0].mxu0
    %v553 = vadd.f32 0.0, %v552
    %v554 = vpop.f32.mrb[0].mxu0
    %v555 = vpop.f32.mrb[0].mxu0
    %v556 = vadd.f32 0.0, %v555
    %v557 = vpop.f32.mrb[0].mxu0
    %558 = vdwg.mxu0
    %559 = vmatprep.subr.bf16.mxu0 0
    %560 = vmatpush1.bf16.msra.mxu0 %v438
    %561 = vmatprep.subr.bf16.mxu0 0
    %562 = vmatpush1.bf16.msra.mxu0 %v439
    %563 = vmatprep.subr.bf16.mxu0 0
    %564 = vmatpush1.bf16.msra.mxu0 %v440
    %565 = vmatprep.subr.bf16.mxu0 0
    %566 = vmatpush1.bf16.msra.mxu0 %v441
    %567 = vmatprep.subr.bf16.mxu0 0
    %568 = vmatpush1.bf16.msra.mxu0 %v442
    %569 = vmatprep.subr.bf16.mxu0 0
    %570 = vmatpush1.bf16.msra.mxu0 %v443
    %571 = vmatprep.subr.bf16.mxu0 0
    %572 = vmatpush1.bf16.msra.mxu0 %v444
    %573 = vmatprep.subr.bf16.mxu0 0
    %574 = vmatpush1.bf16.msra.mxu0 %v445
    %575 = vmatprep.subr.bf16.mxu0 0
    %576 = vmatpush1.bf16.msra.mxu0 %v446
    %577 = vmatprep.subr.bf16.mxu0 0
    %578 = vmatpush1.bf16.msra.mxu0 %v447
    %579 = vmatprep.subr.bf16.mxu0 0
    %580 = vmatpush1.bf16.msra.mxu0 %v448
    %581 = vmatprep.subr.bf16.mxu0 0
    %582 = vmatpush1.bf16.msra.mxu0 %v449
    %583 = vmatprep.subr.bf16.mxu0 0
    %584 = vmatpush1.bf16.msra.mxu0 %v450
    %585 = vmatprep.subr.bf16.mxu0 0
    %586 = vmatpush1.bf16.msra.mxu0 %v451
    %587 = vmatprep.subr.bf16.mxu0 0
    %588 = vmatpush1.bf16.msra.mxu0 %v452
    %589 = vmatprep.subr.bf16.mxu0 0
    %590 = vmatpush1.bf16.msra.mxu0 %v453
    %591 = vmatprep.mubr.bf16.mxu0 %v221
    %592 = vmatmul.mubr.bf16.gmra.mrb[0].mxu0 %v220
    %v593 = vpop.f32.mrb[0].mxu0
    %v594 = vadd.f32 %v553, %v593
    %v595 = vpop.f32.mrb[0].mxu0
    %v596 = vpop.f32.mrb[0].mxu0
    %v597 = vadd.f32 %v556, %v596
    %v598 = vpop.f32.mrb[0].mxu0
    %599 = vdwg.mxu0
    %600 = vmatprep.subr.bf16.mxu0 0
    %601 = vmatpush1.bf16.msra.mxu0 %v454
    %602 = vmatprep.subr.bf16.mxu0 0
    %603 = vmatpush1.bf16.msra.mxu0 %v455
    %604 = vmatprep.subr.bf16.mxu0 0
    %605 = vmatpush1.bf16.msra.mxu0 %v456
    %606 = vmatprep.subr.bf16.mxu0 0
    %607 = vmatpush1.bf16.msra.mxu0 %v457
    %608 = vmatprep.subr.bf16.mxu0 0
    %609 = vmatpush1.bf16.msra.mxu0 %v458
    %610 = vmatprep.subr.bf16.mxu0 0
    %611 = vmatpush1.bf16.msra.mxu0 %v459
    %612 = vmatprep.subr.bf16.mxu0 0
    %613 = vmatpush1.bf16.msra.mxu0 %v460
    %614 = vmatprep.subr.bf16.mxu0 0
    %615 = vmatpush1.bf16.msra.mxu0 %v461
    %616 = vmatprep.subr.bf16.mxu0 0
    %617 = vmatpush1.bf16.msra.mxu0 %v462
    %618 = vmatprep.subr.bf16.mxu0 0
    %619 = vmatpush1.bf16.msra.mxu0 %v463
    %620 = vmatprep.subr.bf16.mxu0 0
    %621 = vmatpush1.bf16.msra.mxu0 %v464
    %622 = vmatprep.subr.bf16.mxu0 0
    %623 = vmatpush1.bf16.msra.mxu0 %v465
    %624 = vmatprep.subr.bf16.mxu0 0
    %625 = vmatpush1.bf16.msra.mxu0 %v466
    %626 = vmatprep.subr.bf16.mxu0 0
    %627 = vmatpush1.bf16.msra.mxu0 %v467
    %628 = vmatprep.subr.bf16.mxu0 0
    %629 = vmatpush1.bf16.msra.mxu0 %v468
    %630 = vmatprep.subr.bf16.mxu0 0
    %631 = vmatpush1.bf16.msra.mxu0 %v469
    %632 = vmatprep.mubr.bf16.mxu0 %v223
    %633 = vmatmul.mubr.bf16.gmra.mrb[0].mxu0 %v222
    %v634 = vpop.f32.mrb[0].mxu0
    %v635 = vadd.f32 %v594, %v634
    %v636 = vpop.f32.mrb[0].mxu0
    %v637 = vpop.f32.mrb[0].mxu0
    %v638 = vadd.f32 %v597, %v637
    %v639 = vpop.f32.mrb[0].mxu0
    %640 = vdwg.mxu0
    %v641 = vld [vmem:[%s2] sm:$0xff]
    %v642 = vadd.f32 %v635, %v641
    %v643 = vadd.f32 %v638, %v641
    %v644 = vlaneseq
    %v645 = vand.u32 %v644, 127
    %vm646 = vcmp.lt.s32.totalorder %v645, 5
    %v647 = vsel %vm646, 0.0, -1e+30
    %v648 = vld [vmem:[%s3] sm:$0x1]
    %v649 = vld [vmem:[%s4] sm:$0x1]
    %650 = vadd.xlane.f32.xlu0 %v642
    %v651 = vpop.xlane.xlu0 %650
    %652 = vadd.xlane.f32.xlu0 %v643
    %v653 = vpop.xlane.xlu0 %652
    %v654 = vmul.f32 %v651, 0.015625
    %v655 = vmul.f32 %v653, 0.015625
    %v656 = vsub.f32 %v642, %v654
    %v657 = vsub.f32 %v643, %v655
    %v658 = vmul.f32 %v656, %v656
    %v659 = vmul.f32 %v657, %v657
    %660 = vadd.xlane.f32.xlu0 %v658
    %v661 = vpop.xlane.xlu0 %660
    %662 = vadd.xlane.f32.xlu0 %v659
    %v663 = vpop.xlane.xlu0 %662
    %v664 = vmul.f32 %v654, 64.0
    %v665 = vmul.f32 %v655, 64.0
    %v666 = vmul.f32 %v664, %v654
    %v667 = vmul.f32 %v665, %v655
    %v668 = vsub.f32 %v661, %v666
    %v669 = vsub.f32 %v663, %v667
    %v670 = vmul.f32 %v668, 0.015625
    %v671 = vmul.f32 %v669, 0.015625
    %v672 = vadd.f32 %v670, 1e-06
    %v673 = vadd.f32 %v671, 1e-06
    %v674 = vrsqrt.pop %v672
    %v675 = vrsqrt.pop %v673
    %v676 = vmul.f32 %v656, %v674
    %v677 = vmul.f32 %v657, %v675
    %v679 = vlaneseq
    %v680 = vshrl.u32 %v679, 7
    %v681 = vsub.s32 0, %v680
    %v682 = vrot.slane %v648, %v681
    %v684 = vmul.f32 %v676, %v682
    %v685 = vmul.f32 %v677, %v682
    %v687 = vlaneseq
    %v688 = vshrl.u32 %v687, 7
    %v689 = vsub.s32 0, %v688
    %v690 = vrot.slane %v649, %v689
    %v692 = vadd.f32 %v684, %v690
    %v693 = vadd.f32 %v685, %v690
    %v694 = vpack.c.bf16 %v693, %v692
    %v695 = vld [vmem:[%s5] sm:$0xff]
    %v696 = vld [vmem:[%s5 + $0x8] sm:$0xff]
    %v697 = vld [vmem:[%s5 + $0x10] sm:$0xff]
    %v698 = vld [vmem:[%s5 + $0x18] sm:$0xff]
    %v699 = vld [vmem:[%s5 + $0x20] sm:$0xff]
    %v700 = vld [vmem:[%s5 + $0x28] sm:$0xff]
    %v701 = vld [vmem:[%s5 + $0x30] sm:$0xff]
    %v702 = vld [vmem:[%s5 + $0x38] sm:$0xff]
    %v703 = vld [vmem:[%s5 + $0x40] sm:$0xff]
    %v704 = vld [vmem:[%s5 + $0x48] sm:$0xff]
    %v705 = vld [vmem:[%s5 + $0x50] sm:$0xff]
    %v706 = vld [vmem:[%s5 + $0x58] sm:$0xff]
    %v707 = vld [vmem:[%s5 + $0x60] sm:$0xff]
    %v708 = vld [vmem:[%s5 + $0x68] sm:$0xff]
    %v709 = vld [vmem:[%s5 + $0x70] sm:$0xff]
    %v710 = vld [vmem:[%s5 + $0x78] sm:$0xff]
    %v711 = vld [vmem:[%s5 + $0x80] sm:$0xff]
    %v712 = vld [vmem:[%s5 + $0x88] sm:$0xff]
    %v713 = vld [vmem:[%s5 + $0x90] sm:$0xff]
    %v714 = vld [vmem:[%s5 + $0x98] sm:$0xff]
    %v715 = vld [vmem:[%s5 + $0xa0] sm:$0xff]
    %v716 = vld [vmem:[%s5 + $0xa8] sm:$0xff]
    %v717 = vld [vmem:[%s5 + $0xb0] sm:$0xff]
    %v718 = vld [vmem:[%s5 + $0xb8] sm:$0xff]
    %v719 = vld [vmem:[%s5 + $0xc0] sm:$0xff]
    %v720 = vld [vmem:[%s5 + $0xc8] sm:$0xff]
    %v721 = vld [vmem:[%s5 + $0xd0] sm:$0xff]
    %v722 = vld [vmem:[%s5 + $0xd8] sm:$0xff]
    %v723 = vld [vmem:[%s5 + $0xe0] sm:$0xff]
    %v724 = vld [vmem:[%s5 + $0xe8] sm:$0xff]
    %v725 = vld [vmem:[%s5 + $0xf0] sm:$0xff]
    %v726 = vld [vmem:[%s5 + $0xf8] sm:$0xff]
    %v727 = vld [vmem:[%s5 + $0x100] sm:$0xff]
    %v728 = vld [vmem:[%s5 + $0x108] sm:$0xff]
    %v729 = vld [vmem:[%s5 + $0x110] sm:$0xff]
    %v730 = vld [vmem:[%s5 + $0x118] sm:$0xff]
    %v731 = vld [vmem:[%s5 + $0x120] sm:$0xff]
    %v732 = vld [vmem:[%s5 + $0x128] sm:$0xff]
    %v733 = vld [vmem:[%s5 + $0x130] sm:$0xff]
    %v734 = vld [vmem:[%s5 + $0x138] sm:$0xff]
    %v735 = vld [vmem:[%s5 + $0x140] sm:$0xff]
    %v736 = vld [vmem:[%s5 + $0x148] sm:$0xff]
    %v737 = vld [vmem:[%s5 + $0x150] sm:$0xff]
    %v738 = vld [vmem:[%s5 + $0x158] sm:$0xff]
    %v739 = vld [vmem:[%s5 + $0x160] sm:$0xff]
    %v740 = vld [vmem:[%s5 + $0x168] sm:$0xff]
    %v741 = vld [vmem:[%s5 + $0x170] sm:$0xff]
    %v742 = vld [vmem:[%s5 + $0x178] sm:$0xff]
    %v743 = vld [vmem:[%s6] sm:$0x3f]
    %v745 = vlaneseq
    %v746 = vshrl.u32 %v745, 7
    %v747 = vsub.s32 0, %v746
    %v748 = vrot.slane %v743, %v747
    %v749 = vlaneseq
    %v750 = vshrl.u32 %v749, 7
    %v751 = vsub.s32 1, %v750
    %v752 = vrot.slane %v743, %v751
    %v753 = vlaneseq
    %v754 = vshrl.u32 %v753, 7
    %v755 = vsub.s32 2, %v754
    %v756 = vrot.slane %v743, %v755
    %v757 = vlaneseq
    %v758 = vshrl.u32 %v757, 7
    %v759 = vsub.s32 3, %v758
    %v760 = vrot.slane %v743, %v759
    %v761 = vlaneseq
    %v762 = vshrl.u32 %v761, 7
    %v763 = vsub.s32 4, %v762
    %v764 = vrot.slane %v743, %v763
    %v765 = vlaneseq
    %v766 = vshrl.u32 %v765, 7
    %v767 = vsub.s32 5, %v766
    %v768 = vrot.slane %v743, %v767
    %v823 = vunpack.c.l.b16 %v695
    %v824 = vunpack.c.h.b16 %v695
    %v825 = vunpack.c.l.b16 %v696
    %v826 = vunpack.c.h.b16 %v696
    %v827 = vunpack.c.l.b16 %v697
    %v828 = vunpack.c.h.b16 %v697
    %v829 = vunpack.c.l.b16 %v698
    %v830 = vunpack.c.h.b16 %v698
    %v831 = vunpack.c.l.b16 %v699
    %v832 = vunpack.c.h.b16 %v699
    %v833 = vunpack.c.l.b16 %v700
    %v834 = vunpack.c.h.b16 %v700
    %v835 = vunpack.c.l.b16 %v701
    %v836 = vunpack.c.h.b16 %v701
    %v837 = vunpack.c.l.b16 %v702
    %v838 = vunpack.c.h.b16 %v702
    %v839 = vunpack.c.l.b16 %v703
    %v840 = vunpack.c.h.b16 %v703
    %v841 = vunpack.c.l.b16 %v704
    %v842 = vunpack.c.h.b16 %v704
    %v843 = vunpack.c.l.b16 %v705
    %v844 = vunpack.c.h.b16 %v705
    %v845 = vunpack.c.l.b16 %v706
    %v846 = vunpack.c.h.b16 %v706
    %v847 = vunpack.c.l.b16 %v707
    %v848 = vunpack.c.h.b16 %v707
    %v849 = vunpack.c.l.b16 %v708
    %v850 = vunpack.c.h.b16 %v708
    %v851 = vunpack.c.l.b16 %v709
    %v852 = vunpack.c.h.b16 %v709
    %v853 = vunpack.c.l.b16 %v710
    %v854 = vunpack.c.h.b16 %v710
    %v855 = vunpack.c.l.b16 %v711
    %v856 = vunpack.c.h.b16 %v711
    %v857 = vunpack.c.l.b16 %v712
    %v858 = vunpack.c.h.b16 %v712
    %v859 = vunpack.c.l.b16 %v713
    %v860 = vunpack.c.h.b16 %v713
    %v861 = vunpack.c.l.b16 %v714
    %v862 = vunpack.c.h.b16 %v714
    %v863 = vunpack.c.l.b16 %v715
    %v864 = vunpack.c.h.b16 %v715
    %v865 = vunpack.c.l.b16 %v716
    %v866 = vunpack.c.h.b16 %v716
    %v867 = vunpack.c.l.b16 %v717
    %v868 = vunpack.c.h.b16 %v717
    %v869 = vunpack.c.l.b16 %v718
    %v870 = vunpack.c.h.b16 %v718
    %v871 = vunpack.c.l.b16 %v719
    %v872 = vunpack.c.h.b16 %v719
    %v873 = vunpack.c.l.b16 %v720
    %v874 = vunpack.c.h.b16 %v720
    %v875 = vunpack.c.l.b16 %v721
    %v876 = vunpack.c.h.b16 %v721
    %v877 = vunpack.c.l.b16 %v722
    %v878 = vunpack.c.h.b16 %v722
    %v879 = vunpack.c.l.b16 %v723
    %v880 = vunpack.c.h.b16 %v723
    %v881 = vunpack.c.l.b16 %v724
    %v882 = vunpack.c.h.b16 %v724
    %v883 = vunpack.c.l.b16 %v725
    %v884 = vunpack.c.h.b16 %v725
    %v885 = vunpack.c.l.b16 %v726
    %v886 = vunpack.c.h.b16 %v726
    %v887 = vunpack.c.l.b16 %v727
    %v888 = vunpack.c.h.b16 %v727
    %v889 = vunpack.c.l.b16 %v728
    %v890 = vunpack.c.h.b16 %v728
    %v891 = vunpack.c.l.b16 %v729
    %v892 = vunpack.c.h.b16 %v729
    %v893 = vunpack.c.l.b16 %v730
    %v894 = vunpack.c.h.b16 %v730
    %v895 = vunpack.c.l.b16 %v731
    %v896 = vunpack.c.h.b16 %v731
    %v897 = vunpack.c.l.b16 %v732
    %v898 = vunpack.c.h.b16 %v732
    %v899 = vunpack.c.l.b16 %v733
    %v900 = vunpack.c.h.b16 %v733
    %v901 = vunpack.c.l.b16 %v734
    %v902 = vunpack.c.h.b16 %v734
    %v903 = vunpack.c.l.b16 %v735
    %v904 = vunpack.c.h.b16 %v735
    %v905 = vunpack.c.l.b16 %v736
    %v906 = vunpack.c.h.b16 %v736
    %v907 = vunpack.c.l.b16 %v737
    %v908 = vunpack.c.h.b16 %v737
    %v909 = vunpack.c.l.b16 %v738
    %v910 = vunpack.c.h.b16 %v738
    %v911 = vunpack.c.l.b16 %v739
    %v912 = vunpack.c.h.b16 %v739
    %v913 = vunpack.c.l.b16 %v740
    %v914 = vunpack.c.h.b16 %v740
    %v915 = vunpack.c.l.b16 %v741
    %v916 = vunpack.c.h.b16 %v741
    %v917 = vunpack.c.l.b16 %v742
    %v918 = vunpack.c.h.b16 %v742
    %v919 = vpack.c.b16 %v829, %v823
    %v920 = vpack.c.b16 %v830, %v824
    %v921 = vpack.c.b16 %v831, %v825
    %v922 = vpack.c.b16 %v832, %v826
    %v923 = vpack.c.b16 %v833, %v827
    %v924 = vpack.c.b16 %v834, %v828
    %v925 = vpack.c.b16 %v841, %v835
    %v926 = vpack.c.b16 %v842, %v836
    %v927 = vpack.c.b16 %v843, %v837
    %v928 = vpack.c.b16 %v844, %v838
    %v929 = vpack.c.b16 %v845, %v839
    %v930 = vpack.c.b16 %v846, %v840
    %v931 = vpack.c.b16 %v853, %v847
    %v932 = vpack.c.b16 %v854, %v848
    %v933 = vpack.c.b16 %v855, %v849
    %v934 = vpack.c.b16 %v856, %v850
    %v935 = vpack.c.b16 %v857, %v851
    %v936 = vpack.c.b16 %v858, %v852
    %v937 = vpack.c.b16 %v865, %v859
    %v938 = vpack.c.b16 %v866, %v860
    %v939 = vpack.c.b16 %v867, %v861
    %v940 = vpack.c.b16 %v868, %v862
    %v941 = vpack.c.b16 %v869, %v863
    %v942 = vpack.c.b16 %v870, %v864
    %v943 = vpack.c.b16 %v877, %v871
    %v944 = vpack.c.b16 %v878, %v872
    %v945 = vpack.c.b16 %v879, %v873
    %v946 = vpack.c.b16 %v880, %v874
    %v947 = vpack.c.b16 %v881, %v875
    %v948 = vpack.c.b16 %v882, %v876
    %v949 = vpack.c.b16 %v889, %v883
    %v950 = vpack.c.b16 %v890, %v884
    %v951 = vpack.c.b16 %v891, %v885
    %v952 = vpack.c.b16 %v892, %v886
    %v953 = vpack.c.b16 %v893, %v887
    %v954 = vpack.c.b16 %v894, %v888
    %v955 = vpack.c.b16 %v901, %v895
    %v956 = vpack.c.b16 %v902, %v896
    %v957 = vpack.c.b16 %v903, %v897
    %v958 = vpack.c.b16 %v904, %v898
    %v959 = vpack.c.b16 %v905, %v899
    %v960 = vpack.c.b16 %v906, %v900
    %v961 = vpack.c.b16 %v913, %v907
    %v962 = vpack.c.b16 %v914, %v908
    %v963 = vpack.c.b16 %v915, %v909
    %v964 = vpack.c.b16 %v916, %v910
    %v965 = vpack.c.b16 %v917, %v911
    %v966 = vpack.c.b16 %v918, %v912
    %1015 = vmatprep.subr.bf16.mxu0 %v920
    %1016 = vmatpush1.bf16.msra.mxu0 %v919
    %1017 = vmatprep.subr.bf16.mxu0 %v926
    %1018 = vmatpush1.bf16.msra.mxu0 %v925
    %1019 = vmatprep.subr.bf16.mxu0 %v932
    %1020 = vmatpush1.bf16.msra.mxu0 %v931
    %1021 = vmatprep.subr.bf16.mxu0 %v938
    %1022 = vmatpush1.bf16.msra.mxu0 %v937
    %1023 = vmatprep.subr.bf16.mxu0 %v944
    %1024 = vmatpush1.bf16.msra.mxu0 %v943
    %1025 = vmatprep.subr.bf16.mxu0 %v950
    %1026 = vmatpush1.bf16.msra.mxu0 %v949
    %1027 = vmatprep.subr.bf16.mxu0 %v956
    %1028 = vmatpush1.bf16.msra.mxu0 %v955
    %1029 = vmatprep.subr.bf16.mxu0 %v962
    %1030 = vmatpush1.bf16.msra.mxu0 %v961
    %1031 = vmatprep.subr.bf16.mxu0 0
    %1032 = vmatpush1.bf16.msra.mxu0 0
    %1033 = vmatprep.subr.bf16.mxu0 0
    %1034 = vmatpush1.bf16.msra.mxu0 0
    %1035 = vmatprep.subr.bf16.mxu0 0
    %1036 = vmatpush1.bf16.msra.mxu0 0
    %1037 = vmatprep.subr.bf16.mxu0 0
    %1038 = vmatpush1.bf16.msra.mxu0 0
    %1039 = vmatprep.subr.bf16.mxu0 0
    %1040 = vmatpush1.bf16.msra.mxu0 0
    %1041 = vmatprep.subr.bf16.mxu0 0
    %1042 = vmatpush1.bf16.msra.mxu0 0
    %1043 = vmatprep.subr.bf16.mxu0 0
    %1044 = vmatpush1.bf16.msra.mxu0 0
    %1045 = vmatprep.subr.bf16.mxu0 0
    %1046 = vmatpush1.bf16.msra.mxu0 0
    %1047 = vmatprep.mubr.bf16.mxu0 0
    %1048 = vmatmul.mubr.bf16.gmra.mrb[0].mxu0 %v694
    %v1049 = vpop.f32.mrb[0].mxu0
    %v1050 = vadd.f32 %v748, %v1049
    %v1051 = vpop.f32.mrb[0].mxu0
    %v1052 = vadd.f32 %v752, %v1051
    %v1053 = vpop.f32.mrb[0].mxu0
    %v1054 = vadd.f32 %v748, %v1053
    %v1055 = vpop.f32.mrb[0].mxu0
    %v1056 = vadd.f32 %v752, %v1055
    %1057 = vdwg.mxu0
    %1058 = vmatprep.subr.bf16.mxu0 %v922
    %1059 = vmatpush1.bf16.msra.mxu0 %v921
    %1060 = vmatprep.subr.bf16.mxu0 %v928
    %1061 = vmatpush1.bf16.msra.mxu0 %v927
    %1062 = vmatprep.subr.bf16.mxu0 %v934
    %1063 = vmatpush1.bf16.msra.mxu0 %v933
    %1064 = vmatprep.subr.bf16.mxu0 %v940
    %1065 = vmatpush1.bf16.msra.mxu0 %v939
    %1066 = vmatprep.subr.bf16.mxu0 %v946
    %1067 = vmatpush1.bf16.msra.mxu0 %v945
    %1068 = vmatprep.subr.bf16.mxu0 %v952
    %1069 = vmatpush1.bf16.msra.mxu0 %v951
    %1070 = vmatprep.subr.bf16.mxu0 %v958
    %1071 = vmatpush1.bf16.msra.mxu0 %v957
    %1072 = vmatprep.subr.bf16.mxu0 %v964
    %1073 = vmatpush1.bf16.msra.mxu0 %v963
    %1074 = vmatprep.subr.bf16.mxu0 0
    %1075 = vmatpush1.bf16.msra.mxu0 0
    %1076 = vmatprep.subr.bf16.mxu0 0
    %1077 = vmatpush1.bf16.msra.mxu0 0
    %1078 = vmatprep.subr.bf16.mxu0 0
    %1079 = vmatpush1.bf16.msra.mxu0 0
    %1080 = vmatprep.subr.bf16.mxu0 0
    %1081 = vmatpush1.bf16.msra.mxu0 0
    %1082 = vmatprep.subr.bf16.mxu0 0
    %1083 = vmatpush1.bf16.msra.mxu0 0
    %1084 = vmatprep.subr.bf16.mxu0 0
    %1085 = vmatpush1.bf16.msra.mxu0 0
    %1086 = vmatprep.subr.bf16.mxu0 0
    %1087 = vmatpush1.bf16.msra.mxu0 0
    %1088 = vmatprep.subr.bf16.mxu0 0
    %1089 = vmatpush1.bf16.msra.mxu0 0
    %1090 = vmatprep.mubr.bf16.mxu0 0
    %1091 = vmatmul.mubr.bf16.gmra.mrb[0].mxu0 %v694
    %v1092 = vpop.f32.mrb[0].mxu0
    %v1093 = vadd.f32 %v756, %v1092
    %v1094 = vpop.f32.mrb[0].mxu0
    %v1095 = vadd.f32 %v760, %v1094
    %v1096 = vpop.f32.mrb[0].mxu0
    %v1097 = vadd.f32 %v756, %v1096
    %v1098 = vpop.f32.mrb[0].mxu0
    %v1099 = vadd.f32 %v760, %v1098
    %1100 = vdwg.mxu0
    %1101 = vmatprep.subr.bf16.mxu0 %v924
    %1102 = vmatpush1.bf16.msra.mxu0 %v923
    %1103 = vmatprep.subr.bf16.mxu0 %v930
    %1104 = vmatpush1.bf16.msra.mxu0 %v929
    %1105 = vmatprep.subr.bf16.mxu0 %v936
    %1106 = vmatpush1.bf16.msra.mxu0 %v935
    %1107 = vmatprep.subr.bf16.mxu0 %v942
    %1108 = vmatpush1.bf16.msra.mxu0 %v941
    %1109 = vmatprep.subr.bf16.mxu0 %v948
    %1110 = vmatpush1.bf16.msra.mxu0 %v947
    %1111 = vmatprep.subr.bf16.mxu0 %v954
    %1112 = vmatpush1.bf16.msra.mxu0 %v953
    %1113 = vmatprep.subr.bf16.mxu0 %v960
    %1114 = vmatpush1.bf16.msra.mxu0 %v959
    %1115 = vmatprep.subr.bf16.mxu0 %v966
    %1116 = vmatpush1.bf16.msra.mxu0 %v965
    %1117 = vmatprep.subr.bf16.mxu0 0
    %1118 = vmatpush1.bf16.msra.mxu0 0
    %1119 = vmatprep.subr.bf16.mxu0 0
    %1120 = vmatpush1.bf16.msra.mxu0 0
    %1121 = vmatprep.subr.bf16.mxu0 0
    %1122 = vmatpush1.bf16.msra.mxu0 0
    %1123 = vmatprep.subr.bf16.mxu0 0
    %1124 = vmatpush1.bf16.msra.mxu0 0
    %1125 = vmatprep.subr.bf16.mxu0 0
    %1126 = vmatpush1.bf16.msra.mxu0 0
    %1127 = vmatprep.subr.bf16.mxu0 0
    %1128 = vmatpush1.bf16.msra.mxu0 0
    %1129 = vmatprep.subr.bf16.mxu0 0
    %1130 = vmatpush1.bf16.msra.mxu0 0
    %1131 = vmatprep.subr.bf16.mxu0 0
    %1132 = vmatpush1.bf16.msra.mxu0 0
    %1133 = vmatprep.mubr.bf16.mxu0 0
    %1134 = vmatmul.mubr.bf16.gmra.mrb[0].mxu0 %v694
    %v1135 = vpop.f32.mrb[0].mxu0
    %v1136 = vadd.f32 %v764, %v1135
    %v1137 = vpop.f32.mrb[0].mxu0
    %v1138 = vadd.f32 %v768, %v1137
    %v1139 = vpop.f32.mrb[0].mxu0
    %v1140 = vadd.f32 %v764, %v1139
    %v1141 = vpop.f32.mrb[0].mxu0
    %v1142 = vadd.f32 %v768, %v1141
    %1143 = vdwg.mxu0
    %v1144 = vpack.c.bf16 %v1050, %v1050
    %v1145 = vpack.c.bf16 %v1054, %v1054
    %v1146 = vpack.c.bf16 %v1093, %v1093
    %v1147 = vpack.c.bf16 %v1097, %v1097
    %v1148 = vpack.c.bf16 %v1136, %v1136
    %v1149 = vpack.c.bf16 %v1140, %v1140
    %1150 = vmatprep.subr.bf16.mxu0 0
    %1151 = vmatpush1.bf16.xpose.msra.mxu0 %v1146
    %1152 = vmatprep.subr.bf16.mxu0 0
    %1153 = vmatpush1.bf16.xpose.msra.mxu0 0
    %1154 = vmatprep.subr.bf16.mxu0 0
    %1155 = vmatpush1.bf16.xpose.msra.mxu0 0
    %1156 = vmatprep.subr.bf16.mxu0 0
    %1157 = vmatpush1.bf16.xpose.msra.mxu0 0
    %1158 = vmatprep.subr.bf16.mxu0 0
    %1159 = vmatpush1.bf16.xpose.msra.mxu0 0
    %1160 = vmatprep.subr.bf16.mxu0 0
    %1161 = vmatpush1.bf16.xpose.msra.mxu0 0
    %1162 = vmatprep.subr.bf16.mxu0 0
    %1163 = vmatpush1.bf16.xpose.msra.mxu0 0
    %1164 = vmatprep.subr.bf16.mxu0 0
    %1165 = vmatpush1.bf16.xpose.msra.mxu0 0
    %1166 = vmatprep.subr.bf16.mxu0 0
    %1167 = vmatpush1.bf16.xpose.msra.mxu0 0
    %1168 = vmatprep.subr.bf16.mxu0 0
    %1169 = vmatpush1.bf16.xpose.msra.mxu0 0
    %1170 = vmatprep.subr.bf16.mxu0 0
    %1171 = vmatpush1.bf16.xpose.msra.mxu0 0
    %1172 = vmatprep.subr.bf16.mxu0 0
    %1173 = vmatpush1.bf16.xpose.msra.mxu0 0
    %1174 = vmatprep.subr.bf16.mxu0 0
    %1175 = vmatpush1.bf16.xpose.msra.mxu0 0
    %1176 = vmatprep.subr.bf16.mxu0 0
    %1177 = vmatpush1.bf16.xpose.msra.mxu0 0
    %1178 = vmatprep.subr.bf16.mxu0 0
    %1179 = vmatpush1.bf16.xpose.msra.mxu0 0
    %1180 = vmatprep.subr.bf16.mxu0 0
    %1181 = vmatpush1.bf16.xpose.msra.mxu0 0
    %1182 = vmatprep.mubr.bf16.mxu0 0
    %1183 = vmatmul.mubr.bf16.gmra.mrb[0].mxu0 %v1144
    %v1184 = vpop.f32.mrb[0].mxu0
    %v1185 = vadd.f32 %v647, %v1184
    %v1186 = vpop.f32.mrb[0].mxu0
    %v1187 = vpop.f32.mrb[0].mxu0
    %v1188 = vpop.f32.mrb[0].mxu0
    %1189 = vdwg.mxu0
    %1190 = vmatprep.subr.bf16.mxu0 0
    %1191 = vmatpush1.bf16.xpose.msra.mxu0 %v1147
    %1192 = vmatprep.subr.bf16.mxu0 0
    %1193 = vmatpush1.bf16.xpose.msra.mxu0 0
    %1194 = vmatprep.subr.bf16.mxu0 0
    %1195 = vmatpush1.bf16.xpose.msra.mxu0 0
    %1196 = vmatprep.subr.bf16.mxu0 0
    %1197 = vmatpush1.bf16.xpose.msra.mxu0 0
    %1198 = vmatprep.subr.bf16.mxu0 0
    %1199 = vmatpush1.bf16.xpose.msra.mxu0 0
    %1200 = vmatprep.subr.bf16.mxu0 0
    %1201 = vmatpush1.bf16.xpose.msra.mxu0 0
    %1202 = vmatprep.subr.bf16.mxu0 0
    %1203 = vmatpush1.bf16.xpose.msra.mxu0 0
    %1204 = vmatprep.subr.bf16.mxu0 0
    %1205 = vmatpush1.bf16.xpose.msra.mxu0 0
    %1206 = vmatprep.subr.bf16.mxu0 0
    %1207 = vmatpush1.bf16.xpose.msra.mxu0 0
    %1208 = vmatprep.subr.bf16.mxu0 0
    %1209 = vmatpush1.bf16.xpose.msra.mxu0 0
    %1210 = vmatprep.subr.bf16.mxu0 0
    %1211 = vmatpush1.bf16.xpose.msra.mxu0 0
    %1212 = vmatprep.subr.bf16.mxu0 0
    %1213 = vmatpush1.bf16.xpose.msra.mxu0 0
    %1214 = vmatprep.subr.bf16.mxu0 0
    %1215 = vmatpush1.bf16.xpose.msra.mxu0 0
    %1216 = vmatprep.subr.bf16.mxu0 0
    %1217 = vmatpush1.bf16.xpose.msra.mxu0 0
    %1218 = vmatprep.subr.bf16.mxu0 0
    %1219 = vmatpush1.bf16.xpose.msra.mxu0 0
    %1220 = vmatprep.subr.bf16.mxu0 0
    %1221 = vmatpush1.bf16.xpose.msra.mxu0 0
    %1222 = vmatprep.mubr.bf16.mxu0 0
    %1223 = vmatmul.mubr.bf16.gmra.mrb[0].mxu0 %v1145
    %v1224 = vpop.f32.mrb[0].mxu0
    %v1225 = vadd.f32 %v647, %v1224
    %v1226 = vpop.f32.mrb[0].mxu0
    %v1227 = vpop.f32.mrb[0].mxu0
    %v1228 = vpop.f32.mrb[0].mxu0
    %1229 = vdwg.mxu0
    %vm1230 = vcmask 64512
    %v1231 = vsel %vm1230, %v1185, -inf
    %1232 = vmax.xlane.f32.xlu0 %v1231
    %v1233 = vpop.xlane.xlu0 %1232
    %v1234 = vsel %vm1230, %v1225, -inf
    %1235 = vmax.xlane.f32.xlu0 %v1234
    %v1236 = vpop.xlane.xlu0 %1235
    %v1237 = vsub.f32 %v1185, %v1233
    %v1238 = vsub.f32 %v1225, %v1236
    %v1239 = vmul.f32 %v1237, 1.442695
    %v1240 = vpow.pop %v1239
    %v1241 = vmul.f32 %v1238, 1.442695
    %v1242 = vpow.pop %v1241
    %v1243 = vsel %vm1230, %v1240, 0.0
    %1244 = vadd.xlane.f32.xlu0 %v1243
    %v1245 = vpop.xlane.xlu0 %1244
    %v1246 = vsel %vm1230, %v1242, 0.0
    %1247 = vadd.xlane.f32.xlu0 %v1246
    %v1248 = vpop.xlane.xlu0 %1247
    %v1249 = vrcp.pop %v1245
    %v1250 = vrcp.pop %v1248
    %v1251 = vmul.f32 %v1240, %v1249
    %v1252 = vmul.f32 %v1242, %v1250
    %v1253 = vpack.c.bf16 %v1251, %v1251
    %v1254 = vpack.c.bf16 %v1252, %v1252
    %v1256 = vsel %vm1230, %v1253, 0
    %vm1258 = vcmask 1043456
    %v1260 = vsel %vm1258, %v1148, 0
    %1262 = vmatprep.subr.bf16.mxu0 0
    %1263 = vmatpush1.bf16.msra.mxu0 %v1260
    %1264 = vmatprep.subr.bf16.mxu0 0
    %1265 = vmatpush1.bf16.msra.mxu0 0
    %1266 = vmatprep.subr.bf16.mxu0 0
    %1267 = vmatpush1.bf16.msra.mxu0 0
    %1268 = vmatprep.subr.bf16.mxu0 0
    %1269 = vmatpush1.bf16.msra.mxu0 0
    %1270 = vmatprep.subr.bf16.mxu0 0
    %1271 = vmatpush1.bf16.msra.mxu0 0
    %1272 = vmatprep.subr.bf16.mxu0 0
    %1273 = vmatpush1.bf16.msra.mxu0 0
    %1274 = vmatprep.subr.bf16.mxu0 0
    %1275 = vmatpush1.bf16.msra.mxu0 0
    %1276 = vmatprep.subr.bf16.mxu0 0
    %1277 = vmatpush1.bf16.msra.mxu0 0
    %1278 = vmatprep.subr.bf16.mxu0 0
    %1279 = vmatpush1.bf16.msra.mxu0 0
    %1280 = vmatprep.subr.bf16.mxu0 0
    %1281 = vmatpush1.bf16.msra.mxu0 0
    %1282 = vmatprep.subr.bf16.mxu0 0
    %1283 = vmatpush1.bf16.msra.mxu0 0
    %1284 = vmatprep.subr.bf16.mxu0 0
    %1285 = vmatpush1.bf16.msra.mxu0 0
    %1286 = vmatprep.subr.bf16.mxu0 0
    %1287 = vmatpush1.bf16.msra.mxu0 0
    %1288 = vmatprep.subr.bf16.mxu0 0
    %1289 = vmatpush1.bf16.msra.mxu0 0
    %1290 = vmatprep.subr.bf16.mxu0 0
    %1291 = vmatpush1.bf16.msra.mxu0 0
    %1292 = vmatprep.subr.bf16.mxu0 0
    %1293 = vmatpush1.bf16.msra.mxu0 0
    %1294 = vmatprep.mubr.bf16.mxu0 0
    %1295 = vmatmul.mubr.bf16.gmra.mrb[0].mxu0 %v1256
    %v1296 = vpop.f32.mrb[0].mxu0
    %v1297 = vadd.f32 0.0, %v1296
    %v1298 = vpop.f32.mrb[0].mxu0
    %v1299 = vpop.f32.mrb[0].mxu0
    %v1300 = vpop.f32.mrb[0].mxu0
    %1301 = vdwg.mxu0
    %v1303 = vsel %vm1230, %v1254, 0
    %v1306 = vsel %vm1258, %v1149, 0
    %1308 = vmatprep.subr.bf16.mxu0 0
    %1309 = vmatpush1.bf16.msra.mxu0 %v1306
    %1310 = vmatprep.subr.bf16.mxu0 0
    %1311 = vmatpush1.bf16.msra.mxu0 0
    %1312 = vmatprep.subr.bf16.mxu0 0
    %1313 = vmatpush1.bf16.msra.mxu0 0
    %1314 = vmatprep.subr.bf16.mxu0 0
    %1315 = vmatpush1.bf16.msra.mxu0 0
    %1316 = vmatprep.subr.bf16.mxu0 0
    %1317 = vmatpush1.bf16.msra.mxu0 0
    %1318 = vmatprep.subr.bf16.mxu0 0
    %1319 = vmatpush1.bf16.msra.mxu0 0
    %1320 = vmatprep.subr.bf16.mxu0 0
    %1321 = vmatpush1.bf16.msra.mxu0 0
    %1322 = vmatprep.subr.bf16.mxu0 0
    %1323 = vmatpush1.bf16.msra.mxu0 0
    %1324 = vmatprep.subr.bf16.mxu0 0
    %1325 = vmatpush1.bf16.msra.mxu0 0
    %1326 = vmatprep.subr.bf16.mxu0 0
    %1327 = vmatpush1.bf16.msra.mxu0 0
    %1328 = vmatprep.subr.bf16.mxu0 0
    %1329 = vmatpush1.bf16.msra.mxu0 0
    %1330 = vmatprep.subr.bf16.mxu0 0
    %1331 = vmatpush1.bf16.msra.mxu0 0
    %1332 = vmatprep.subr.bf16.mxu0 0
    %1333 = vmatpush1.bf16.msra.mxu0 0
    %1334 = vmatprep.subr.bf16.mxu0 0
    %1335 = vmatpush1.bf16.msra.mxu0 0
    %1336 = vmatprep.subr.bf16.mxu0 0
    %1337 = vmatpush1.bf16.msra.mxu0 0
    %1338 = vmatprep.subr.bf16.mxu0 0
    %1339 = vmatpush1.bf16.msra.mxu0 0
    %1340 = vmatprep.mubr.bf16.mxu0 0
    %1341 = vmatmul.mubr.bf16.gmra.mrb[0].mxu0 %v1303
    %v1342 = vpop.f32.mrb[0].mxu0
    %v1343 = vadd.f32 0.0, %v1342
    %v1344 = vpop.f32.mrb[0].mxu0
    %v1345 = vpop.f32.mrb[0].mxu0
    %v1346 = vpop.f32.mrb[0].mxu0
    %1347 = vdwg.mxu0
    %v1348 = vpack.c.bf16 %v1343, %v1297
    %v1349 = vld [vmem:[#allocation2] sm:$0xf]
    %v1350 = vld [vmem:[#allocation2 + $0x4] sm:$0xf]
    %v1351 = vld [vmem:[#allocation2 + $0x8] sm:$0xf]
    %v1352 = vld [vmem:[#allocation2 + $0xc] sm:$0xf]
    %v1353 = vld [vmem:[#allocation2 + $0x10] sm:$0xf]
    %v1354 = vld [vmem:[#allocation2 + $0x14] sm:$0xf]
    %v1355 = vld [vmem:[#allocation2 + $0x18] sm:$0xf]
    %v1356 = vld [vmem:[#allocation2 + $0x1c] sm:$0xf]
    %v1357 = vld [vmem:[#allocation2 + $0x20] sm:$0xf]
    %v1358 = vld [vmem:[#allocation2 + $0x24] sm:$0xf]
    %v1359 = vld [vmem:[#allocation2 + $0x28] sm:$0xf]
    %v1360 = vld [vmem:[#allocation2 + $0x2c] sm:$0xf]
    %v1361 = vld [vmem:[#allocation2 + $0x30] sm:$0xf]
    %v1362 = vld [vmem:[#allocation2 + $0x34] sm:$0xf]
    %v1363 = vld [vmem:[#allocation2 + $0x38] sm:$0xf]
    %v1364 = vld [vmem:[#allocation2 + $0x3c] sm:$0xf]
    %v1365 = vpack.c.bf16 %v1052, %v1052
    %v1366 = vpack.c.bf16 %v1056, %v1056
    %v1367 = vpack.c.bf16 %v1095, %v1095
    %v1368 = vpack.c.bf16 %v1099, %v1099
    %v1369 = vpack.c.bf16 %v1138, %v1138
    %v1370 = vpack.c.bf16 %v1142, %v1142
    %1371 = vmatprep.subr.bf16.mxu0 0
    %1372 = vmatpush1.bf16.xpose.msra.mxu0 %v1367
    %1373 = vmatprep.subr.bf16.mxu0 0
    %1374 = vmatpush1.bf16.xpose.msra.mxu0 0
    %1375 = vmatprep.subr.bf16.mxu0 0
    %1376 = vmatpush1.bf16.xpose.msra.mxu0 0
    %1377 = vmatprep.subr.bf16.mxu0 0
    %1378 = vmatpush1.bf16.xpose.msra.mxu0 0
    %1379 = vmatprep.subr.bf16.mxu0 0
    %1380 = vmatpush1.bf16.xpose.msra.mxu0 0
    %1381 = vmatprep.subr.bf16.mxu0 0
    %1382 = vmatpush1.bf16.xpose.msra.mxu0 0
    %1383 = vmatprep.subr.bf16.mxu0 0
    %1384 = vmatpush1.bf16.xpose.msra.mxu0 0
    %1385 = vmatprep.subr.bf16.mxu0 0
    %1386 = vmatpush1.bf16.xpose.msra.mxu0 0
    %1387 = vmatprep.subr.bf16.mxu0 0
    %1388 = vmatpush1.bf16.xpose.msra.mxu0 0
    %1389 = vmatprep.subr.bf16.mxu0 0
    %1390 = vmatpush1.bf16.xpose.msra.mxu0 0
    %1391 = vmatprep.subr.bf16.mxu0 0
    %1392 = vmatpush1.bf16.xpose.msra.mxu0 0
    %1393 = vmatprep.subr.bf16.mxu0 0
    %1394 = vmatpush1.bf16.xpose.msra.mxu0 0
    %1395 = vmatprep.subr.bf16.mxu0 0
    %1396 = vmatpush1.bf16.xpose.msra.mxu0 0
    %1397 = vmatprep.subr.bf16.mxu0 0
    %1398 = vmatpush1.bf16.xpose.msra.mxu0 0
    %1399 = vmatprep.subr.bf16.mxu0 0
    %1400 = vmatpush1.bf16.xpose.msra.mxu0 0
    %1401 = vmatprep.subr.bf16.mxu0 0
    %1402 = vmatpush1.bf16.xpose.msra.mxu0 0
    %1403 = vmatprep.mubr.bf16.mxu0 0
    %1404 = vmatmul.mubr.bf16.gmra.mrb[0].mxu0 %v1365
    %v1405 = vpop.f32.mrb[0].mxu0
    %v1406 = vadd.f32 %v647, %v1405
    %v1407 = vpop.f32.mrb[0].mxu0
    %v1408 = vpop.f32.mrb[0].mxu0
    %v1409 = vpop.f32.mrb[0].mxu0
    %1410 = vdwg.mxu0
    %1411 = vmatprep.subr.bf16.mxu0 0
    %1412 = vmatpush1.bf16.xpose.msra.mxu0 %v1368
    %1413 = vmatprep.subr.bf16.mxu0 0
    %1414 = vmatpush1.bf16.xpose.msra.mxu0 0
    %1415 = vmatprep.subr.bf16.mxu0 0
    %1416 = vmatpush1.bf16.xpose.msra.mxu0 0
    %1417 = vmatprep.subr.bf16.mxu0 0
    %1418 = vmatpush1.bf16.xpose.msra.mxu0 0
    %1419 = vmatprep.subr.bf16.mxu0 0
    %1420 = vmatpush1.bf16.xpose.msra.mxu0 0
    %1421 = vmatprep.subr.bf16.mxu0 0
    %1422 = vmatpush1.bf16.xpose.msra.mxu0 0
    %1423 = vmatprep.subr.bf16.mxu0 0
    %1424 = vmatpush1.bf16.xpose.msra.mxu0 0
    %1425 = vmatprep.subr.bf16.mxu0 0
    %1426 = vmatpush1.bf16.xpose.msra.mxu0 0
    %1427 = vmatprep.subr.bf16.mxu0 0
    %1428 = vmatpush1.bf16.xpose.msra.mxu0 0
    %1429 = vmatprep.subr.bf16.mxu0 0
    %1430 = vmatpush1.bf16.xpose.msra.mxu0 0
    %1431 = vmatprep.subr.bf16.mxu0 0
    %1432 = vmatpush1.bf16.xpose.msra.mxu0 0
    %1433 = vmatprep.subr.bf16.mxu0 0
    %1434 = vmatpush1.bf16.xpose.msra.mxu0 0
    %1435 = vmatprep.subr.bf16.mxu0 0
    %1436 = vmatpush1.bf16.xpose.msra.mxu0 0
    %1437 = vmatprep.subr.bf16.mxu0 0
    %1438 = vmatpush1.bf16.xpose.msra.mxu0 0
    %1439 = vmatprep.subr.bf16.mxu0 0
    %1440 = vmatpush1.bf16.xpose.msra.mxu0 0
    %1441 = vmatprep.subr.bf16.mxu0 0
    %1442 = vmatpush1.bf16.xpose.msra.mxu0 0
    %1443 = vmatprep.mubr.bf16.mxu0 0
    %1444 = vmatmul.mubr.bf16.gmra.mrb[0].mxu0 %v1366
    %v1445 = vpop.f32.mrb[0].mxu0
    %v1446 = vadd.f32 %v647, %v1445
    %v1447 = vpop.f32.mrb[0].mxu0
    %v1448 = vpop.f32.mrb[0].mxu0
    %v1449 = vpop.f32.mrb[0].mxu0
    %1450 = vdwg.mxu0
    %v1451 = vsel %vm1230, %v1406, -inf
    %1452 = vmax.xlane.f32.xlu0 %v1451
    %v1453 = vpop.xlane.xlu0 %1452
    %v1454 = vsel %vm1230, %v1446, -inf
    %1455 = vmax.xlane.f32.xlu0 %v1454
    %v1456 = vpop.xlane.xlu0 %1455
    %v1457 = vsub.f32 %v1406, %v1453
    %v1458 = vsub.f32 %v1446, %v1456
    %v1459 = vmul.f32 %v1457, 1.442695
    %v1460 = vpow.pop %v1459
    %v1461 = vmul.f32 %v1458, 1.442695
    %v1462 = vpow.pop %v1461
    %v1463 = vsel %vm1230, %v1460, 0.0
    %1464 = vadd.xlane.f32.xlu0 %v1463
    %v1465 = vpop.xlane.xlu0 %1464
    %v1466 = vsel %vm1230, %v1462, 0.0
    %1467 = vadd.xlane.f32.xlu0 %v1466
    %v1468 = vpop.xlane.xlu0 %1467
    %v1469 = vrcp.pop %v1465
    %v1470 = vrcp.pop %v1468
    %v1471 = vmul.f32 %v1460, %v1469
    %v1472 = vmul.f32 %v1462, %v1470
    %v1473 = vpack.c.bf16 %v1471, %v1471
    %v1474 = vpack.c.bf16 %v1472, %v1472
    %v1476 = vsel %vm1230, %v1473, 0
    %v1479 = vsel %vm1258, %v1369, 0
    %1481 = vmatprep.subr.bf16.mxu0 0
    %1482 = vmatpush1.bf16.msra.mxu0 %v1479
    %1483 = vmatprep.subr.bf16.mxu0 0
    %1484 = vmatpush1.bf16.msra.mxu0 0
    %1485 = vmatprep.subr.bf16.mxu0 0
    %1486 = vmatpush1.bf16.msra.mxu0 0
    %1487 = vmatprep.subr.bf16.mxu0 0
    %1488 = vmatpush1.bf16.msra.mxu0 0
    %1489 = vmatprep.subr.bf16.mxu0 0
    %1490 = vmatpush1.bf16.msra.mxu0 0
    %1491 = vmatprep.subr.bf16.mxu0 0
    %1492 = vmatpush1.bf16.msra.mxu0 0
    %1493 = vmatprep.subr.bf16.mxu0 0
    %1494 = vmatpush1.bf16.msra.mxu0 0
    %1495 = vmatprep.subr.bf16.mxu0 0
    %1496 = vmatpush1.bf16.msra.mxu0 0
    %1497 = vmatprep.subr.bf16.mxu0 0
    %1498 = vmatpush1.bf16.msra.mxu0 0
    %1499 = vmatprep.subr.bf16.mxu0 0
    %1500 = vmatpush1.bf16.msra.mxu0 0
    %1501 = vmatprep.subr.bf16.mxu0 0
    %1502 = vmatpush1.bf16.msra.mxu0 0
    %1503 = vmatprep.subr.bf16.mxu0 0
    %1504 = vmatpush1.bf16.msra.mxu0 0
    %1505 = vmatprep.subr.bf16.mxu0 0
    %1506 = vmatpush1.bf16.msra.mxu0 0
    %1507 = vmatprep.subr.bf16.mxu0 0
    %1508 = vmatpush1.bf16.msra.mxu0 0
    %1509 = vmatprep.subr.bf16.mxu0 0
    %1510 = vmatpush1.bf16.msra.mxu0 0
    %1511 = vmatprep.subr.bf16.mxu0 0
    %1512 = vmatpush1.bf16.msra.mxu0 0
    %1513 = vmatprep.mubr.bf16.mxu0 0
    %1514 = vmatmul.mubr.bf16.gmra.mrb[0].mxu0 %v1476
    %v1515 = vpop.f32.mrb[0].mxu0
    %v1516 = vadd.f32 0.0, %v1515
    %v1517 = vpop.f32.mrb[0].mxu0
    %v1518 = vpop.f32.mrb[0].mxu0
    %v1519 = vpop.f32.mrb[0].mxu0
    %1520 = vdwg.mxu0
    %v1522 = vsel %vm1230, %v1474, 0
    %v1525 = vsel %vm1258, %v1370, 0
    %1527 = vmatprep.subr.bf16.mxu0 0
    %1528 = vmatpush1.bf16.msra.mxu0 %v1525
    %1529 = vmatprep.subr.bf16.mxu0 0
    %1530 = vmatpush1.bf16.msra.mxu0 0
    %1531 = vmatprep.subr.bf16.mxu0 0
    %1532 = vmatpush1.bf16.msra.mxu0 0
    %1533 = vmatprep.subr.bf16.mxu0 0
    %1534 = vmatpush1.bf16.msra.mxu0 0
    %1535 = vmatprep.subr.bf16.mxu0 0
    %1536 = vmatpush1.bf16.msra.mxu0 0
    %1537 = vmatprep.subr.bf16.mxu0 0
    %1538 = vmatpush1.bf16.msra.mxu0 0
    %1539 = vmatprep.subr.bf16.mxu0 0
    %1540 = vmatpush1.bf16.msra.mxu0 0
    %1541 = vmatprep.subr.bf16.mxu0 0
    %1542 = vmatpush1.bf16.msra.mxu0 0
    %1543 = vmatprep.subr.bf16.mxu0 0
    %1544 = vmatpush1.bf16.msra.mxu0 0
    %1545 = vmatprep.subr.bf16.mxu0 0
    %1546 = vmatpush1.bf16.msra.mxu0 0
    %1547 = vmatprep.subr.bf16.mxu0 0
    %1548 = vmatpush1.bf16.msra.mxu0 0
    %1549 = vmatprep.subr.bf16.mxu0 0
    %1550 = vmatpush1.bf16.msra.mxu0 0
    %1551 = vmatprep.subr.bf16.mxu0 0
    %1552 = vmatpush1.bf16.msra.mxu0 0
    %1553 = vmatprep.subr.bf16.mxu0 0
    %1554 = vmatpush1.bf16.msra.mxu0 0
    %1555 = vmatprep.subr.bf16.mxu0 0
    %1556 = vmatpush1.bf16.msra.mxu0 0
    %1557 = vmatprep.subr.bf16.mxu0 0
    %1558 = vmatpush1.bf16.msra.mxu0 0
    %1559 = vmatprep.mubr.bf16.mxu0 0
    %1560 = vmatmul.mubr.bf16.gmra.mrb[0].mxu0 %v1522
    %v1561 = vpop.f32.mrb[0].mxu0
    %v1562 = vadd.f32 0.0, %v1561
    %v1563 = vpop.f32.mrb[0].mxu0
    %v1564 = vpop.f32.mrb[0].mxu0
    %v1565 = vpop.f32.mrb[0].mxu0
    %1566 = vdwg.mxu0
    %v1567 = vpack.c.bf16 %v1562, %v1516
    %s1568 = scalar_lea.vmem [#allocation2], 64
    %v1569 = vld [vmem:[%s1568] sm:$0xf]
    %v1570 = vld [vmem:[%s1568 + $0x4] sm:$0xf]
    %v1571 = vld [vmem:[%s1568 + $0x8] sm:$0xf]
    %v1572 = vld [vmem:[%s1568 + $0xc] sm:$0xf]
    %v1573 = vld [vmem:[%s1568 + $0x10] sm:$0xf]
    %v1574 = vld [vmem:[%s1568 + $0x14] sm:$0xf]
    %v1575 = vld [vmem:[%s1568 + $0x18] sm:$0xf]
    %v1576 = vld [vmem:[%s1568 + $0x1c] sm:$0xf]
    %v1577 = vld [vmem:[%s1568 + $0x20] sm:$0xf]
    %v1578 = vld [vmem:[%s1568 + $0x24] sm:$0xf]
    %v1579 = vld [vmem:[%s1568 + $0x28] sm:$0xf]
    %v1580 = vld [vmem:[%s1568 + $0x2c] sm:$0xf]
    %v1581 = vld [vmem:[%s1568 + $0x30] sm:$0xf]
    %v1582 = vld [vmem:[%s1568 + $0x34] sm:$0xf]
    %v1583 = vld [vmem:[%s1568 + $0x38] sm:$0xf]
    %v1584 = vld [vmem:[%s1568 + $0x3c] sm:$0xf]
    %v1601 = vunpack.c.l.b16 %v1569
    %v1602 = vunpack.c.l.b16 %v1570
    %v1603 = vunpack.c.l.b16 %v1571
    %v1604 = vunpack.c.l.b16 %v1572
    %v1605 = vunpack.c.l.b16 %v1573
    %v1606 = vunpack.c.l.b16 %v1574
    %v1607 = vunpack.c.l.b16 %v1575
    %v1608 = vunpack.c.l.b16 %v1576
    %v1609 = vunpack.c.l.b16 %v1577
    %v1610 = vunpack.c.l.b16 %v1578
    %v1611 = vunpack.c.l.b16 %v1579
    %v1612 = vunpack.c.l.b16 %v1580
    %v1613 = vunpack.c.l.b16 %v1581
    %v1614 = vunpack.c.l.b16 %v1582
    %v1615 = vunpack.c.l.b16 %v1583
    %v1616 = vunpack.c.l.b16 %v1584
    %v1617 = vpack.c.b16 %v1602, %v1601
    %v1618 = vpack.c.b16 %v1604, %v1603
    %v1619 = vpack.c.b16 %v1606, %v1605
    %v1620 = vpack.c.b16 %v1608, %v1607
    %v1621 = vpack.c.b16 %v1610, %v1609
    %v1622 = vpack.c.b16 %v1612, %v1611
    %v1623 = vpack.c.b16 %v1614, %v1613
    %v1624 = vpack.c.b16 %v1616, %v1615
    %1633 = vmatprep.subr.bf16.mxu0 0
    %1634 = vmatpush1.bf16.msra.mxu0 %v1617
    %1635 = vmatprep.subr.bf16.mxu0 0
    %1636 = vmatpush1.bf16.msra.mxu0 %v1618
    %1637 = vmatprep.subr.bf16.mxu0 0
    %1638 = vmatpush1.bf16.msra.mxu0 %v1619
    %1639 = vmatprep.subr.bf16.mxu0 0
    %1640 = vmatpush1.bf16.msra.mxu0 %v1620
    %1641 = vmatprep.subr.bf16.mxu0 0
    %1642 = vmatpush1.bf16.msra.mxu0 %v1621
    %1643 = vmatprep.subr.bf16.mxu0 0
    %1644 = vmatpush1.bf16.msra.mxu0 %v1622
    %1645 = vmatprep.subr.bf16.mxu0 0
    %1646 = vmatpush1.bf16.msra.mxu0 %v1623
    %1647 = vmatprep.subr.bf16.mxu0 0
    %1648 = vmatpush1.bf16.msra.mxu0 %v1624
    %1649 = vmatprep.subr.bf16.mxu0 0
    %1650 = vmatpush1.bf16.msra.mxu0 0
    %1651 = vmatprep.subr.bf16.mxu0 0
    %1652 = vmatpush1.bf16.msra.mxu0 0
    %1653 = vmatprep.subr.bf16.mxu0 0
    %1654 = vmatpush1.bf16.msra.mxu0 0
    %1655 = vmatprep.subr.bf16.mxu0 0
    %1656 = vmatpush1.bf16.msra.mxu0 0
    %1657 = vmatprep.subr.bf16.mxu0 0
    %1658 = vmatpush1.bf16.msra.mxu0 0
    %1659 = vmatprep.subr.bf16.mxu0 0
    %1660 = vmatpush1.bf16.msra.mxu0 0
    %1661 = vmatprep.subr.bf16.mxu0 0
    %1662 = vmatpush1.bf16.msra.mxu0 0
    %1663 = vmatprep.subr.bf16.mxu0 0
    %1664 = vmatpush1.bf16.msra.mxu0 0
    %1665 = vmatprep.mubr.bf16.mxu0 0
    %1666 = vmatmul.mubr.bf16.gmra.mrb[0].mxu0 %v1567
    %v1667 = vpop.f32.mrb[0].mxu0
    %v1668 = vadd.f32 0.0, %v1667
    %v1669 = vpop.f32.mrb[0].mxu0
    %v1670 = vpop.f32.mrb[0].mxu0
    %v1671 = vadd.f32 0.0, %v1670
    %v1672 = vpop.f32.mrb[0].mxu0
    %1673 = vdwg.mxu0
    %v1690 = vunpack.c.l.b16 %v1349
    %v1691 = vunpack.c.l.b16 %v1350
    %v1692 = vunpack.c.l.b16 %v1351
    %v1693 = vunpack.c.l.b16 %v1352
    %v1694 = vunpack.c.l.b16 %v1353
    %v1695 = vunpack.c.l.b16 %v1354
    %v1696 = vunpack.c.l.b16 %v1355
    %v1697 = vunpack.c.l.b16 %v1356
    %v1698 = vunpack.c.l.b16 %v1357
    %v1699 = vunpack.c.l.b16 %v1358
    %v1700 = vunpack.c.l.b16 %v1359
    %v1701 = vunpack.c.l.b16 %v1360
    %v1702 = vunpack.c.l.b16 %v1361
    %v1703 = vunpack.c.l.b16 %v1362
    %v1704 = vunpack.c.l.b16 %v1363
    %v1705 = vunpack.c.l.b16 %v1364
    %v1706 = vpack.c.b16 %v1691, %v1690
    %v1707 = vpack.c.b16 %v1693, %v1692
    %v1708 = vpack.c.b16 %v1695, %v1694
    %v1709 = vpack.c.b16 %v1697, %v1696
    %v1710 = vpack.c.b16 %v1699, %v1698
    %v1711 = vpack.c.b16 %v1701, %v1700
    %v1712 = vpack.c.b16 %v1703, %v1702
    %v1713 = vpack.c.b16 %v1705, %v1704
    %1722 = vmatprep.subr.bf16.mxu0 0
    %1723 = vmatpush1.bf16.msra.mxu0 %v1706
    %1724 = vmatprep.subr.bf16.mxu0 0
    %1725 = vmatpush1.bf16.msra.mxu0 %v1707
    %1726 = vmatprep.subr.bf16.mxu0 0
    %1727 = vmatpush1.bf16.msra.mxu0 %v1708
    %1728 = vmatprep.subr.bf16.mxu0 0
    %1729 = vmatpush1.bf16.msra.mxu0 %v1709
    %1730 = vmatprep.subr.bf16.mxu0 0
    %1731 = vmatpush1.bf16.msra.mxu0 %v1710
    %1732 = vmatprep.subr.bf16.mxu0 0
    %1733 = vmatpush1.bf16.msra.mxu0 %v1711
    %1734 = vmatprep.subr.bf16.mxu0 0
    %1735 = vmatpush1.bf16.msra.mxu0 %v1712
    %1736 = vmatprep.subr.bf16.mxu0 0
    %1737 = vmatpush1.bf16.msra.mxu0 %v1713
    %1738 = vmatprep.subr.bf16.mxu0 0
    %1739 = vmatpush1.bf16.msra.mxu0 0
    %1740 = vmatprep.subr.bf16.mxu0 0
    %1741 = vmatpush1.bf16.msra.mxu0 0
    %1742 = vmatprep.subr.bf16.mxu0 0
    %1743 = vmatpush1.bf16.msra.mxu0 0
    %1744 = vmatprep.subr.bf16.mxu0 0
    %1745 = vmatpush1.bf16.msra.mxu0 0
    %1746 = vmatprep.subr.bf16.mxu0 0
    %1747 = vmatpush1.bf16.msra.mxu0 0
    %1748 = vmatprep.subr.bf16.mxu0 0
    %1749 = vmatpush1.bf16.msra.mxu0 0
    %1750 = vmatprep.subr.bf16.mxu0 0
    %1751 = vmatpush1.bf16.msra.mxu0 0
    %1752 = vmatprep.subr.bf16.mxu0 0
    %1753 = vmatpush1.bf16.msra.mxu0 0
    %1754 = vmatprep.mubr.bf16.mxu0 0
    %1755 = vmatmul.mubr.bf16.gmra.mrb[0].mxu0 %v1348
    %v1756 = vpop.f32.mrb[0].mxu0
    %v1757 = vadd.f32 %v1668, %v1756
    %v1758 = vpop.f32.mrb[0].mxu0
    %v1759 = vpop.f32.mrb[0].mxu0
    %v1760 = vadd.f32 %v1671, %v1759
    %v1761 = vpop.f32.mrb[0].mxu0
    %1762 = vdwg.mxu0
    %v1763 = vadd.f32 %v642, %v1757
    %v1764 = vadd.f32 %v643, %v1760
    %v1765 = vld [vmem:[%s8] sm:$0x1]
    %v1767 = vlaneseq
    %v1768 = vshrl.u32 %v1767, 7
    %v1769 = vsub.s32 0, %v1768
    %v1770 = vrot.slane %v1765, %v1769
    %v1772 = vadd.f32 %v1763, %v1770
    %v1773 = vadd.f32 %v1764, %v1770
    %v1774 = vld [vmem:[%s9] sm:$0x1]
    %v1775 = vld [vmem:[%s10] sm:$0x1]
    %1776 = vadd.xlane.f32.xlu0 %v1772
    %v1777 = vpop.xlane.xlu0 %1776
    %1778 = vadd.xlane.f32.xlu0 %v1773
    %v1779 = vpop.xlane.xlu0 %1778
    %v1780 = vmul.f32 %v1777, 0.015625
    %v1781 = vmul.f32 %v1779, 0.015625
    %v1782 = vsub.f32 %v1772, %v1780
    %v1783 = vsub.f32 %v1773, %v1781
    %v1784 = vmul.f32 %v1782, %v1782
    %v1785 = vmul.f32 %v1783, %v1783
    %1786 = vadd.xlane.f32.xlu0 %v1784
    %v1787 = vpop.xlane.xlu0 %1786
    %1788 = vadd.xlane.f32.xlu0 %v1785
    %v1789 = vpop.xlane.xlu0 %1788
    %v1790 = vmul.f32 %v1780, 64.0
    %v1791 = vmul.f32 %v1781, 64.0
    %v1792 = vmul.f32 %v1790, %v1780
    %v1793 = vmul.f32 %v1791, %v1781
    %v1794 = vsub.f32 %v1787, %v1792
    %v1795 = vsub.f32 %v1789, %v1793
    %v1796 = vmul.f32 %v1794, 0.015625
    %v1797 = vmul.f32 %v1795, 0.015625
    %v1798 = vadd.f32 %v1796, 1e-06
    %v1799 = vadd.f32 %v1797, 1e-06
    %v1800 = vrsqrt.pop %v1798
    %v1801 = vrsqrt.pop %v1799
    %v1802 = vmul.f32 %v1782, %v1800
    %v1803 = vmul.f32 %v1783, %v1801
    %v1805 = vlaneseq
    %v1806 = vshrl.u32 %v1805, 7
    %v1807 = vsub.s32 0, %v1806
    %v1808 = vrot.slane %v1774, %v1807
    %v1810 = vmul.f32 %v1802, %v1808
    %v1811 = vmul.f32 %v1803, %v1808
    %v1813 = vlaneseq
    %v1814 = vshrl.u32 %v1813, 7
    %v1815 = vsub.s32 0, %v1814
    %v1816 = vrot.slane %v1775, %v1815
    %v1818 = vadd.f32 %v1810, %v1816
    %v1819 = vadd.f32 %v1811, %v1816
    %v1820 = vpack.c.bf16 %v1819, %v1818
    %v1821 = vld [vmem:[#allocation4] sm:$0xff]
    %v1822 = vld [vmem:[#allocation4 + $0x8] sm:$0xff]
    %v1823 = vld [vmem:[#allocation4 + $0x10] sm:$0xff]
    %v1824 = vld [vmem:[#allocation4 + $0x18] sm:$0xff]
    %v1825 = vld [vmem:[#allocation4 + $0x20] sm:$0xff]
    %v1826 = vld [vmem:[#allocation4 + $0x28] sm:$0xff]
    %v1827 = vld [vmem:[#allocation4 + $0x30] sm:$0xff]
    %v1828 = vld [vmem:[#allocation4 + $0x38] sm:$0xff]
    %v1829 = vld [vmem:[#allocation4 + $0x40] sm:$0xff]
    %v1830 = vld [vmem:[#allocation4 + $0x48] sm:$0xff]
    %v1831 = vld [vmem:[#allocation4 + $0x50] sm:$0xff]
    %v1832 = vld [vmem:[#allocation4 + $0x58] sm:$0xff]
    %v1833 = vld [vmem:[#allocation4 + $0x60] sm:$0xff]
    %v1834 = vld [vmem:[#allocation4 + $0x68] sm:$0xff]
    %v1835 = vld [vmem:[#allocation4 + $0x70] sm:$0xff]
    %v1836 = vld [vmem:[#allocation4 + $0x78] sm:$0xff]
    %v1837 = vld [vmem:[%s12] sm:$0x3]
    %v1839 = vlaneseq
    %v1840 = vshrl.u32 %v1839, 7
    %v1841 = vsub.s32 0, %v1840
    %v1842 = vrot.slane %v1837, %v1841
    %v1843 = vlaneseq
    %v1844 = vshrl.u32 %v1843, 7
    %v1845 = vsub.s32 1, %v1844
    %v1846 = vrot.slane %v1837, %v1845
    %v1865 = vunpack.c.l.b16 %v1821
    %v1866 = vunpack.c.h.b16 %v1821
    %v1867 = vunpack.c.l.b16 %v1822
    %v1868 = vunpack.c.h.b16 %v1822
    %v1869 = vunpack.c.l.b16 %v1823
    %v1870 = vunpack.c.h.b16 %v1823
    %v1871 = vunpack.c.l.b16 %v1824
    %v1872 = vunpack.c.h.b16 %v1824
    %v1873 = vunpack.c.l.b16 %v1825
    %v1874 = vunpack.c.h.b16 %v1825
    %v1875 = vunpack.c.l.b16 %v1826
    %v1876 = vunpack.c.h.b16 %v1826
    %v1877 = vunpack.c.l.b16 %v1827
    %v1878 = vunpack.c.h.b16 %v1827
    %v1879 = vunpack.c.l.b16 %v1828
    %v1880 = vunpack.c.h.b16 %v1828
    %v1881 = vunpack.c.l.b16 %v1829
    %v1882 = vunpack.c.h.b16 %v1829
    %v1883 = vunpack.c.l.b16 %v1830
    %v1884 = vunpack.c.h.b16 %v1830
    %v1885 = vunpack.c.l.b16 %v1831
    %v1886 = vunpack.c.h.b16 %v1831
    %v1887 = vunpack.c.l.b16 %v1832
    %v1888 = vunpack.c.h.b16 %v1832
    %v1889 = vunpack.c.l.b16 %v1833
    %v1890 = vunpack.c.h.b16 %v1833
    %v1891 = vunpack.c.l.b16 %v1834
    %v1892 = vunpack.c.h.b16 %v1834
    %v1893 = vunpack.c.l.b16 %v1835
    %v1894 = vunpack.c.h.b16 %v1835
    %v1895 = vunpack.c.l.b16 %v1836
    %v1896 = vunpack.c.h.b16 %v1836
    %v1897 = vpack.c.b16 %v1867, %v1865
    %v1898 = vpack.c.b16 %v1868, %v1866
    %v1899 = vpack.c.b16 %v1871, %v1869
    %v1900 = vpack.c.b16 %v1872, %v1870
    %v1901 = vpack.c.b16 %v1875, %v1873
    %v1902 = vpack.c.b16 %v1876, %v1874
    %v1903 = vpack.c.b16 %v1879, %v1877
    %v1904 = vpack.c.b16 %v1880, %v1878
    %v1905 = vpack.c.b16 %v1883, %v1881
    %v1906 = vpack.c.b16 %v1884, %v1882
    %v1907 = vpack.c.b16 %v1887, %v1885
    %v1908 = vpack.c.b16 %v1888, %v1886
    %v1909 = vpack.c.b16 %v1891, %v1889
    %v1910 = vpack.c.b16 %v1892, %v1890
    %v1911 = vpack.c.b16 %v1895, %v1893
    %v1912 = vpack.c.b16 %v1896, %v1894
    %1929 = vmatprep.subr.bf16.mxu0 %v1898
    %1930 = vmatpush1.bf16.msra.mxu0 %v1897
    %1931 = vmatprep.subr.bf16.mxu0 %v1900
    %1932 = vmatpush1.bf16.msra.mxu0 %v1899
    %1933 = vmatprep.subr.bf16.mxu0 %v1902
    %1934 = vmatpush1.bf16.msra.mxu0 %v1901
    %1935 = vmatprep.subr.bf16.mxu0 %v1904
    %1936 = vmatpush1.bf16.msra.mxu0 %v1903
    %1937 = vmatprep.subr.bf16.mxu0 %v1906
    %1938 = vmatpush1.bf16.msra.mxu0 %v1905
    %1939 = vmatprep.subr.bf16.mxu0 %v1908
    %1940 = vmatpush1.bf16.msra.mxu0 %v1907
    %1941 = vmatprep.subr.bf16.mxu0 %v1910
    %1942 = vmatpush1.bf16.msra.mxu0 %v1909
    %1943 = vmatprep.subr.bf16.mxu0 %v1912
    %1944 = vmatpush1.bf16.msra.mxu0 %v1911
    %1945 = vmatprep.subr.bf16.mxu0 0
    %1946 = vmatpush1.bf16.msra.mxu0 0
    %1947 = vmatprep.subr.bf16.mxu0 0
    %1948 = vmatpush1.bf16.msra.mxu0 0
    %1949 = vmatprep.subr.bf16.mxu0 0
    %1950 = vmatpush1.bf16.msra.mxu0 0
    %1951 = vmatprep.subr.bf16.mxu0 0
    %1952 = vmatpush1.bf16.msra.mxu0 0
    %1953 = vmatprep.subr.bf16.mxu0 0
    %1954 = vmatpush1.bf16.msra.mxu0 0
    %1955 = vmatprep.subr.bf16.mxu0 0
    %1956 = vmatpush1.bf16.msra.mxu0 0
    %1957 = vmatprep.subr.bf16.mxu0 0
    %1958 = vmatpush1.bf16.msra.mxu0 0
    %1959 = vmatprep.subr.bf16.mxu0 0
    %1960 = vmatpush1.bf16.msra.mxu0 0
    %1961 = vmatprep.mubr.bf16.mxu0 0
    %1962 = vmatmul.mubr.bf16.gmra.mrb[0].mxu0 %v1820
    %v1963 = vpop.f32.mrb[0].mxu0
    %v1964 = vadd.f32 %v1842, %v1963
    %v1965 = vpop.f32.mrb[0].mxu0
    %v1966 = vadd.f32 %v1846, %v1965
    %v1967 = vpop.f32.mrb[0].mxu0
    %v1968 = vadd.f32 %v1842, %v1967
    %v1969 = vpop.f32.mrb[0].mxu0
    %v1970 = vadd.f32 %v1846, %v1969
    %1971 = vdwg.mxu0
    %v1972 = vmul.f32 %v1964, 0.5
    %v1973 = vmul.f32 %v1966, 0.5
    %v1974 = vmul.f32 %v1968, 0.5
    %v1975 = vmul.f32 %v1970, 0.5
    %v1976 = vmul.f32 %v1964, 0.70710677
    %v1977 = vmul.f32 %v1966, 0.70710677
    %v1978 = vmul.f32 %v1968, 0.70710677
    %v1979 = vmul.f32 %v1970, 0.70710677
    %v1980 = vand.u32 2147483647, %v1976
    %v1981 = vand.u32 2147483647, %v1977
    %v1982 = vand.u32 2147483647, %v1978
    %v1983 = vand.u32 2147483647, %v1979
    %v1984 = vmul.f32 %v1980, 0.3275911
    %v1985 = vmul.f32 %v1981, 0.3275911
    %v1986 = vmul.f32 %v1982, 0.3275911
    %v1987 = vmul.f32 %v1983, 0.3275911
    %v1988 = vadd.f32 %v1984, 1.0
    %v1989 = vadd.f32 %v1985, 1.0
    %v1990 = vadd.f32 %v1986, 1.0
    %v1991 = vadd.f32 %v1987, 1.0
    %v1992 = vrcp.pop %v1988
    %v1993 = vmul.f32 1.0, %v1992
    %v1994 = vrcp.pop %v1989
    %v1995 = vmul.f32 1.0, %v1994
    %v1996 = vrcp.pop %v1990
    %v1997 = vmul.f32 1.0, %v1996
    %v1998 = vrcp.pop %v1991
    %v1999 = vmul.f32 1.0, %v1998
    %v2000 = vmul.f32 %v1993, 1.0614054
    %v2001 = vmul.f32 %v1995, 1.0614054
    %v2002 = vmul.f32 %v1997, 1.0614054
    %v2003 = vmul.f32 %v1999, 1.0614054
    %v2004 = vadd.f32 %v2000, -1.4531521
    %v2005 = vadd.f32 %v2001, -1.4531521
    %v2006 = vadd.f32 %v2002, -1.4531521
    %v2007 = vadd.f32 %v2003, -1.4531521
    %v2008 = vmul.f32 %v2004, %v1993
    %v2009 = vmul.f32 %v2005, %v1995
    %v2010 = vmul.f32 %v2006, %v1997
    %v2011 = vmul.f32 %v2007, %v1999
    %v2012 = vadd.f32 %v2008, 1.4214138
    %v2013 = vadd.f32 %v2009, 1.4214138
    %v2014 = vadd.f32 %v2010, 1.4214138
    %v2015 = vadd.f32 %v2011, 1.4214138
    %v2016 = vmul.f32 %v2012, %v1993
    %v2017 = vmul.f32 %v2013, %v1995
    %v2018 = vmul.f32 %v2014, %v1997
    %v2019 = vmul.f32 %v2015, %v1999
    %v2020 = vadd.f32 %v2016, -0.28449672
    %v2021 = vadd.f32 %v2017, -0.28449672
    %v2022 = vadd.f32 %v2018, -0.28449672
    %v2023 = vadd.f32 %v2019, -0.28449672
    %v2024 = vmul.f32 %v2020, %v1993
    %v2025 = vmul.f32 %v2021, %v1995
    %v2026 = vmul.f32 %v2022, %v1997
    %v2027 = vmul.f32 %v2023, %v1999
    %v2028 = vadd.f32 %v2024, 0.2548296
    %v2029 = vadd.f32 %v2025, 0.2548296
    %v2030 = vadd.f32 %v2026, 0.2548296
    %v2031 = vadd.f32 %v2027, 0.2548296
    %v2032 = vmul.f32 %v2028, %v1993
    %v2033 = vmul.f32 %v2029, %v1995
    %v2034 = vmul.f32 %v2030, %v1997
    %v2035 = vmul.f32 %v2031, %v1999
    %v2036 = vsub.f32 0.0, %v1980
    %v2037 = vsub.f32 0.0, %v1981
    %v2038 = vsub.f32 0.0, %v1982
    %v2039 = vsub.f32 0.0, %v1983
    %v2040 = vmul.f32 %v2036, %v1980
    %v2041 = vmul.f32 %v2037, %v1981
    %v2042 = vmul.f32 %v2038, %v1982
    %v2043 = vmul.f32 %v2039, %v1983
    %v2044 = vmul.f32 %v2040, 1.442695
    %v2045 = vpow.pop %v2044
    %v2046 = vmul.f32 %v2041, 1.442695
    %v2047 = vpow.pop %v2046
    %v2048 = vmul.f32 %v2042, 1.442695
    %v2049 = vpow.pop %v2048
    %v2050 = vmul.f32 %v2043, 1.442695
    %v2051 = vpow.pop %v2050
    %v2052 = vmul.f32 %v2032, %v2045
    %v2053 = vmul.f32 %v2033, %v2047
    %v2054 = vmul.f32 %v2034, %v2049
    %v2055 = vmul.f32 %v2035, %v2051
    %v2056 = vsub.f32 1.0, %v2052
    %v2057 = vsub.f32 1.0, %v2053
    %v2058 = vsub.f32 1.0, %v2054
    %v2059 = vsub.f32 1.0, %v2055
    %vm2060 = vcmp.ge.f32.partialorder %v1976, 0.0
    %vm2061 = vcmp.ge.f32.partialorder %v1977, 0.0
    %vm2062 = vcmp.ge.f32.partialorder %v1978, 0.0
    %vm2063 = vcmp.ge.f32.partialorder %v1979, 0.0
    %v2064 = vsub.f32 0.0, %v2056
    %v2065 = vsub.f32 0.0, %v2057
    %v2066 = vsub.f32 0.0, %v2058
    %v2067 = vsub.f32 0.0, %v2059
    %v2068 = vsel %vm2060, %v2056, %v2064
    %v2069 = vsel %vm2061, %v2057, %v2065
    %v2070 = vsel %vm2062, %v2058, %v2066
    %v2071 = vsel %vm2063, %v2059, %v2067
    %v2072 = vadd.f32 %v2068, 1.0
    %v2073 = vadd.f32 %v2069, 1.0
    %v2074 = vadd.f32 %v2070, 1.0
    %v2075 = vadd.f32 %v2071, 1.0
    %v2076 = vmul.f32 %v1972, %v2072
    %v2077 = vmul.f32 %v1973, %v2073
    %v2078 = vmul.f32 %v1974, %v2074
    %v2079 = vmul.f32 %v1975, %v2075
    %v2080 = vpack.c.bf16 %v2078, %v2076
    %v2081 = vpack.c.bf16 %v2079, %v2077
    %v2082 = vld [vmem:[#allocation6] sm:$0xf]
    %v2083 = vld [vmem:[#allocation6 + $0x4] sm:$0xf]
    %v2084 = vld [vmem:[#allocation6 + $0x8] sm:$0xf]
    %v2085 = vld [vmem:[#allocation6 + $0xc] sm:$0xf]
    %v2086 = vld [vmem:[#allocation6 + $0x10] sm:$0xf]
    %v2087 = vld [vmem:[#allocation6 + $0x14] sm:$0xf]
    %v2088 = vld [vmem:[#allocation6 + $0x18] sm:$0xf]
    %v2089 = vld [vmem:[#allocation6 + $0x1c] sm:$0xf]
    %v2090 = vld [vmem:[#allocation6 + $0x20] sm:$0xf]
    %v2091 = vld [vmem:[#allocation6 + $0x24] sm:$0xf]
    %v2092 = vld [vmem:[#allocation6 + $0x28] sm:$0xf]
    %v2093 = vld [vmem:[#allocation6 + $0x2c] sm:$0xf]
    %v2094 = vld [vmem:[#allocation6 + $0x30] sm:$0xf]
    %v2095 = vld [vmem:[#allocation6 + $0x34] sm:$0xf]
    %v2096 = vld [vmem:[#allocation6 + $0x38] sm:$0xf]
    %v2097 = vld [vmem:[#allocation6 + $0x3c] sm:$0xf]
    %v2098 = vld [vmem:[#allocation6 + $0x40] sm:$0xf]
    %v2099 = vld [vmem:[#allocation6 + $0x44] sm:$0xf]
    %v2100 = vld [vmem:[#allocation6 + $0x48] sm:$0xf]
    %v2101 = vld [vmem:[#allocation6 + $0x4c] sm:$0xf]
    %v2102 = vld [vmem:[#allocation6 + $0x50] sm:$0xf]
    %v2103 = vld [vmem:[#allocation6 + $0x54] sm:$0xf]
    %v2104 = vld [vmem:[#allocation6 + $0x58] sm:$0xf]
    %v2105 = vld [vmem:[#allocation6 + $0x5c] sm:$0xf]
    %v2106 = vld [vmem:[#allocation6 + $0x60] sm:$0xf]
    %v2107 = vld [vmem:[#allocation6 + $0x64] sm:$0xf]
    %v2108 = vld [vmem:[#allocation6 + $0x68] sm:$0xf]
    %v2109 = vld [vmem:[#allocation6 + $0x6c] sm:$0xf]
    %v2110 = vld [vmem:[#allocation6 + $0x70] sm:$0xf]
    %v2111 = vld [vmem:[#allocation6 + $0x74] sm:$0xf]
    %v2112 = vld [vmem:[#allocation6 + $0x78] sm:$0xf]
    %v2113 = vld [vmem:[#allocation6 + $0x7c] sm:$0xf]
    %v2114 = vld [vmem:[%s14] sm:$0x1]
    %v2116 = vlaneseq
    %v2117 = vshrl.u32 %v2116, 7
    %v2118 = vsub.s32 0, %v2117
    %v2119 = vrot.slane %v2114, %v2118
    %v2153 = vunpack.c.l.b16 %v2082
    %v2154 = vunpack.c.l.b16 %v2083
    %v2155 = vunpack.c.l.b16 %v2084
    %v2156 = vunpack.c.l.b16 %v2085
    %v2157 = vunpack.c.l.b16 %v2086
    %v2158 = vunpack.c.l.b16 %v2087
    %v2159 = vunpack.c.l.b16 %v2088
    %v2160 = vunpack.c.l.b16 %v2089
    %v2161 = vunpack.c.l.b16 %v2090
    %v2162 = vunpack.c.l.b16 %v2091
    %v2163 = vunpack.c.l.b16 %v2092
    %v2164 = vunpack.c.l.b16 %v2093
    %v2165 = vunpack.c.l.b16 %v2094
    %v2166 = vunpack.c.l.b16 %v2095
    %v2167 = vunpack.c.l.b16 %v2096
    %v2168 = vunpack.c.l.b16 %v2097
    %v2169 = vunpack.c.l.b16 %v2098
    %v2170 = vunpack.c.l.b16 %v2099
    %v2171 = vunpack.c.l.b16 %v2100
    %v2172 = vunpack.c.l.b16 %v2101
    %v2173 = vunpack.c.l.b16 %v2102
    %v2174 = vunpack.c.l.b16 %v2103
    %v2175 = vunpack.c.l.b16 %v2104
    %v2176 = vunpack.c.l.b16 %v2105
    %v2177 = vunpack.c.l.b16 %v2106
    %v2178 = vunpack.c.l.b16 %v2107
    %v2179 = vunpack.c.l.b16 %v2108
    %v2180 = vunpack.c.l.b16 %v2109
    %v2181 = vunpack.c.l.b16 %v2110
    %v2182 = vunpack.c.l.b16 %v2111
    %v2183 = vunpack.c.l.b16 %v2112
    %v2184 = vunpack.c.l.b16 %v2113
    %v2185 = vpack.c.b16 %v2154, %v2153
    %v2186 = vpack.c.b16 %v2156, %v2155
    %v2187 = vpack.c.b16 %v2158, %v2157
    %v2188 = vpack.c.b16 %v2160, %v2159
    %v2189 = vpack.c.b16 %v2162, %v2161
    %v2190 = vpack.c.b16 %v2164, %v2163
    %v2191 = vpack.c.b16 %v2166, %v2165
    %v2192 = vpack.c.b16 %v2168, %v2167
    %v2193 = vpack.c.b16 %v2170, %v2169
    %v2194 = vpack.c.b16 %v2172, %v2171
    %v2195 = vpack.c.b16 %v2174, %v2173
    %v2196 = vpack.c.b16 %v2176, %v2175
    %v2197 = vpack.c.b16 %v2178, %v2177
    %v2198 = vpack.c.b16 %v2180, %v2179
    %v2199 = vpack.c.b16 %v2182, %v2181
    %v2200 = vpack.c.b16 %v2184, %v2183
    %2217 = vmatprep.subr.bf16.mxu0 0
    %2218 = vmatpush1.bf16.msra.mxu0 %v2185
    %2219 = vmatprep.subr.bf16.mxu0 0
    %2220 = vmatpush1.bf16.msra.mxu0 %v2186
    %2221 = vmatprep.subr.bf16.mxu0 0
    %2222 = vmatpush1.bf16.msra.mxu0 %v2187
    %2223 = vmatprep.subr.bf16.mxu0 0
    %2224 = vmatpush1.bf16.msra.mxu0 %v2188
    %2225 = vmatprep.subr.bf16.mxu0 0
    %2226 = vmatpush1.bf16.msra.mxu0 %v2189
    %2227 = vmatprep.subr.bf16.mxu0 0
    %2228 = vmatpush1.bf16.msra.mxu0 %v2190
    %2229 = vmatprep.subr.bf16.mxu0 0
    %2230 = vmatpush1.bf16.msra.mxu0 %v2191
    %2231 = vmatprep.subr.bf16.mxu0 0
    %2232 = vmatpush1.bf16.msra.mxu0 %v2192
    %2233 = vmatprep.subr.bf16.mxu0 0
    %2234 = vmatpush1.bf16.msra.mxu0 %v2193
    %2235 = vmatprep.subr.bf16.mxu0 0
    %2236 = vmatpush1.bf16.msra.mxu0 %v2194
    %2237 = vmatprep.subr.bf16.mxu0 0
    %2238 = vmatpush1.bf16.msra.mxu0 %v2195
    %2239 = vmatprep.subr.bf16.mxu0 0
    %2240 = vmatpush1.bf16.msra.mxu0 %v2196
    %2241 = vmatprep.subr.bf16.mxu0 0
    %2242 = vmatpush1.bf16.msra.mxu0 %v2197
    %2243 = vmatprep.subr.bf16.mxu0 0
    %2244 = vmatpush1.bf16.msra.mxu0 %v2198
    %2245 = vmatprep.subr.bf16.mxu0 0
    %2246 = vmatpush1.bf16.msra.mxu0 %v2199
    %2247 = vmatprep.subr.bf16.mxu0 0
    %2248 = vmatpush1.bf16.msra.mxu0 %v2200
    %2249 = vmatprep.mubr.bf16.mxu0 %v2081
    %2250 = vmatmul.mubr.bf16.gmra.mrb[0].mxu0 %v2080
    %v2251 = vpop.f32.mrb[0].mxu0
    %v2252 = vadd.f32 %v2119, %v2251
    %v2253 = vpop.f32.mrb[0].mxu0
    %v2254 = vpop.f32.mrb[0].mxu0
    %v2255 = vadd.f32 %v2119, %v2254
    %v2256 = vpop.f32.mrb[0].mxu0
    %2257 = vdwg.mxu0
    %v2258 = vadd.f32 %v1772, %v2252
    %v2259 = vadd.f32 %v1773, %v2255
    %s2260 = scalar_lea.vmem %s3, 1
    %v2261 = vld [vmem:[%s2260] sm:$0x1]
    %s2262 = scalar_lea.vmem %s4, 1
    %v2263 = vld [vmem:[%s2262] sm:$0x1]
    %2264 = vadd.xlane.f32.xlu0 %v2258
    %v2265 = vpop.xlane.xlu0 %2264
    %2266 = vadd.xlane.f32.xlu0 %v2259
    %v2267 = vpop.xlane.xlu0 %2266
    %v2268 = vmul.f32 %v2265, 0.015625
    %v2269 = vmul.f32 %v2267, 0.015625
    %v2270 = vsub.f32 %v2258, %v2268
    %v2271 = vsub.f32 %v2259, %v2269
    %v2272 = vmul.f32 %v2270, %v2270
    %v2273 = vmul.f32 %v2271, %v2271
    %2274 = vadd.xlane.f32.xlu0 %v2272
    %v2275 = vpop.xlane.xlu0 %2274
    %2276 = vadd.xlane.f32.xlu0 %v2273
    %v2277 = vpop.xlane.xlu0 %2276
    %v2278 = vmul.f32 %v2268, 64.0
    %v2279 = vmul.f32 %v2269, 64.0
    %v2280 = vmul.f32 %v2278, %v2268
    %v2281 = vmul.f32 %v2279, %v2269
    %v2282 = vsub.f32 %v2275, %v2280
    %v2283 = vsub.f32 %v2277, %v2281
    %v2284 = vmul.f32 %v2282, 0.015625
    %v2285 = vmul.f32 %v2283, 0.015625
    %v2286 = vadd.f32 %v2284, 1e-06
    %v2287 = vadd.f32 %v2285, 1e-06
    %v2288 = vrsqrt.pop %v2286
    %v2289 = vrsqrt.pop %v2287
    %v2290 = vmul.f32 %v2270, %v2288
    %v2291 = vmul.f32 %v2271, %v2289
    %v2293 = vlaneseq
    %v2294 = vshrl.u32 %v2293, 7
    %v2295 = vsub.s32 0, %v2294
    %v2296 = vrot.slane %v2261, %v2295
    %v2298 = vmul.f32 %v2290, %v2296
    %v2299 = vmul.f32 %v2291, %v2296
    %v2301 = vlaneseq
    %v2302 = vshrl.u32 %v2301, 7
    %v2303 = vsub.s32 0, %v2302
    %v2304 = vrot.slane %v2263, %v2303
    %v2306 = vadd.f32 %v2298, %v2304
    %v2307 = vadd.f32 %v2299, %v2304
    %v2308 = vpack.c.bf16 %v2307, %v2306
    %s2309 = scalar_lea.vmem %s5, 384
    %v2310 = vld [vmem:[%s2309] sm:$0xff]
    %v2311 = vld [vmem:[%s2309 + $0x8] sm:$0xff]
    %v2312 = vld [vmem:[%s2309 + $0x10] sm:$0xff]
    %v2313 = vld [vmem:[%s2309 + $0x18] sm:$0xff]
    %v2314 = vld [vmem:[%s2309 + $0x20] sm:$0xff]
    %v2315 = vld [vmem:[%s2309 + $0x28] sm:$0xff]
    %v2316 = vld [vmem:[%s2309 + $0x30] sm:$0xff]
    %v2317 = vld [vmem:[%s2309 + $0x38] sm:$0xff]
    %v2318 = vld [vmem:[%s2309 + $0x40] sm:$0xff]
    %v2319 = vld [vmem:[%s2309 + $0x48] sm:$0xff]
    %v2320 = vld [vmem:[%s2309 + $0x50] sm:$0xff]
    %v2321 = vld [vmem:[%s2309 + $0x58] sm:$0xff]
    %v2322 = vld [vmem:[%s2309 + $0x60] sm:$0xff]
    %v2323 = vld [vmem:[%s2309 + $0x68] sm:$0xff]
    %v2324 = vld [vmem:[%s2309 + $0x70] sm:$0xff]
    %v2325 = vld [vmem:[%s2309 + $0x78] sm:$0xff]
    %v2326 = vld [vmem:[%s2309 + $0x80] sm:$0xff]
    %v2327 = vld [vmem:[%s2309 + $0x88] sm:$0xff]
    %v2328 = vld [vmem:[%s2309 + $0x90] sm:$0xff]
    %v2329 = vld [vmem:[%s2309 + $0x98] sm:$0xff]
    %v2330 = vld [vmem:[%s2309 + $0xa0] sm:$0xff]
    %v2331 = vld [vmem:[%s2309 + $0xa8] sm:$0xff]
    %v2332 = vld [vmem:[%s2309 + $0xb0] sm:$0xff]
    %v2333 = vld [vmem:[%s2309 + $0xb8] sm:$0xff]
    %v2334 = vld [vmem:[%s2309 + $0xc0] sm:$0xff]
    %v2335 = vld [vmem:[%s2309 + $0xc8] sm:$0xff]
    %v2336 = vld [vmem:[%s2309 + $0xd0] sm:$0xff]
    %v2337 = vld [vmem:[%s2309 + $0xd8] sm:$0xff]
    %v2338 = vld [vmem:[%s2309 + $0xe0] sm:$0xff]
    %v2339 = vld [vmem:[%s2309 + $0xe8] sm:$0xff]
    %v2340 = vld [vmem:[%s2309 + $0xf0] sm:$0xff]
    %v2341 = vld [vmem:[%s2309 + $0xf8] sm:$0xff]
    %v2342 = vld [vmem:[%s2309 + $0x100] sm:$0xff]
    %v2343 = vld [vmem:[%s2309 + $0x108] sm:$0xff]
    %v2344 = vld [vmem:[%s2309 + $0x110] sm:$0xff]
    %v2345 = vld [vmem:[%s2309 + $0x118] sm:$0xff]
    %v2346 = vld [vmem:[%s2309 + $0x120] sm:$0xff]
    %v2347 = vld [vmem:[%s2309 + $0x128] sm:$0xff]
    %v2348 = vld [vmem:[%s2309 + $0x130] sm:$0xff]
    %v2349 = vld [vmem:[%s2309 + $0x138] sm:$0xff]
    %v2350 = vld [vmem:[%s2309 + $0x140] sm:$0xff]
    %v2351 = vld [vmem:[%s2309 + $0x148] sm:$0xff]
    %v2352 = vld [vmem:[%s2309 + $0x150] sm:$0xff]
    %v2353 = vld [vmem:[%s2309 + $0x158] sm:$0xff]
    %v2354 = vld [vmem:[%s2309 + $0x160] sm:$0xff]
    %v2355 = vld [vmem:[%s2309 + $0x168] sm:$0xff]
    %v2356 = vld [vmem:[%s2309 + $0x170] sm:$0xff]
    %v2357 = vld [vmem:[%s2309 + $0x178] sm:$0xff]
    %s2358 = scalar_lea.vmem %s6, 6
    %v2359 = vld [vmem:[%s2358] sm:$0x3f]
    %v2361 = vlaneseq
    %v2362 = vshrl.u32 %v2361, 7
    %v2363 = vsub.s32 0, %v2362
    %v2364 = vrot.slane %v2359, %v2363
    %v2365 = vlaneseq
    %v2366 = vshrl.u32 %v2365, 7
    %v2367 = vsub.s32 1, %v2366
    %v2368 = vrot.slane %v2359, %v2367
    %v2369 = vlaneseq
    %v2370 = vshrl.u32 %v2369, 7
    %v2371 = vsub.s32 2, %v2370
    %v2372 = vrot.slane %v2359, %v2371
    %v2373 = vlaneseq
    %v2374 = vshrl.u32 %v2373, 7
    %v2375 = vsub.s32 3, %v2374
    %v2376 = vrot.slane %v2359, %v2375
    %v2377 = vlaneseq
    %v2378 = vshrl.u32 %v2377, 7
    %v2379 = vsub.s32 4, %v2378
    %v2380 = vrot.slane %v2359, %v2379
    %v2381 = vlaneseq
    %v2382 = vshrl.u32 %v2381, 7
    %v2383 = vsub.s32 5, %v2382
    %v2384 = vrot.slane %v2359, %v2383
    %v2439 = vunpack.c.l.b16 %v2310
    %v2440 = vunpack.c.h.b16 %v2310
    %v2441 = vunpack.c.l.b16 %v2311
    %v2442 = vunpack.c.h.b16 %v2311
    %v2443 = vunpack.c.l.b16 %v2312
    %v2444 = vunpack.c.h.b16 %v2312
    %v2445 = vunpack.c.l.b16 %v2313
    %v2446 = vunpack.c.h.b16 %v2313
    %v2447 = vunpack.c.l.b16 %v2314
    %v2448 = vunpack.c.h.b16 %v2314
    %v2449 = vunpack.c.l.b16 %v2315
    %v2450 = vunpack.c.h.b16 %v2315
    %v2451 = vunpack.c.l.b16 %v2316
    %v2452 = vunpack.c.h.b16 %v2316
    %v2453 = vunpack.c.l.b16 %v2317
    %v2454 = vunpack.c.h.b16 %v2317
    %v2455 = vunpack.c.l.b16 %v2318
    %v2456 = vunpack.c.h.b16 %v2318
    %v2457 = vunpack.c.l.b16 %v2319
    %v2458 = vunpack.c.h.b16 %v2319
    %v2459 = vunpack.c.l.b16 %v2320
    %v2460 = vunpack.c.h.b16 %v2320
    %v2461 = vunpack.c.l.b16 %v2321
    %v2462 = vunpack.c.h.b16 %v2321
    %v2463 = vunpack.c.l.b16 %v2322
    %v2464 = vunpack.c.h.b16 %v2322
    %v2465 = vunpack.c.l.b16 %v2323
    %v2466 = vunpack.c.h.b16 %v2323
    %v2467 = vunpack.c.l.b16 %v2324
    %v2468 = vunpack.c.h.b16 %v2324
    %v2469 = vunpack.c.l.b16 %v2325
    %v2470 = vunpack.c.h.b16 %v2325
    %v2471 = vunpack.c.l.b16 %v2326
    %v2472 = vunpack.c.h.b16 %v2326
    %v2473 = vunpack.c.l.b16 %v2327
    %v2474 = vunpack.c.h.b16 %v2327
    %v2475 = vunpack.c.l.b16 %v2328
    %v2476 = vunpack.c.h.b16 %v2328
    %v2477 = vunpack.c.l.b16 %v2329
    %v2478 = vunpack.c.h.b16 %v2329
    %v2479 = vunpack.c.l.b16 %v2330
    %v2480 = vunpack.c.h.b16 %v2330
    %v2481 = vunpack.c.l.b16 %v2331
    %v2482 = vunpack.c.h.b16 %v2331
    %v2483 = vunpack.c.l.b16 %v2332
    %v2484 = vunpack.c.h.b16 %v2332
    %v2485 = vunpack.c.l.b16 %v2333
    %v2486 = vunpack.c.h.b16 %v2333
    %v2487 = vunpack.c.l.b16 %v2334
    %v2488 = vunpack.c.h.b16 %v2334
    %v2489 = vunpack.c.l.b16 %v2335
    %v2490 = vunpack.c.h.b16 %v2335
    %v2491 = vunpack.c.l.b16 %v2336
    %v2492 = vunpack.c.h.b16 %v2336
    %v2493 = vunpack.c.l.b16 %v2337
    %v2494 = vunpack.c.h.b16 %v2337
    %v2495 = vunpack.c.l.b16 %v2338
    %v2496 = vunpack.c.h.b16 %v2338
    %v2497 = vunpack.c.l.b16 %v2339
    %v2498 = vunpack.c.h.b16 %v2339
    %v2499 = vunpack.c.l.b16 %v2340
    %v2500 = vunpack.c.h.b16 %v2340
    %v2501 = vunpack.c.l.b16 %v2341
    %v2502 = vunpack.c.h.b16 %v2341
    %v2503 = vunpack.c.l.b16 %v2342
    %v2504 = vunpack.c.h.b16 %v2342
    %v2505 = vunpack.c.l.b16 %v2343
    %v2506 = vunpack.c.h.b16 %v2343
    %v2507 = vunpack.c.l.b16 %v2344
    %v2508 = vunpack.c.h.b16 %v2344
    %v2509 = vunpack.c.l.b16 %v2345
    %v2510 = vunpack.c.h.b16 %v2345
    %v2511 = vunpack.c.l.b16 %v2346
    %v2512 = vunpack.c.h.b16 %v2346
    %v2513 = vunpack.c.l.b16 %v2347
    %v2514 = vunpack.c.h.b16 %v2347
    %v2515 = vunpack.c.l.b16 %v2348
    %v2516 = vunpack.c.h.b16 %v2348
    %v2517 = vunpack.c.l.b16 %v2349
    %v2518 = vunpack.c.h.b16 %v2349
    %v2519 = vunpack.c.l.b16 %v2350
    %v2520 = vunpack.c.h.b16 %v2350
    %v2521 = vunpack.c.l.b16 %v2351
    %v2522 = vunpack.c.h.b16 %v2351
    %v2523 = vunpack.c.l.b16 %v2352
    %v2524 = vunpack.c.h.b16 %v2352
    %v2525 = vunpack.c.l.b16 %v2353
    %v2526 = vunpack.c.h.b16 %v2353
    %v2527 = vunpack.c.l.b16 %v2354
    %v2528 = vunpack.c.h.b16 %v2354
    %v2529 = vunpack.c.l.b16 %v2355
    %v2530 = vunpack.c.h.b16 %v2355
    %v2531 = vunpack.c.l.b16 %v2356
    %v2532 = vunpack.c.h.b16 %v2356
    %v2533 = vunpack.c.l.b16 %v2357
    %v2534 = vunpack.c.h.b16 %v2357
    %v2535 = vpack.c.b16 %v2445, %v2439
    %v2536 = vpack.c.b16 %v2446, %v2440
    %v2537 = vpack.c.b16 %v2447, %v2441
    %v2538 = vpack.c.b16 %v2448, %v2442
    %v2539 = vpack.c.b16 %v2449, %v2443
    %v2540 = vpack.c.b16 %v2450, %v2444
    %v2541 = vpack.c.b16 %v2457, %v2451
    %v2542 = vpack.c.b16 %v2458, %v2452
    %v2543 = vpack.c.b16 %v2459, %v2453
    %v2544 = vpack.c.b16 %v2460, %v2454
    %v2545 = vpack.c.b16 %v2461, %v2455
    %v2546 = vpack.c.b16 %v2462, %v2456
    %v2547 = vpack.c.b16 %v2469, %v2463
    %v2548 = vpack.c.b16 %v2470, %v2464
    %v2549 = vpack.c.b16 %v2471, %v2465
    %v2550 = vpack.c.b16 %v2472, %v2466
    %v2551 = vpack.c.b16 %v2473, %v2467
    %v2552 = vpack.c.b16 %v2474, %v2468
    %v2553 = vpack.c.b16 %v2481, %v2475
    %v2554 = vpack.c.b16 %v2482, %v2476
    %v2555 = vpack.c.b16 %v2483, %v2477
    %v2556 = vpack.c.b16 %v2484, %v2478
    %v2557 = vpack.c.b16 %v2485, %v2479
    %v2558 = vpack.c.b16 %v2486, %v2480
    %v2559 = vpack.c.b16 %v2493, %v2487
    %v2560 = vpack.c.b16 %v2494, %v2488
    %v2561 = vpack.c.b16 %v2495, %v2489
    %v2562 = vpack.c.b16 %v2496, %v2490
    %v2563 = vpack.c.b16 %v2497, %v2491
    %v2564 = vpack.c.b16 %v2498, %v2492
    %v2565 = vpack.c.b16 %v2505, %v2499
    %v2566 = vpack.c.b16 %v2506, %v2500
    %v2567 = vpack.c.b16 %v2507, %v2501
    %v2568 = vpack.c.b16 %v2508, %v2502
    %v2569 = vpack.c.b16 %v2509, %v2503
    %v2570 = vpack.c.b16 %v2510, %v2504
    %v2571 = vpack.c.b16 %v2517, %v2511
    %v2572 = vpack.c.b16 %v2518, %v2512
    %v2573 = vpack.c.b16 %v2519, %v2513
    %v2574 = vpack.c.b16 %v2520, %v2514
    %v2575 = vpack.c.b16 %v2521, %v2515
    %v2576 = vpack.c.b16 %v2522, %v2516
    %v2577 = vpack.c.b16 %v2529, %v2523
    %v2578 = vpack.c.b16 %v2530, %v2524
    %v2579 = vpack.c.b16 %v2531, %v2525
    %v2580 = vpack.c.b16 %v2532, %v2526
    %v2581 = vpack.c.b16 %v2533, %v2527
    %v2582 = vpack.c.b16 %v2534, %v2528
    %2631 = vmatprep.subr.bf16.mxu0 %v2536
    %2632 = vmatpush1.bf16.msra.mxu0 %v2535
    %2633 = vmatprep.subr.bf16.mxu0 %v2542
    %2634 = vmatpush1.bf16.msra.mxu0 %v2541
    %2635 = vmatprep.subr.bf16.mxu0 %v2548
    %2636 = vmatpush1.bf16.msra.mxu0 %v2547
    %2637 = vmatprep.subr.bf16.mxu0 %v2554
    %2638 = vmatpush1.bf16.msra.mxu0 %v2553
    %2639 = vmatprep.subr.bf16.mxu0 %v2560
    %2640 = vmatpush1.bf16.msra.mxu0 %v2559
    %2641 = vmatprep.subr.bf16.mxu0 %v2566
    %2642 = vmatpush1.bf16.msra.mxu0 %v2565
    %2643 = vmatprep.subr.bf16.mxu0 %v2572
    %2644 = vmatpush1.bf16.msra.mxu0 %v2571
    %2645 = vmatprep.subr.bf16.mxu0 %v2578
    %2646 = vmatpush1.bf16.msra.mxu0 %v2577
    %2647 = vmatprep.subr.bf16.mxu0 0
    %2648 = vmatpush1.bf16.msra.mxu0 0
    %2649 = vmatprep.subr.bf16.mxu0 0
    %2650 = vmatpush1.bf16.msra.mxu0 0
    %2651 = vmatprep.subr.bf16.mxu0 0
    %2652 = vmatpush1.bf16.msra.mxu0 0
    %2653 = vmatprep.subr.bf16.mxu0 0
    %2654 = vmatpush1.bf16.msra.mxu0 0
    %2655 = vmatprep.subr.bf16.mxu0 0
    %2656 = vmatpush1.bf16.msra.mxu0 0
    %2657 = vmatprep.subr.bf16.mxu0 0
    %2658 = vmatpush1.bf16.msra.mxu0 0
    %2659 = vmatprep.subr.bf16.mxu0 0
    %2660 = vmatpush1.bf16.msra.mxu0 0
    %2661 = vmatprep.subr.bf16.mxu0 0
    %2662 = vmatpush1.bf16.msra.mxu0 0
    %2663 = vmatprep.mubr.bf16.mxu0 0
    %2664 = vmatmul.mubr.bf16.gmra.mrb[0].mxu0 %v2308
    %v2665 = vpop.f32.mrb[0].mxu0
    %v2666 = vadd.f32 %v2364, %v2665
    %v2667 = vpop.f32.mrb[0].mxu0
    %v2668 = vadd.f32 %v2368, %v2667
    %v2669 = vpop.f32.mrb[0].mxu0
    %v2670 = vadd.f32 %v2364, %v2669
    %v2671 = vpop.f32.mrb[0].mxu0
    %v2672 = vadd.f32 %v2368, %v2671
    %2673 = vdwg.mxu0
    %2674 = vmatprep.subr.bf16.mxu0 %v2538
    %2675 = vmatpush1.bf16.msra.mxu0 %v2537
    %2676 = vmatprep.subr.bf16.mxu0 %v2544
    %2677 = vmatpush1.bf16.msra.mxu0 %v2543
    %2678 = vmatprep.subr.bf16.mxu0 %v2550
    %2679 = vmatpush1.bf16.msra.mxu0 %v2549
    %2680 = vmatprep.subr.bf16.mxu0 %v2556
    %2681 = vmatpush1.bf16.msra.mxu0 %v2555
    %2682 = vmatprep.subr.bf16.mxu0 %v2562
    %2683 = vmatpush1.bf16.msra.mxu0 %v2561
    %2684 = vmatprep.subr.bf16.mxu0 %v2568
    %2685 = vmatpush1.bf16.msra.mxu0 %v2567
    %2686 = vmatprep.subr.bf16.mxu0 %v2574
    %2687 = vmatpush1.bf16.msra.mxu0 %v2573
    %2688 = vmatprep.subr.bf16.mxu0 %v2580
    %2689 = vmatpush1.bf16.msra.mxu0 %v2579
    %2690 = vmatprep.subr.bf16.mxu0 0
    %2691 = vmatpush1.bf16.msra.mxu0 0
    %2692 = vmatprep.subr.bf16.mxu0 0
    %2693 = vmatpush1.bf16.msra.mxu0 0
    %2694 = vmatprep.subr.bf16.mxu0 0
    %2695 = vmatpush1.bf16.msra.mxu0 0
    %2696 = vmatprep.subr.bf16.mxu0 0
    %2697 = vmatpush1.bf16.msra.mxu0 0
    %2698 = vmatprep.subr.bf16.mxu0 0
    %2699 = vmatpush1.bf16.msra.mxu0 0
    %2700 = vmatprep.subr.bf16.mxu0 0
    %2701 = vmatpush1.bf16.msra.mxu0 0
    %2702 = vmatprep.subr.bf16.mxu0 0
    %2703 = vmatpush1.bf16.msra.mxu0 0
    %2704 = vmatprep.subr.bf16.mxu0 0
    %2705 = vmatpush1.bf16.msra.mxu0 0
    %2706 = vmatprep.mubr.bf16.mxu0 0
    %2707 = vmatmul.mubr.bf16.gmra.mrb[0].mxu0 %v2308
    %v2708 = vpop.f32.mrb[0].mxu0
    %v2709 = vadd.f32 %v2372, %v2708
    %v2710 = vpop.f32.mrb[0].mxu0
    %v2711 = vadd.f32 %v2376, %v2710
    %v2712 = vpop.f32.mrb[0].mxu0
    %v2713 = vadd.f32 %v2372, %v2712
    %v2714 = vpop.f32.mrb[0].mxu0
    %v2715 = vadd.f32 %v2376, %v2714
    %2716 = vdwg.mxu0
    %2717 = vmatprep.subr.bf16.mxu0 %v2540
    %2718 = vmatpush1.bf16.msra.mxu0 %v2539
    %2719 = vmatprep.subr.bf16.mxu0 %v2546
    %2720 = vmatpush1.bf16.msra.mxu0 %v2545
    %2721 = vmatprep.subr.bf16.mxu0 %v2552
    %2722 = vmatpush1.bf16.msra.mxu0 %v2551
    %2723 = vmatprep.subr.bf16.mxu0 %v2558
    %2724 = vmatpush1.bf16.msra.mxu0 %v2557
    %2725 = vmatprep.subr.bf16.mxu0 %v2564
    %2726 = vmatpush1.bf16.msra.mxu0 %v2563
    %2727 = vmatprep.subr.bf16.mxu0 %v2570
    %2728 = vmatpush1.bf16.msra.mxu0 %v2569
    %2729 = vmatprep.subr.bf16.mxu0 %v2576
    %2730 = vmatpush1.bf16.msra.mxu0 %v2575
    %2731 = vmatprep.subr.bf16.mxu0 %v2582
    %2732 = vmatpush1.bf16.msra.mxu0 %v2581
    %2733 = vmatprep.subr.bf16.mxu0 0
    %2734 = vmatpush1.bf16.msra.mxu0 0
    %2735 = vmatprep.subr.bf16.mxu0 0
    %2736 = vmatpush1.bf16.msra.mxu0 0
    %2737 = vmatprep.subr.bf16.mxu0 0
    %2738 = vmatpush1.bf16.msra.mxu0 0
    %2739 = vmatprep.subr.bf16.mxu0 0
    %2740 = vmatpush1.bf16.msra.mxu0 0
    %2741 = vmatprep.subr.bf16.mxu0 0
    %2742 = vmatpush1.bf16.msra.mxu0 0
    %2743 = vmatprep.subr.bf16.mxu0 0
    %2744 = vmatpush1.bf16.msra.mxu0 0
    %2745 = vmatprep.subr.bf16.mxu0 0
    %2746 = vmatpush1.bf16.msra.mxu0 0
    %2747 = vmatprep.subr.bf16.mxu0 0
    %2748 = vmatpush1.bf16.msra.mxu0 0
    %2749 = vmatprep.mubr.bf16.mxu0 0
    %2750 = vmatmul.mubr.bf16.gmra.mrb[0].mxu0 %v2308
    %v2751 = vpop.f32.mrb[0].mxu0
    %v2752 = vadd.f32 %v2380, %v2751
    %v2753 = vpop.f32.mrb[0].mxu0
    %v2754 = vadd.f32 %v2384, %v2753
    %v2755 = vpop.f32.mrb[0].mxu0
    %v2756 = vadd.f32 %v2380, %v2755
    %v2757 = vpop.f32.mrb[0].mxu0
    %v2758 = vadd.f32 %v2384, %v2757
    %2759 = vdwg.mxu0
    %v2760 = vpack.c.bf16 %v2666, %v2666
    %v2761 = vpack.c.bf16 %v2670, %v2670
    %v2762 = vpack.c.bf16 %v2709, %v2709
    %v2763 = vpack.c.bf16 %v2713, %v2713
    %v2764 = vpack.c.bf16 %v2752, %v2752
    %v2765 = vpack.c.bf16 %v2756, %v2756
    %2766 = vmatprep.subr.bf16.mxu0 0
    %2767 = vmatpush1.bf16.xpose.msra.mxu0 %v2762
    %2768 = vmatprep.subr.bf16.mxu0 0
    %2769 = vmatpush1.bf16.xpose.msra.mxu0 0
    %2770 = vmatprep.subr.bf16.mxu0 0
    %2771 = vmatpush1.bf16.xpose.msra.mxu0 0
    %2772 = vmatprep.subr.bf16.mxu0 0
    %2773 = vmatpush1.bf16.xpose.msra.mxu0 0
    %2774 = vmatprep.subr.bf16.mxu0 0
    %2775 = vmatpush1.bf16.xpose.msra.mxu0 0
    %2776 = vmatprep.subr.bf16.mxu0 0
    %2777 = vmatpush1.bf16.xpose.msra.mxu0 0
    %2778 = vmatprep.subr.bf16.mxu0 0
    %2779 = vmatpush1.bf16.xpose.msra.mxu0 0
    %2780 = vmatprep.subr.bf16.mxu0 0
    %2781 = vmatpush1.bf16.xpose.msra.mxu0 0
    %2782 = vmatprep.subr.bf16.mxu0 0
    %2783 = vmatpush1.bf16.xpose.msra.mxu0 0
    %2784 = vmatprep.subr.bf16.mxu0 0
    %2785 = vmatpush1.bf16.xpose.msra.mxu0 0
    %2786 = vmatprep.subr.bf16.mxu0 0
    %2787 = vmatpush1.bf16.xpose.msra.mxu0 0
    %2788 = vmatprep.subr.bf16.mxu0 0
    %2789 = vmatpush1.bf16.xpose.msra.mxu0 0
    %2790 = vmatprep.subr.bf16.mxu0 0
    %2791 = vmatpush1.bf16.xpose.msra.mxu0 0
    %2792 = vmatprep.subr.bf16.mxu0 0
    %2793 = vmatpush1.bf16.xpose.msra.mxu0 0
    %2794 = vmatprep.subr.bf16.mxu0 0
    %2795 = vmatpush1.bf16.xpose.msra.mxu0 0
    %2796 = vmatprep.subr.bf16.mxu0 0
    %2797 = vmatpush1.bf16.xpose.msra.mxu0 0
    %2798 = vmatprep.mubr.bf16.mxu0 0
    %2799 = vmatmul.mubr.bf16.gmra.mrb[0].mxu0 %v2760
    %v2800 = vpop.f32.mrb[0].mxu0
    %v2801 = vadd.f32 %v647, %v2800
    %v2802 = vpop.f32.mrb[0].mxu0
    %v2803 = vpop.f32.mrb[0].mxu0
    %v2804 = vpop.f32.mrb[0].mxu0
    %2805 = vdwg.mxu0
    %2806 = vmatprep.subr.bf16.mxu0 0
    %2807 = vmatpush1.bf16.xpose.msra.mxu0 %v2763
    %2808 = vmatprep.subr.bf16.mxu0 0
    %2809 = vmatpush1.bf16.xpose.msra.mxu0 0
    %2810 = vmatprep.subr.bf16.mxu0 0
    %2811 = vmatpush1.bf16.xpose.msra.mxu0 0
    %2812 = vmatprep.subr.bf16.mxu0 0
    %2813 = vmatpush1.bf16.xpose.msra.mxu0 0
    %2814 = vmatprep.subr.bf16.mxu0 0
    %2815 = vmatpush1.bf16.xpose.msra.mxu0 0
    %2816 = vmatprep.subr.bf16.mxu0 0
    %2817 = vmatpush1.bf16.xpose.msra.mxu0 0
    %2818 = vmatprep.subr.bf16.mxu0 0
    %2819 = vmatpush1.bf16.xpose.msra.mxu0 0
    %2820 = vmatprep.subr.bf16.mxu0 0
    %2821 = vmatpush1.bf16.xpose.msra.mxu0 0
    %2822 = vmatprep.subr.bf16.mxu0 0
    %2823 = vmatpush1.bf16.xpose.msra.mxu0 0
    %2824 = vmatprep.subr.bf16.mxu0 0
    %2825 = vmatpush1.bf16.xpose.msra.mxu0 0
    %2826 = vmatprep.subr.bf16.mxu0 0
    %2827 = vmatpush1.bf16.xpose.msra.mxu0 0
    %2828 = vmatprep.subr.bf16.mxu0 0
    %2829 = vmatpush1.bf16.xpose.msra.mxu0 0
    %2830 = vmatprep.subr.bf16.mxu0 0
    %2831 = vmatpush1.bf16.xpose.msra.mxu0 0
    %2832 = vmatprep.subr.bf16.mxu0 0
    %2833 = vmatpush1.bf16.xpose.msra.mxu0 0
    %2834 = vmatprep.subr.bf16.mxu0 0
    %2835 = vmatpush1.bf16.xpose.msra.mxu0 0
    %2836 = vmatprep.subr.bf16.mxu0 0
    %2837 = vmatpush1.bf16.xpose.msra.mxu0 0
    %2838 = vmatprep.mubr.bf16.mxu0 0
    %2839 = vmatmul.mubr.bf16.gmra.mrb[0].mxu0 %v2761
    %v2840 = vpop.f32.mrb[0].mxu0
    %v2841 = vadd.f32 %v647, %v2840
    %v2842 = vpop.f32.mrb[0].mxu0
    %v2843 = vpop.f32.mrb[0].mxu0
    %v2844 = vpop.f32.mrb[0].mxu0
    %2845 = vdwg.mxu0
    %v2846 = vsel %vm1230, %v2801, -inf
    %2847 = vmax.xlane.f32.xlu0 %v2846
    %v2848 = vpop.xlane.xlu0 %2847
    %v2849 = vsel %vm1230, %v2841, -inf
    %2850 = vmax.xlane.f32.xlu0 %v2849
    %v2851 = vpop.xlane.xlu0 %2850
    %v2852 = vsub.f32 %v2801, %v2848
    %v2853 = vsub.f32 %v2841, %v2851
    %v2854 = vmul.f32 %v2852, 1.442695
    %v2855 = vpow.pop %v2854
    %v2856 = vmul.f32 %v2853, 1.442695
    %v2857 = vpow.pop %v2856
    %v2858 = vsel %vm1230, %v2855, 0.0
    %2859 = vadd.xlane.f32.xlu0 %v2858
    %v2860 = vpop.xlane.xlu0 %2859
    %v2861 = vsel %vm1230, %v2857, 0.0
    %2862 = vadd.xlane.f32.xlu0 %v2861
    %v2863 = vpop.xlane.xlu0 %2862
    %v2864 = vrcp.pop %v2860
    %v2865 = vrcp.pop %v2863
    %v2866 = vmul.f32 %v2855, %v2864
    %v2867 = vmul.f32 %v2857, %v2865
    %v2868 = vpack.c.bf16 %v2866, %v2866
    %v2869 = vpack.c.bf16 %v2867, %v2867
    %v2871 = vsel %vm1230, %v2868, 0
    %v2874 = vsel %vm1258, %v2764, 0
    %2876 = vmatprep.subr.bf16.mxu0 0
    %2877 = vmatpush1.bf16.msra.mxu0 %v2874
    %2878 = vmatprep.subr.bf16.mxu0 0
    %2879 = vmatpush1.bf16.msra.mxu0 0
    %2880 = vmatprep.subr.bf16.mxu0 0
    %2881 = vmatpush1.bf16.msra.mxu0 0
    %2882 = vmatprep.subr.bf16.mxu0 0
    %2883 = vmatpush1.bf16.msra.mxu0 0
    %2884 = vmatprep.subr.bf16.mxu0 0
    %2885 = vmatpush1.bf16.msra.mxu0 0
    %2886 = vmatprep.subr.bf16.mxu0 0
    %2887 = vmatpush1.bf16.msra.mxu0 0
    %2888 = vmatprep.subr.bf16.mxu0 0
    %2889 = vmatpush1.bf16.msra.mxu0 0
    %2890 = vmatprep.subr.bf16.mxu0 0
    %2891 = vmatpush1.bf16.msra.mxu0 0
    %2892 = vmatprep.subr.bf16.mxu0 0
    %2893 = vmatpush1.bf16.msra.mxu0 0
    %2894 = vmatprep.subr.bf16.mxu0 0
    %2895 = vmatpush1.bf16.msra.mxu0 0
    %2896 = vmatprep.subr.bf16.mxu0 0
    %2897 = vmatpush1.bf16.msra.mxu0 0
    %2898 = vmatprep.subr.bf16.mxu0 0
    %2899 = vmatpush1.bf16.msra.mxu0 0
    %2900 = vmatprep.subr.bf16.mxu0 0
    %2901 = vmatpush1.bf16.msra.mxu0 0
    %2902 = vmatprep.subr.bf16.mxu0 0
    %2903 = vmatpush1.bf16.msra.mxu0 0
    %2904 = vmatprep.subr.bf16.mxu0 0
    %2905 = vmatpush1.bf16.msra.mxu0 0
    %2906 = vmatprep.subr.bf16.mxu0 0
    %2907 = vmatpush1.bf16.msra.mxu0 0
    %2908 = vmatprep.mubr.bf16.mxu0 0
    %2909 = vmatmul.mubr.bf16.gmra.mrb[0].mxu0 %v2871
    %v2910 = vpop.f32.mrb[0].mxu0
    %v2911 = vadd.f32 0.0, %v2910
    %v2912 = vpop.f32.mrb[0].mxu0
    %v2913 = vpop.f32.mrb[0].mxu0
    %v2914 = vpop.f32.mrb[0].mxu0
    %2915 = vdwg.mxu0
    %v2917 = vsel %vm1230, %v2869, 0
    %v2920 = vsel %vm1258, %v2765, 0
    %2922 = vmatprep.subr.bf16.mxu0 0
    %2923 = vmatpush1.bf16.msra.mxu0 %v2920
    %2924 = vmatprep.subr.bf16.mxu0 0
    %2925 = vmatpush1.bf16.msra.mxu0 0
    %2926 = vmatprep.subr.bf16.mxu0 0
    %2927 = vmatpush1.bf16.msra.mxu0 0
    %2928 = vmatprep.subr.bf16.mxu0 0
    %2929 = vmatpush1.bf16.msra.mxu0 0
    %2930 = vmatprep.subr.bf16.mxu0 0
    %2931 = vmatpush1.bf16.msra.mxu0 0
    %2932 = vmatprep.subr.bf16.mxu0 0
    %2933 = vmatpush1.bf16.msra.mxu0 0
    %2934 = vmatprep.subr.bf16.mxu0 0
    %2935 = vmatpush1.bf16.msra.mxu0 0
    %2936 = vmatprep.subr.bf16.mxu0 0
    %2937 = vmatpush1.bf16.msra.mxu0 0
    %2938 = vmatprep.subr.bf16.mxu0 0
    %2939 = vmatpush1.bf16.msra.mxu0 0
    %2940 = vmatprep.subr.bf16.mxu0 0
    %2941 = vmatpush1.bf16.msra.mxu0 0
    %2942 = vmatprep.subr.bf16.mxu0 0
    %2943 = vmatpush1.bf16.msra.mxu0 0
    %2944 = vmatprep.subr.bf16.mxu0 0
    %2945 = vmatpush1.bf16.msra.mxu0 0
    %2946 = vmatprep.subr.bf16.mxu0 0
    %2947 = vmatpush1.bf16.msra.mxu0 0
    %2948 = vmatprep.subr.bf16.mxu0 0
    %2949 = vmatpush1.bf16.msra.mxu0 0
    %2950 = vmatprep.subr.bf16.mxu0 0
    %2951 = vmatpush1.bf16.msra.mxu0 0
    %2952 = vmatprep.subr.bf16.mxu0 0
    %2953 = vmatpush1.bf16.msra.mxu0 0
    %2954 = vmatprep.mubr.bf16.mxu0 0
    %2955 = vmatmul.mubr.bf16.gmra.mrb[0].mxu0 %v2917
    %v2956 = vpop.f32.mrb[0].mxu0
    %v2957 = vadd.f32 0.0, %v2956
    %v2958 = vpop.f32.mrb[0].mxu0
    %v2959 = vpop.f32.mrb[0].mxu0
    %v2960 = vpop.f32.mrb[0].mxu0
    %2961 = vdwg.mxu0
    %v2962 = vpack.c.bf16 %v2957, %v2911
    %s2963 = scalar_lea.vmem [#allocation2], 128
    %v2964 = vld [vmem:[%s2963] sm:$0xf]
    %v2965 = vld [vmem:[%s2963 + $0x4] sm:$0xf]
    %v2966 = vld [vmem:[%s2963 + $0x8] sm:$0xf]
    %v2967 = vld [vmem:[%s2963 + $0xc] sm:$0xf]
    %v2968 = vld [vmem:[%s2963 + $0x10] sm:$0xf]
    %v2969 = vld [vmem:[%s2963 + $0x14] sm:$0xf]
    %v2970 = vld [vmem:[%s2963 + $0x18] sm:$0xf]
    %v2971 = vld [vmem:[%s2963 + $0x1c] sm:$0xf]
    %v2972 = vld [vmem:[%s2963 + $0x20] sm:$0xf]
    %v2973 = vld [vmem:[%s2963 + $0x24] sm:$0xf]
    %v2974 = vld [vmem:[%s2963 + $0x28] sm:$0xf]
    %v2975 = vld [vmem:[%s2963 + $0x2c] sm:$0xf]
    %v2976 = vld [vmem:[%s2963 + $0x30] sm:$0xf]
    %v2977 = vld [vmem:[%s2963 + $0x34] sm:$0xf]
    %v2978 = vld [vmem:[%s2963 + $0x38] sm:$0xf]
    %v2979 = vld [vmem:[%s2963 + $0x3c] sm:$0xf]
    %v2980 = vpack.c.bf16 %v2668, %v2668
    %v2981 = vpack.c.bf16 %v2672, %v2672
    %v2982 = vpack.c.bf16 %v2711, %v2711
    %v2983 = vpack.c.bf16 %v2715, %v2715
    %v2984 = vpack.c.bf16 %v2754, %v2754
    %v2985 = vpack.c.bf16 %v2758, %v2758
    %2986 = vmatprep.subr.bf16.mxu0 0
    %2987 = vmatpush1.bf16.xpose.msra.mxu0 %v2982
    %2988 = vmatprep.subr.bf16.mxu0 0
    %2989 = vmatpush1.bf16.xpose.msra.mxu0 0
    %2990 = vmatprep.subr.bf16.mxu0 0
    %2991 = vmatpush1.bf16.xpose.msra.mxu0 0
    %2992 = vmatprep.subr.bf16.mxu0 0
    %2993 = vmatpush1.bf16.xpose.msra.mxu0 0
    %2994 = vmatprep.subr.bf16.mxu0 0
    %2995 = vmatpush1.bf16.xpose.msra.mxu0 0
    %2996 = vmatprep.subr.bf16.mxu0 0
    %2997 = vmatpush1.bf16.xpose.msra.mxu0 0
    %2998 = vmatprep.subr.bf16.mxu0 0
    %2999 = vmatpush1.bf16.xpose.msra.mxu0 0
    %3000 = vmatprep.subr.bf16.mxu0 0
    %3001 = vmatpush1.bf16.xpose.msra.mxu0 0
    %3002 = vmatprep.subr.bf16.mxu0 0
    %3003 = vmatpush1.bf16.xpose.msra.mxu0 0
    %3004 = vmatprep.subr.bf16.mxu0 0
    %3005 = vmatpush1.bf16.xpose.msra.mxu0 0
    %3006 = vmatprep.subr.bf16.mxu0 0
    %3007 = vmatpush1.bf16.xpose.msra.mxu0 0
    %3008 = vmatprep.subr.bf16.mxu0 0
    %3009 = vmatpush1.bf16.xpose.msra.mxu0 0
    %3010 = vmatprep.subr.bf16.mxu0 0
    %3011 = vmatpush1.bf16.xpose.msra.mxu0 0
    %3012 = vmatprep.subr.bf16.mxu0 0
    %3013 = vmatpush1.bf16.xpose.msra.mxu0 0
    %3014 = vmatprep.subr.bf16.mxu0 0
    %3015 = vmatpush1.bf16.xpose.msra.mxu0 0
    %3016 = vmatprep.subr.bf16.mxu0 0
    %3017 = vmatpush1.bf16.xpose.msra.mxu0 0
    %3018 = vmatprep.mubr.bf16.mxu0 0
    %3019 = vmatmul.mubr.bf16.gmra.mrb[0].mxu0 %v2980
    %v3020 = vpop.f32.mrb[0].mxu0
    %v3021 = vadd.f32 %v647, %v3020
    %v3022 = vpop.f32.mrb[0].mxu0
    %v3023 = vpop.f32.mrb[0].mxu0
    %v3024 = vpop.f32.mrb[0].mxu0
    %3025 = vdwg.mxu0
    %3026 = vmatprep.subr.bf16.mxu0 0
    %3027 = vmatpush1.bf16.xpose.msra.mxu0 %v2983
    %3028 = vmatprep.subr.bf16.mxu0 0
    %3029 = vmatpush1.bf16.xpose.msra.mxu0 0
    %3030 = vmatprep.subr.bf16.mxu0 0
    %3031 = vmatpush1.bf16.xpose.msra.mxu0 0
    %3032 = vmatprep.subr.bf16.mxu0 0
    %3033 = vmatpush1.bf16.xpose.msra.mxu0 0
    %3034 = vmatprep.subr.bf16.mxu0 0
    %3035 = vmatpush1.bf16.xpose.msra.mxu0 0
    %3036 = vmatprep.subr.bf16.mxu0 0
    %3037 = vmatpush1.bf16.xpose.msra.mxu0 0
    %3038 = vmatprep.subr.bf16.mxu0 0
    %3039 = vmatpush1.bf16.xpose.msra.mxu0 0
    %3040 = vmatprep.subr.bf16.mxu0 0
    %3041 = vmatpush1.bf16.xpose.msra.mxu0 0
    %3042 = vmatprep.subr.bf16.mxu0 0
    %3043 = vmatpush1.bf16.xpose.msra.mxu0 0
    %3044 = vmatprep.subr.bf16.mxu0 0
    %3045 = vmatpush1.bf16.xpose.msra.mxu0 0
    %3046 = vmatprep.subr.bf16.mxu0 0
    %3047 = vmatpush1.bf16.xpose.msra.mxu0 0
    %3048 = vmatprep.subr.bf16.mxu0 0
    %3049 = vmatpush1.bf16.xpose.msra.mxu0 0
    %3050 = vmatprep.subr.bf16.mxu0 0
    %3051 = vmatpush1.bf16.xpose.msra.mxu0 0
    %3052 = vmatprep.subr.bf16.mxu0 0
    %3053 = vmatpush1.bf16.xpose.msra.mxu0 0
    %3054 = vmatprep.subr.bf16.mxu0 0
    %3055 = vmatpush1.bf16.xpose.msra.mxu0 0
    %3056 = vmatprep.subr.bf16.mxu0 0
    %3057 = vmatpush1.bf16.xpose.msra.mxu0 0
    %3058 = vmatprep.mubr.bf16.mxu0 0
    %3059 = vmatmul.mubr.bf16.gmra.mrb[0].mxu0 %v2981
    %v3060 = vpop.f32.mrb[0].mxu0
    %v3061 = vadd.f32 %v647, %v3060
    %v3062 = vpop.f32.mrb[0].mxu0
    %v3063 = vpop.f32.mrb[0].mxu0
    %v3064 = vpop.f32.mrb[0].mxu0
    %3065 = vdwg.mxu0
    %v3066 = vsel %vm1230, %v3021, -inf
    %3067 = vmax.xlane.f32.xlu0 %v3066
    %v3068 = vpop.xlane.xlu0 %3067
    %v3069 = vsel %vm1230, %v3061, -inf
    %3070 = vmax.xlane.f32.xlu0 %v3069
    %v3071 = vpop.xlane.xlu0 %3070
    %v3072 = vsub.f32 %v3021, %v3068
    %v3073 = vsub.f32 %v3061, %v3071
    %v3074 = vmul.f32 %v3072, 1.442695
    %v3075 = vpow.pop %v3074
    %v3076 = vmul.f32 %v3073, 1.442695
    %v3077 = vpow.pop %v3076
    %v3078 = vsel %vm1230, %v3075, 0.0
    %3079 = vadd.xlane.f32.xlu0 %v3078
    %v3080 = vpop.xlane.xlu0 %3079
    %v3081 = vsel %vm1230, %v3077, 0.0
    %3082 = vadd.xlane.f32.xlu0 %v3081
    %v3083 = vpop.xlane.xlu0 %3082
    %v3084 = vrcp.pop %v3080
    %v3085 = vrcp.pop %v3083
    %v3086 = vmul.f32 %v3075, %v3084
    %v3087 = vmul.f32 %v3077, %v3085
    %v3088 = vpack.c.bf16 %v3086, %v3086
    %v3089 = vpack.c.bf16 %v3087, %v3087
    %v3091 = vsel %vm1230, %v3088, 0
    %v3094 = vsel %vm1258, %v2984, 0
    %3096 = vmatprep.subr.bf16.mxu0 0
    %3097 = vmatpush1.bf16.msra.mxu0 %v3094
    %3098 = vmatprep.subr.bf16.mxu0 0
    %3099 = vmatpush1.bf16.msra.mxu0 0
    %3100 = vmatprep.subr.bf16.mxu0 0
    %3101 = vmatpush1.bf16.msra.mxu0 0
    %3102 = vmatprep.subr.bf16.mxu0 0
    %3103 = vmatpush1.bf16.msra.mxu0 0
    %3104 = vmatprep.subr.bf16.mxu0 0
    %3105 = vmatpush1.bf16.msra.mxu0 0
    %3106 = vmatprep.subr.bf16.mxu0 0
    %3107 = vmatpush1.bf16.msra.mxu0 0
    %3108 = vmatprep.subr.bf16.mxu0 0
    %3109 = vmatpush1.bf16.msra.mxu0 0
    %3110 = vmatprep.subr.bf16.mxu0 0
    %3111 = vmatpush1.bf16.msra.mxu0 0
    %3112 = vmatprep.subr.bf16.mxu0 0
    %3113 = vmatpush1.bf16.msra.mxu0 0
    %3114 = vmatprep.subr.bf16.mxu0 0
    %3115 = vmatpush1.bf16.msra.mxu0 0
    %3116 = vmatprep.subr.bf16.mxu0 0
    %3117 = vmatpush1.bf16.msra.mxu0 0
    %3118 = vmatprep.subr.bf16.mxu0 0
    %3119 = vmatpush1.bf16.msra.mxu0 0
    %3120 = vmatprep.subr.bf16.mxu0 0
    %3121 = vmatpush1.bf16.msra.mxu0 0
    %3122 = vmatprep.subr.bf16.mxu0 0
    %3123 = vmatpush1.bf16.msra.mxu0 0
    %3124 = vmatprep.subr.bf16.mxu0 0
    %3125 = vmatpush1.bf16.msra.mxu0 0
    %3126 = vmatprep.subr.bf16.mxu0 0
    %3127 = vmatpush1.bf16.msra.mxu0 0
    %3128 = vmatprep.mubr.bf16.mxu0 0
    %3129 = vmatmul.mubr.bf16.gmra.mrb[0].mxu0 %v3091
    %v3130 = vpop.f32.mrb[0].mxu0
    %v3131 = vadd.f32 0.0, %v3130
    %v3132 = vpop.f32.mrb[0].mxu0
    %v3133 = vpop.f32.mrb[0].mxu0
    %v3134 = vpop.f32.mrb[0].mxu0
    %3135 = vdwg.mxu0
    %v3137 = vsel %vm1230, %v3089, 0
    %v3140 = vsel %vm1258, %v2985, 0
    %3142 = vmatprep.subr.bf16.mxu0 0
    %3143 = vmatpush1.bf16.msra.mxu0 %v3140
    %3144 = vmatprep.subr.bf16.mxu0 0
    %3145 = vmatpush1.bf16.msra.mxu0 0
    %3146 = vmatprep.subr.bf16.mxu0 0
    %3147 = vmatpush1.bf16.msra.mxu0 0
    %3148 = vmatprep.subr.bf16.mxu0 0
    %3149 = vmatpush1.bf16.msra.mxu0 0
    %3150 = vmatprep.subr.bf16.mxu0 0
    %3151 = vmatpush1.bf16.msra.mxu0 0
    %3152 = vmatprep.subr.bf16.mxu0 0
    %3153 = vmatpush1.bf16.msra.mxu0 0
    %3154 = vmatprep.subr.bf16.mxu0 0
    %3155 = vmatpush1.bf16.msra.mxu0 0
    %3156 = vmatprep.subr.bf16.mxu0 0
    %3157 = vmatpush1.bf16.msra.mxu0 0
    %3158 = vmatprep.subr.bf16.mxu0 0
    %3159 = vmatpush1.bf16.msra.mxu0 0
    %3160 = vmatprep.subr.bf16.mxu0 0
    %3161 = vmatpush1.bf16.msra.mxu0 0
    %3162 = vmatprep.subr.bf16.mxu0 0
    %3163 = vmatpush1.bf16.msra.mxu0 0
    %3164 = vmatprep.subr.bf16.mxu0 0
    %3165 = vmatpush1.bf16.msra.mxu0 0
    %3166 = vmatprep.subr.bf16.mxu0 0
    %3167 = vmatpush1.bf16.msra.mxu0 0
    %3168 = vmatprep.subr.bf16.mxu0 0
    %3169 = vmatpush1.bf16.msra.mxu0 0
    %3170 = vmatprep.subr.bf16.mxu0 0
    %3171 = vmatpush1.bf16.msra.mxu0 0
    %3172 = vmatprep.subr.bf16.mxu0 0
    %3173 = vmatpush1.bf16.msra.mxu0 0
    %3174 = vmatprep.mubr.bf16.mxu0 0
    %3175 = vmatmul.mubr.bf16.gmra.mrb[0].mxu0 %v3137
    %v3176 = vpop.f32.mrb[0].mxu0
    %v3177 = vadd.f32 0.0, %v3176
    %v3178 = vpop.f32.mrb[0].mxu0
    %v3179 = vpop.f32.mrb[0].mxu0
    %v3180 = vpop.f32.mrb[0].mxu0
    %3181 = vdwg.mxu0
    %v3182 = vpack.c.bf16 %v3177, %v3131
    %s3183 = scalar_lea.vmem [#allocation2], 192
    %v3184 = vld [vmem:[%s3183] sm:$0xf]
    %v3185 = vld [vmem:[%s3183 + $0x4] sm:$0xf]
    %v3186 = vld [vmem:[%s3183 + $0x8] sm:$0xf]
    %v3187 = vld [vmem:[%s3183 + $0xc] sm:$0xf]
    %v3188 = vld [vmem:[%s3183 + $0x10] sm:$0xf]
    %v3189 = vld [vmem:[%s3183 + $0x14] sm:$0xf]
    %v3190 = vld [vmem:[%s3183 + $0x18] sm:$0xf]
    %v3191 = vld [vmem:[%s3183 + $0x1c] sm:$0xf]
    %v3192 = vld [vmem:[%s3183 + $0x20] sm:$0xf]
    %v3193 = vld [vmem:[%s3183 + $0x24] sm:$0xf]
    %v3194 = vld [vmem:[%s3183 + $0x28] sm:$0xf]
    %v3195 = vld [vmem:[%s3183 + $0x2c] sm:$0xf]
    %v3196 = vld [vmem:[%s3183 + $0x30] sm:$0xf]
    %v3197 = vld [vmem:[%s3183 + $0x34] sm:$0xf]
    %v3198 = vld [vmem:[%s3183 + $0x38] sm:$0xf]
    %v3199 = vld [vmem:[%s3183 + $0x3c] sm:$0xf]
    %v3216 = vunpack.c.l.b16 %v3184
    %v3217 = vunpack.c.l.b16 %v3185
    %v3218 = vunpack.c.l.b16 %v3186
    %v3219 = vunpack.c.l.b16 %v3187
    %v3220 = vunpack.c.l.b16 %v3188
    %v3221 = vunpack.c.l.b16 %v3189
    %v3222 = vunpack.c.l.b16 %v3190
    %v3223 = vunpack.c.l.b16 %v3191
    %v3224 = vunpack.c.l.b16 %v3192
    %v3225 = vunpack.c.l.b16 %v3193
    %v3226 = vunpack.c.l.b16 %v3194
    %v3227 = vunpack.c.l.b16 %v3195
    %v3228 = vunpack.c.l.b16 %v3196
    %v3229 = vunpack.c.l.b16 %v3197
    %v3230 = vunpack.c.l.b16 %v3198
    %v3231 = vunpack.c.l.b16 %v3199
    %v3232 = vpack.c.b16 %v3217, %v3216
    %v3233 = vpack.c.b16 %v3219, %v3218
    %v3234 = vpack.c.b16 %v3221, %v3220
    %v3235 = vpack.c.b16 %v3223, %v3222
    %v3236 = vpack.c.b16 %v3225, %v3224
    %v3237 = vpack.c.b16 %v3227, %v3226
    %v3238 = vpack.c.b16 %v3229, %v3228
    %v3239 = vpack.c.b16 %v3231, %v3230
    %3248 = vmatprep.subr.bf16.mxu0 0
    %3249 = vmatpush1.bf16.msra.mxu0 %v3232
    %3250 = vmatprep.subr.bf16.mxu0 0
    %3251 = vmatpush1.bf16.msra.mxu0 %v3233
    %3252 = vmatprep.subr.bf16.mxu0 0
    %3253 = vmatpush1.bf16.msra.mxu0 %v3234
    %3254 = vmatprep.subr.bf16.mxu0 0
    %3255 = vmatpush1.bf16.msra.mxu0 %v3235
    %3256 = vmatprep.subr.bf16.mxu0 0
    %3257 = vmatpush1.bf16.msra.mxu0 %v3236
    %3258 = vmatprep.subr.bf16.mxu0 0
    %3259 = vmatpush1.bf16.msra.mxu0 %v3237
    %3260 = vmatprep.subr.bf16.mxu0 0
    %3261 = vmatpush1.bf16.msra.mxu0 %v3238
    %3262 = vmatprep.subr.bf16.mxu0 0
    %3263 = vmatpush1.bf16.msra.mxu0 %v3239
    %3264 = vmatprep.subr.bf16.mxu0 0
    %3265 = vmatpush1.bf16.msra.mxu0 0
    %3266 = vmatprep.subr.bf16.mxu0 0
    %3267 = vmatpush1.bf16.msra.mxu0 0
    %3268 = vmatprep.subr.bf16.mxu0 0
    %3269 = vmatpush1.bf16.msra.mxu0 0
    %3270 = vmatprep.subr.bf16.mxu0 0
    %3271 = vmatpush1.bf16.msra.mxu0 0
    %3272 = vmatprep.subr.bf16.mxu0 0
    %3273 = vmatpush1.bf16.msra.mxu0 0
    %3274 = vmatprep.subr.bf16.mxu0 0
    %3275 = vmatpush1.bf16.msra.mxu0 0
    %3276 = vmatprep.subr.bf16.mxu0 0
    %3277 = vmatpush1.bf16.msra.mxu0 0
    %3278 = vmatprep.subr.bf16.mxu0 0
    %3279 = vmatpush1.bf16.msra.mxu0 0
    %3280 = vmatprep.mubr.bf16.mxu0 0
    %3281 = vmatmul.mubr.bf16.gmra.mrb[0].mxu0 %v3182
    %v3282 = vpop.f32.mrb[0].mxu0
    %v3283 = vadd.f32 0.0, %v3282
    %v3284 = vpop.f32.mrb[0].mxu0
    %v3285 = vpop.f32.mrb[0].mxu0
    %v3286 = vadd.f32 0.0, %v3285
    %v3287 = vpop.f32.mrb[0].mxu0
    %3288 = vdwg.mxu0
    %v3305 = vunpack.c.l.b16 %v2964
    %v3306 = vunpack.c.l.b16 %v2965
    %v3307 = vunpack.c.l.b16 %v2966
    %v3308 = vunpack.c.l.b16 %v2967
    %v3309 = vunpack.c.l.b16 %v2968
    %v3310 = vunpack.c.l.b16 %v2969
    %v3311 = vunpack.c.l.b16 %v2970
    %v3312 = vunpack.c.l.b16 %v2971
    %v3313 = vunpack.c.l.b16 %v2972
    %v3314 = vunpack.c.l.b16 %v2973
    %v3315 = vunpack.c.l.b16 %v2974
    %v3316 = vunpack.c.l.b16 %v2975
    %v3317 = vunpack.c.l.b16 %v2976
    %v3318 = vunpack.c.l.b16 %v2977
    %v3319 = vunpack.c.l.b16 %v2978
    %v3320 = vunpack.c.l.b16 %v2979
    %v3321 = vpack.c.b16 %v3306, %v3305
    %v3322 = vpack.c.b16 %v3308, %v3307
    %v3323 = vpack.c.b16 %v3310, %v3309
    %v3324 = vpack.c.b16 %v3312, %v3311
    %v3325 = vpack.c.b16 %v3314, %v3313
    %v3326 = vpack.c.b16 %v3316, %v3315
    %v3327 = vpack.c.b16 %v3318, %v3317
    %v3328 = vpack.c.b16 %v3320, %v3319
    %3337 = vmatprep.subr.bf16.mxu0 0
    %3338 = vmatpush1.bf16.msra.mxu0 %v3321
    %3339 = vmatprep.subr.bf16.mxu0 0
    %3340 = vmatpush1.bf16.msra.mxu0 %v3322
    %3341 = vmatprep.subr.bf16.mxu0 0
    %3342 = vmatpush1.bf16.msra.mxu0 %v3323
    %3343 = vmatprep.subr.bf16.mxu0 0
    %3344 = vmatpush1.bf16.msra.mxu0 %v3324
    %3345 = vmatprep.subr.bf16.mxu0 0
    %3346 = vmatpush1.bf16.msra.mxu0 %v3325
    %3347 = vmatprep.subr.bf16.mxu0 0
    %3348 = vmatpush1.bf16.msra.mxu0 %v3326
    %3349 = vmatprep.subr.bf16.mxu0 0
    %3350 = vmatpush1.bf16.msra.mxu0 %v3327
    %3351 = vmatprep.subr.bf16.mxu0 0
    %3352 = vmatpush1.bf16.msra.mxu0 %v3328
    %3353 = vmatprep.subr.bf16.mxu0 0
    %3354 = vmatpush1.bf16.msra.mxu0 0
    %3355 = vmatprep.subr.bf16.mxu0 0
    %3356 = vmatpush1.bf16.msra.mxu0 0
    %3357 = vmatprep.subr.bf16.mxu0 0
    %3358 = vmatpush1.bf16.msra.mxu0 0
    %3359 = vmatprep.subr.bf16.mxu0 0
    %3360 = vmatpush1.bf16.msra.mxu0 0
    %3361 = vmatprep.subr.bf16.mxu0 0
    %3362 = vmatpush1.bf16.msra.mxu0 0
    %3363 = vmatprep.subr.bf16.mxu0 0
    %3364 = vmatpush1.bf16.msra.mxu0 0
    %3365 = vmatprep.subr.bf16.mxu0 0
    %3366 = vmatpush1.bf16.msra.mxu0 0
    %3367 = vmatprep.subr.bf16.mxu0 0
    %3368 = vmatpush1.bf16.msra.mxu0 0
    %3369 = vmatprep.mubr.bf16.mxu0 0
    %3370 = vmatmul.mubr.bf16.gmra.mrb[0].mxu0 %v2962
    %v3371 = vpop.f32.mrb[0].mxu0
    %v3372 = vadd.f32 %v3283, %v3371
    %v3373 = vpop.f32.mrb[0].mxu0
    %v3374 = vpop.f32.mrb[0].mxu0
    %v3375 = vadd.f32 %v3286, %v3374
    %v3376 = vpop.f32.mrb[0].mxu0
    %3377 = vdwg.mxu0
    %v3378 = vadd.f32 %v2258, %v3372
    %v3379 = vadd.f32 %v2259, %v3375
    %s3380 = scalar_lea.vmem %s8, 1
    %v3381 = vld [vmem:[%s3380] sm:$0x1]
    %v3383 = vlaneseq
    %v3384 = vshrl.u32 %v3383, 7
    %v3385 = vsub.s32 0, %v3384
    %v3386 = vrot.slane %v3381, %v3385
    %v3388 = vadd.f32 %v3378, %v3386
    %v3389 = vadd.f32 %v3379, %v3386
    %s3390 = scalar_lea.vmem %s9, 1
    %v3391 = vld [vmem:[%s3390] sm:$0x1]
    %s3392 = scalar_lea.vmem %s10, 1
    %v3393 = vld [vmem:[%s3392] sm:$0x1]
    %3394 = vadd.xlane.f32.xlu0 %v3388
    %v3395 = vpop.xlane.xlu0 %3394
    %3396 = vadd.xlane.f32.xlu0 %v3389
    %v3397 = vpop.xlane.xlu0 %3396
    %v3398 = vmul.f32 %v3395, 0.015625
    %v3399 = vmul.f32 %v3397, 0.015625
    %v3400 = vsub.f32 %v3388, %v3398
    %v3401 = vsub.f32 %v3389, %v3399
    %v3402 = vmul.f32 %v3400, %v3400
    %v3403 = vmul.f32 %v3401, %v3401
    %3404 = vadd.xlane.f32.xlu0 %v3402
    %v3405 = vpop.xlane.xlu0 %3404
    %3406 = vadd.xlane.f32.xlu0 %v3403
    %v3407 = vpop.xlane.xlu0 %3406
    %v3408 = vmul.f32 %v3398, 64.0
    %v3409 = vmul.f32 %v3399, 64.0
    %v3410 = vmul.f32 %v3408, %v3398
    %v3411 = vmul.f32 %v3409, %v3399
    %v3412 = vsub.f32 %v3405, %v3410
    %v3413 = vsub.f32 %v3407, %v3411
    %v3414 = vmul.f32 %v3412, 0.015625
    %v3415 = vmul.f32 %v3413, 0.015625
    %v3416 = vadd.f32 %v3414, 1e-06
    %v3417 = vadd.f32 %v3415, 1e-06
    %v3418 = vrsqrt.pop %v3416
    %v3419 = vrsqrt.pop %v3417
    %v3420 = vmul.f32 %v3400, %v3418
    %v3421 = vmul.f32 %v3401, %v3419
    %v3423 = vlaneseq
    %v3424 = vshrl.u32 %v3423, 7
    %v3425 = vsub.s32 0, %v3424
    %v3426 = vrot.slane %v3391, %v3425
    %v3428 = vmul.f32 %v3420, %v3426
    %v3429 = vmul.f32 %v3421, %v3426
    %v3431 = vlaneseq
    %v3432 = vshrl.u32 %v3431, 7
    %v3433 = vsub.s32 0, %v3432
    %v3434 = vrot.slane %v3393, %v3433
    %v3436 = vadd.f32 %v3428, %v3434
    %v3437 = vadd.f32 %v3429, %v3434
    %v3438 = vpack.c.bf16 %v3437, %v3436
    %s3439 = scalar_lea.vmem [#allocation4], 128
    %v3440 = vld [vmem:[%s3439] sm:$0xff]
    %v3441 = vld [vmem:[%s3439 + $0x8] sm:$0xff]
    %v3442 = vld [vmem:[%s3439 + $0x10] sm:$0xff]
    %v3443 = vld [vmem:[%s3439 + $0x18] sm:$0xff]
    %v3444 = vld [vmem:[%s3439 + $0x20] sm:$0xff]
    %v3445 = vld [vmem:[%s3439 + $0x28] sm:$0xff]
    %v3446 = vld [vmem:[%s3439 + $0x30] sm:$0xff]
    %v3447 = vld [vmem:[%s3439 + $0x38] sm:$0xff]
    %v3448 = vld [vmem:[%s3439 + $0x40] sm:$0xff]
    %v3449 = vld [vmem:[%s3439 + $0x48] sm:$0xff]
    %v3450 = vld [vmem:[%s3439 + $0x50] sm:$0xff]
    %v3451 = vld [vmem:[%s3439 + $0x58] sm:$0xff]
    %v3452 = vld [vmem:[%s3439 + $0x60] sm:$0xff]
    %v3453 = vld [vmem:[%s3439 + $0x68] sm:$0xff]
    %v3454 = vld [vmem:[%s3439 + $0x70] sm:$0xff]
    %v3455 = vld [vmem:[%s3439 + $0x78] sm:$0xff]
    %s3456 = scalar_lea.vmem %s12, 2
    %v3457 = vld [vmem:[%s3456] sm:$0x3]
    %v3459 = vlaneseq
    %v3460 = vshrl.u32 %v3459, 7
    %v3461 = vsub.s32 0, %v3460
    %v3462 = vrot.slane %v3457, %v3461
    %v3463 = vlaneseq
    %v3464 = vshrl.u32 %v3463, 7
    %v3465 = vsub.s32 1, %v3464
    %v3466 = vrot.slane %v3457, %v3465
    %v3485 = vunpack.c.l.b16 %v3440
    %v3486 = vunpack.c.h.b16 %v3440
    %v3487 = vunpack.c.l.b16 %v3441
    %v3488 = vunpack.c.h.b16 %v3441
    %v3489 = vunpack.c.l.b16 %v3442
    %v3490 = vunpack.c.h.b16 %v3442
    %v3491 = vunpack.c.l.b16 %v3443
    %v3492 = vunpack.c.h.b16 %v3443
    %v3493 = vunpack.c.l.b16 %v3444
    %v3494 = vunpack.c.h.b16 %v3444
    %v3495 = vunpack.c.l.b16 %v3445
    %v3496 = vunpack.c.h.b16 %v3445
    %v3497 = vunpack.c.l.b16 %v3446
    %v3498 = vunpack.c.h.b16 %v3446
    %v3499 = vunpack.c.l.b16 %v3447
    %v3500 = vunpack.c.h.b16 %v3447
    %v3501 = vunpack.c.l.b16 %v3448
    %v3502 = vunpack.c.h.b16 %v3448
    %v3503 = vunpack.c.l.b16 %v3449
    %v3504 = vunpack.c.h.b16 %v3449
    %v3505 = vunpack.c.l.b16 %v3450
    %v3506 = vunpack.c.h.b16 %v3450
    %v3507 = vunpack.c.l.b16 %v3451
    %v3508 = vunpack.c.h.b16 %v3451
    %v3509 = vunpack.c.l.b16 %v3452
    %v3510 = vunpack.c.h.b16 %v3452
    %v3511 = vunpack.c.l.b16 %v3453
    %v3512 = vunpack.c.h.b16 %v3453
    %v3513 = vunpack.c.l.b16 %v3454
    %v3514 = vunpack.c.h.b16 %v3454
    %v3515 = vunpack.c.l.b16 %v3455
    %v3516 = vunpack.c.h.b16 %v3455
    %v3517 = vpack.c.b16 %v3487, %v3485
    %v3518 = vpack.c.b16 %v3488, %v3486
    %v3519 = vpack.c.b16 %v3491, %v3489
    %v3520 = vpack.c.b16 %v3492, %v3490
    %v3521 = vpack.c.b16 %v3495, %v3493
    %v3522 = vpack.c.b16 %v3496, %v3494
    %v3523 = vpack.c.b16 %v3499, %v3497
    %v3524 = vpack.c.b16 %v3500, %v3498
    %v3525 = vpack.c.b16 %v3503, %v3501
    %v3526 = vpack.c.b16 %v3504, %v3502
    %v3527 = vpack.c.b16 %v3507, %v3505
    %v3528 = vpack.c.b16 %v3508, %v3506
    %v3529 = vpack.c.b16 %v3511, %v3509
    %v3530 = vpack.c.b16 %v3512, %v3510
    %v3531 = vpack.c.b16 %v3515, %v3513
    %v3532 = vpack.c.b16 %v3516, %v3514
    %3549 = vmatprep.subr.bf16.mxu0 %v3518
    %3550 = vmatpush1.bf16.msra.mxu0 %v3517
    %3551 = vmatprep.subr.bf16.mxu0 %v3520
    %3552 = vmatpush1.bf16.msra.mxu0 %v3519
    %3553 = vmatprep.subr.bf16.mxu0 %v3522
    %3554 = vmatpush1.bf16.msra.mxu0 %v3521
    %3555 = vmatprep.subr.bf16.mxu0 %v3524
    %3556 = vmatpush1.bf16.msra.mxu0 %v3523
    %3557 = vmatprep.subr.bf16.mxu0 %v3526
    %3558 = vmatpush1.bf16.msra.mxu0 %v3525
    %3559 = vmatprep.subr.bf16.mxu0 %v3528
    %3560 = vmatpush1.bf16.msra.mxu0 %v3527
    %3561 = vmatprep.subr.bf16.mxu0 %v3530
    %3562 = vmatpush1.bf16.msra.mxu0 %v3529
    %3563 = vmatprep.subr.bf16.mxu0 %v3532
    %3564 = vmatpush1.bf16.msra.mxu0 %v3531
    %3565 = vmatprep.subr.bf16.mxu0 0
    %3566 = vmatpush1.bf16.msra.mxu0 0
    %3567 = vmatprep.subr.bf16.mxu0 0
    %3568 = vmatpush1.bf16.msra.mxu0 0
    %3569 = vmatprep.subr.bf16.mxu0 0
    %3570 = vmatpush1.bf16.msra.mxu0 0
    %3571 = vmatprep.subr.bf16.mxu0 0
    %3572 = vmatpush1.bf16.msra.mxu0 0
    %3573 = vmatprep.subr.bf16.mxu0 0
    %3574 = vmatpush1.bf16.msra.mxu0 0
    %3575 = vmatprep.subr.bf16.mxu0 0
    %3576 = vmatpush1.bf16.msra.mxu0 0
    %3577 = vmatprep.subr.bf16.mxu0 0
    %3578 = vmatpush1.bf16.msra.mxu0 0
    %3579 = vmatprep.subr.bf16.mxu0 0
    %3580 = vmatpush1.bf16.msra.mxu0 0
    %3581 = vmatprep.mubr.bf16.mxu0 0
    %3582 = vmatmul.mubr.bf16.gmra.mrb[0].mxu0 %v3438
    %v3583 = vpop.f32.mrb[0].mxu0
    %v3584 = vadd.f32 %v3462, %v3583
    %v3585 = vpop.f32.mrb[0].mxu0
    %v3586 = vadd.f32 %v3466, %v3585
    %v3587 = vpop.f32.mrb[0].mxu0
    %v3588 = vadd.f32 %v3462, %v3587
    %v3589 = vpop.f32.mrb[0].mxu0
    %v3590 = vadd.f32 %v3466, %v3589
    %3591 = vdwg.mxu0
    %v3592 = vmul.f32 %v3584, 0.5
    %v3593 = vmul.f32 %v3586, 0.5
    %v3594 = vmul.f32 %v3588, 0.5
    %v3595 = vmul.f32 %v3590, 0.5
    %v3596 = vmul.f32 %v3584, 0.70710677
    %v3597 = vmul.f32 %v3586, 0.70710677
    %v3598 = vmul.f32 %v3588, 0.70710677
    %v3599 = vmul.f32 %v3590, 0.70710677
    %v3600 = vand.u32 2147483647, %v3596
    %v3601 = vand.u32 2147483647, %v3597
    %v3602 = vand.u32 2147483647, %v3598
    %v3603 = vand.u32 2147483647, %v3599
    %v3604 = vmul.f32 %v3600, 0.3275911
    %v3605 = vmul.f32 %v3601, 0.3275911
    %v3606 = vmul.f32 %v3602, 0.3275911
    %v3607 = vmul.f32 %v3603, 0.3275911
    %v3608 = vadd.f32 %v3604, 1.0
    %v3609 = vadd.f32 %v3605, 1.0
    %v3610 = vadd.f32 %v3606, 1.0
    %v3611 = vadd.f32 %v3607, 1.0
    %v3612 = vrcp.pop %v3608
    %v3613 = vmul.f32 1.0, %v3612
    %v3614 = vrcp.pop %v3609
    %v3615 = vmul.f32 1.0, %v3614
    %v3616 = vrcp.pop %v3610
    %v3617 = vmul.f32 1.0, %v3616
    %v3618 = vrcp.pop %v3611
    %v3619 = vmul.f32 1.0, %v3618
    %v3620 = vmul.f32 %v3613, 1.0614054
    %v3621 = vmul.f32 %v3615, 1.0614054
    %v3622 = vmul.f32 %v3617, 1.0614054
    %v3623 = vmul.f32 %v3619, 1.0614054
    %v3624 = vadd.f32 %v3620, -1.4531521
    %v3625 = vadd.f32 %v3621, -1.4531521
    %v3626 = vadd.f32 %v3622, -1.4531521
    %v3627 = vadd.f32 %v3623, -1.4531521
    %v3628 = vmul.f32 %v3624, %v3613
    %v3629 = vmul.f32 %v3625, %v3615
    %v3630 = vmul.f32 %v3626, %v3617
    %v3631 = vmul.f32 %v3627, %v3619
    %v3632 = vadd.f32 %v3628, 1.4214138
    %v3633 = vadd.f32 %v3629, 1.4214138
    %v3634 = vadd.f32 %v3630, 1.4214138
    %v3635 = vadd.f32 %v3631, 1.4214138
    %v3636 = vmul.f32 %v3632, %v3613
    %v3637 = vmul.f32 %v3633, %v3615
    %v3638 = vmul.f32 %v3634, %v3617
    %v3639 = vmul.f32 %v3635, %v3619
    %v3640 = vadd.f32 %v3636, -0.28449672
    %v3641 = vadd.f32 %v3637, -0.28449672
    %v3642 = vadd.f32 %v3638, -0.28449672
    %v3643 = vadd.f32 %v3639, -0.28449672
    %v3644 = vmul.f32 %v3640, %v3613
    %v3645 = vmul.f32 %v3641, %v3615
    %v3646 = vmul.f32 %v3642, %v3617
    %v3647 = vmul.f32 %v3643, %v3619
    %v3648 = vadd.f32 %v3644, 0.2548296
    %v3649 = vadd.f32 %v3645, 0.2548296
    %v3650 = vadd.f32 %v3646, 0.2548296
    %v3651 = vadd.f32 %v3647, 0.2548296
    %v3652 = vmul.f32 %v3648, %v3613
    %v3653 = vmul.f32 %v3649, %v3615
    %v3654 = vmul.f32 %v3650, %v3617
    %v3655 = vmul.f32 %v3651, %v3619
    %v3656 = vsub.f32 0.0, %v3600
    %v3657 = vsub.f32 0.0, %v3601
    %v3658 = vsub.f32 0.0, %v3602
    %v3659 = vsub.f32 0.0, %v3603
    %v3660 = vmul.f32 %v3656, %v3600
    %v3661 = vmul.f32 %v3657, %v3601
    %v3662 = vmul.f32 %v3658, %v3602
    %v3663 = vmul.f32 %v3659, %v3603
    %v3664 = vmul.f32 %v3660, 1.442695
    %v3665 = vpow.pop %v3664
    %v3666 = vmul.f32 %v3661, 1.442695
    %v3667 = vpow.pop %v3666
    %v3668 = vmul.f32 %v3662, 1.442695
    %v3669 = vpow.pop %v3668
    %v3670 = vmul.f32 %v3663, 1.442695
    %v3671 = vpow.pop %v3670
    %v3672 = vmul.f32 %v3652, %v3665
    %v3673 = vmul.f32 %v3653, %v3667
    %v3674 = vmul.f32 %v3654, %v3669
    %v3675 = vmul.f32 %v3655, %v3671
    %v3676 = vsub.f32 1.0, %v3672
    %v3677 = vsub.f32 1.0, %v3673
    %v3678 = vsub.f32 1.0, %v3674
    %v3679 = vsub.f32 1.0, %v3675
    %vm3680 = vcmp.ge.f32.partialorder %v3596, 0.0
    %vm3681 = vcmp.ge.f32.partialorder %v3597, 0.0
    %vm3682 = vcmp.ge.f32.partialorder %v3598, 0.0
    %vm3683 = vcmp.ge.f32.partialorder %v3599, 0.0
    %v3684 = vsub.f32 0.0, %v3676
    %v3685 = vsub.f32 0.0, %v3677
    %v3686 = vsub.f32 0.0, %v3678
    %v3687 = vsub.f32 0.0, %v3679
    %v3688 = vsel %vm3680, %v3676, %v3684
    %v3689 = vsel %vm3681, %v3677, %v3685
    %v3690 = vsel %vm3682, %v3678, %v3686
    %v3691 = vsel %vm3683, %v3679, %v3687
    %v3692 = vadd.f32 %v3688, 1.0
    %v3693 = vadd.f32 %v3689, 1.0
    %v3694 = vadd.f32 %v3690, 1.0
    %v3695 = vadd.f32 %v3691, 1.0
    %v3696 = vmul.f32 %v3592, %v3692
    %v3697 = vmul.f32 %v3593, %v3693
    %v3698 = vmul.f32 %v3594, %v3694
    %v3699 = vmul.f32 %v3595, %v3695
    %v3700 = vpack.c.bf16 %v3698, %v3696
    %v3701 = vpack.c.bf16 %v3699, %v3697
    %s3702 = scalar_lea.vmem [#allocation6], 128
    %v3703 = vld [vmem:[%s3702] sm:$0xf]
    %v3704 = vld [vmem:[%s3702 + $0x4] sm:$0xf]
    %v3705 = vld [vmem:[%s3702 + $0x8] sm:$0xf]
    %v3706 = vld [vmem:[%s3702 + $0xc] sm:$0xf]
    %v3707 = vld [vmem:[%s3702 + $0x10] sm:$0xf]
    %v3708 = vld [vmem:[%s3702 + $0x14] sm:$0xf]
    %v3709 = vld [vmem:[%s3702 + $0x18] sm:$0xf]
    %v3710 = vld [vmem:[%s3702 + $0x1c] sm:$0xf]
    %v3711 = vld [vmem:[%s3702 + $0x20] sm:$0xf]
    %v3712 = vld [vmem:[%s3702 + $0x24] sm:$0xf]
    %v3713 = vld [vmem:[%s3702 + $0x28] sm:$0xf]
    %v3714 = vld [vmem:[%s3702 + $0x2c] sm:$0xf]
    %v3715 = vld [vmem:[%s3702 + $0x30] sm:$0xf]
    %v3716 = vld [vmem:[%s3702 + $0x34] sm:$0xf]
    %v3717 = vld [vmem:[%s3702 + $0x38] sm:$0xf]
    %v3718 = vld [vmem:[%s3702 + $0x3c] sm:$0xf]
    %v3719 = vld [vmem:[%s3702 + $0x40] sm:$0xf]
    %v3720 = vld [vmem:[%s3702 + $0x44] sm:$0xf]
    %v3721 = vld [vmem:[%s3702 + $0x48] sm:$0xf]
    %v3722 = vld [vmem:[%s3702 + $0x4c] sm:$0xf]
    %v3723 = vld [vmem:[%s3702 + $0x50] sm:$0xf]
    %v3724 = vld [vmem:[%s3702 + $0x54] sm:$0xf]
    %v3725 = vld [vmem:[%s3702 + $0x58] sm:$0xf]
    %v3726 = vld [vmem:[%s3702 + $0x5c] sm:$0xf]
    %v3727 = vld [vmem:[%s3702 + $0x60] sm:$0xf]
    %v3728 = vld [vmem:[%s3702 + $0x64] sm:$0xf]
    %v3729 = vld [vmem:[%s3702 + $0x68] sm:$0xf]
    %v3730 = vld [vmem:[%s3702 + $0x6c] sm:$0xf]
    %v3731 = vld [vmem:[%s3702 + $0x70] sm:$0xf]
    %v3732 = vld [vmem:[%s3702 + $0x74] sm:$0xf]
    %v3733 = vld [vmem:[%s3702 + $0x78] sm:$0xf]
    %v3734 = vld [vmem:[%s3702 + $0x7c] sm:$0xf]
    %s3735 = scalar_lea.vmem %s14, 1
    %v3736 = vld [vmem:[%s3735] sm:$0x1]
    %v3738 = vlaneseq
    %v3739 = vshrl.u32 %v3738, 7
    %v3740 = vsub.s32 0, %v3739
    %v3741 = vrot.slane %v3736, %v3740
    %v3775 = vunpack.c.l.b16 %v3703
    %v3776 = vunpack.c.l.b16 %v3704
    %v3777 = vunpack.c.l.b16 %v3705
    %v3778 = vunpack.c.l.b16 %v3706
    %v3779 = vunpack.c.l.b16 %v3707
    %v3780 = vunpack.c.l.b16 %v3708
    %v3781 = vunpack.c.l.b16 %v3709
    %v3782 = vunpack.c.l.b16 %v3710
    %v3783 = vunpack.c.l.b16 %v3711
    %v3784 = vunpack.c.l.b16 %v3712
    %v3785 = vunpack.c.l.b16 %v3713
    %v3786 = vunpack.c.l.b16 %v3714
    %v3787 = vunpack.c.l.b16 %v3715
    %v3788 = vunpack.c.l.b16 %v3716
    %v3789 = vunpack.c.l.b16 %v3717
    %v3790 = vunpack.c.l.b16 %v3718
    %v3791 = vunpack.c.l.b16 %v3719
    %v3792 = vunpack.c.l.b16 %v3720
    %v3793 = vunpack.c.l.b16 %v3721
    %v3794 = vunpack.c.l.b16 %v3722
    %v3795 = vunpack.c.l.b16 %v3723
    %v3796 = vunpack.c.l.b16 %v3724
    %v3797 = vunpack.c.l.b16 %v3725
    %v3798 = vunpack.c.l.b16 %v3726
    %v3799 = vunpack.c.l.b16 %v3727
    %v3800 = vunpack.c.l.b16 %v3728
    %v3801 = vunpack.c.l.b16 %v3729
    %v3802 = vunpack.c.l.b16 %v3730
    %v3803 = vunpack.c.l.b16 %v3731
    %v3804 = vunpack.c.l.b16 %v3732
    %v3805 = vunpack.c.l.b16 %v3733
    %v3806 = vunpack.c.l.b16 %v3734
    %v3807 = vpack.c.b16 %v3776, %v3775
    %v3808 = vpack.c.b16 %v3778, %v3777
    %v3809 = vpack.c.b16 %v3780, %v3779
    %v3810 = vpack.c.b16 %v3782, %v3781
    %v3811 = vpack.c.b16 %v3784, %v3783
    %v3812 = vpack.c.b16 %v3786, %v3785
    %v3813 = vpack.c.b16 %v3788, %v3787
    %v3814 = vpack.c.b16 %v3790, %v3789
    %v3815 = vpack.c.b16 %v3792, %v3791
    %v3816 = vpack.c.b16 %v3794, %v3793
    %v3817 = vpack.c.b16 %v3796, %v3795
    %v3818 = vpack.c.b16 %v3798, %v3797
    %v3819 = vpack.c.b16 %v3800, %v3799
    %v3820 = vpack.c.b16 %v3802, %v3801
    %v3821 = vpack.c.b16 %v3804, %v3803
    %v3822 = vpack.c.b16 %v3806, %v3805
    %3839 = vmatprep.subr.bf16.mxu0 0
    %3840 = vmatpush1.bf16.msra.mxu0 %v3807
    %3841 = vmatprep.subr.bf16.mxu0 0
    %3842 = vmatpush1.bf16.msra.mxu0 %v3808
    %3843 = vmatprep.subr.bf16.mxu0 0
    %3844 = vmatpush1.bf16.msra.mxu0 %v3809
    %3845 = vmatprep.subr.bf16.mxu0 0
    %3846 = vmatpush1.bf16.msra.mxu0 %v3810
    %3847 = vmatprep.subr.bf16.mxu0 0
    %3848 = vmatpush1.bf16.msra.mxu0 %v3811
    %3849 = vmatprep.subr.bf16.mxu0 0
    %3850 = vmatpush1.bf16.msra.mxu0 %v3812
    %3851 = vmatprep.subr.bf16.mxu0 0
    %3852 = vmatpush1.bf16.msra.mxu0 %v3813
    %3853 = vmatprep.subr.bf16.mxu0 0
    %3854 = vmatpush1.bf16.msra.mxu0 %v3814
    %3855 = vmatprep.subr.bf16.mxu0 0
    %3856 = vmatpush1.bf16.msra.mxu0 %v3815
    %3857 = vmatprep.subr.bf16.mxu0 0
    %3858 = vmatpush1.bf16.msra.mxu0 %v3816
    %3859 = vmatprep.subr.bf16.mxu0 0
    %3860 = vmatpush1.bf16.msra.mxu0 %v3817
    %3861 = vmatprep.subr.bf16.mxu0 0
    %3862 = vmatpush1.bf16.msra.mxu0 %v3818
    %3863 = vmatprep.subr.bf16.mxu0 0
    %3864 = vmatpush1.bf16.msra.mxu0 %v3819
    %3865 = vmatprep.subr.bf16.mxu0 0
    %3866 = vmatpush1.bf16.msra.mxu0 %v3820
    %3867 = vmatprep.subr.bf16.mxu0 0
    %3868 = vmatpush1.bf16.msra.mxu0 %v3821
    %3869 = vmatprep.subr.bf16.mxu0 0
    %3870 = vmatpush1.bf16.msra.mxu0 %v3822
    %3871 = vmatprep.mubr.bf16.mxu0 %v3701
    %3872 = vmatmul.mubr.bf16.gmra.mrb[0].mxu0 %v3700
    %v3873 = vpop.f32.mrb[0].mxu0
    %v3874 = vadd.f32 %v3741, %v3873
    %v3875 = vpop.f32.mrb[0].mxu0
    %v3876 = vpop.f32.mrb[0].mxu0
    %v3877 = vadd.f32 %v3741, %v3876
    %v3878 = vpop.f32.mrb[0].mxu0
    %3879 = vdwg.mxu0
    %v3880 = vadd.f32 %v3388, %v3874
    %v3881 = vadd.f32 %v3389, %v3877
    %v3882 = vld [vmem:[%s15] sm:$0x1]
    %v3883 = vld [vmem:[%s16] sm:$0x1]
    %3884 = vadd.xlane.f32.xlu0 %v3880
    %v3885 = vpop.xlane.xlu0 %3884
    %3886 = vadd.xlane.f32.xlu0 %v3881
    %v3887 = vpop.xlane.xlu0 %3886
    %v3888 = vmul.f32 %v3885, 0.015625
    %v3889 = vmul.f32 %v3887, 0.015625
    %v3890 = vsub.f32 %v3880, %v3888
    %v3891 = vsub.f32 %v3881, %v3889
    %v3892 = vmul.f32 %v3890, %v3890
    %v3893 = vmul.f32 %v3891, %v3891
    %3894 = vadd.xlane.f32.xlu0 %v3892
    %v3895 = vpop.xlane.xlu0 %3894
    %3896 = vadd.xlane.f32.xlu0 %v3893
    %v3897 = vpop.xlane.xlu0 %3896
    %v3898 = vmul.f32 %v3888, 64.0
    %v3899 = vmul.f32 %v3889, 64.0
    %v3900 = vmul.f32 %v3898, %v3888
    %v3901 = vmul.f32 %v3899, %v3889
    %v3902 = vsub.f32 %v3895, %v3900
    %v3903 = vsub.f32 %v3897, %v3901
    %v3904 = vmul.f32 %v3902, 0.015625
    %v3905 = vmul.f32 %v3903, 0.015625
    %v3906 = vadd.f32 %v3904, 1e-06
    %v3907 = vadd.f32 %v3905, 1e-06
    %v3908 = vrsqrt.pop %v3906
    %v3909 = vrsqrt.pop %v3907
    %v3910 = vmul.f32 %v3890, %v3908
    %v3911 = vmul.f32 %v3891, %v3909
    %v3913 = vlaneseq
    %v3914 = vshrl.u32 %v3913, 7
    %v3915 = vsub.s32 0, %v3914
    %v3916 = vrot.slane %v3882, %v3915
    %v3918 = vmul.f32 %v3910, %v3916
    %v3919 = vmul.f32 %v3911, %v3916
    %v3921 = vlaneseq
    %v3922 = vshrl.u32 %v3921, 7
    %v3923 = vsub.s32 0, %v3922
    %v3924 = vrot.slane %v3883, %v3923
    %v3926 = vadd.f32 %v3918, %v3924
    %v3927 = vadd.f32 %v3919, %v3924
    %3928 = vst [vmem:[%s17] sm:$0xff] %v3926
    %3929 = vst [vmem:[%s17 + $0x8] sm:$0xff] %v3927
    // Predicated region
    $region82: #{c_radio_v2_forward.1} parent=1 // pred_check
      _
    $region83: #{c_radio_v2_forward.1} parent=1 // pred_check_branch
      %3931 = sbr.rel (0) target = $region85
    $region84: #{c_radio_v2_forward.1} parent=1 // pred_region
      _
    $region85: #{c_radio_v2_forward.1} parent=1 // pred_fallthru
      _
    // Predicated region
    $region86: #{c_radio_v2_forward.1} parent=1 // pred_check
      _
    $region87: #{c_radio_v2_forward.1} parent=1 // pred_check_branch
      %3933 = sbr.rel (0) target = $region89
    $region88: #{c_radio_v2_forward.1} parent=1 // pred_region
      _
    $region89: #{c_radio_v2_forward.1} parent=1 // pred_fallthru
      _
    %3934 = vsyncpa [#allocation3], 1
    %3935 = vsyncpa [#allocation5], 1

</llo_original>
